<compile_context>
chip_gen: v7x
topology: tpu7x:2x2x1
jax: 0.10.0
libtpu: 0.0.40
codegen_flags: <defaults>
</compile_context>

<pallas_src>
import math

import jax
import jax.numpy as jnp
from jax import lax
from jax.experimental import pallas as pl
from jax.experimental.pallas import tpu as pltpu

INPUT_SIZE = 50
HIDDEN = 16
OUT_SIZE = 50

# PyTorch LSTM gate order along the 4H axis is [i, f, g, o]; we pack gates as [i, f, o, g]
_GATE_PERM = (0, 1, 3, 2)


# ----------------------------------------------------------------------------------
# Kernel
# ----------------------------------------------------------------------------------
def _make_kernel(T, Bc):
    H = HIDDEN

    def kernel(x_ref, xr_ref,                       # (T*Bc, D) natural / time-reversed input
               a1, b1, whh1, bias1,                 # layer1: (D,8H), (D,8H), (2H,8H), (1,8H)
               a2, b2, whh2, bias2,                 # layer2: (2H,8H), (2H,8H), (2H,8H), (1,8H)
               wla, wlb, bl,                        # linear: (2H,OUT), (2H,OUT), (1,OUT)
               out_ref,                             # (T*Bc, OUT)
               xg, s1p, s1r, s2p, s2r):             # VMEM scratch slabs
        def merged_recurrence(whh, out_p, out_r):
            """One lane-packed recurrence computing fwd+bwd directions together.

            Packed gate layout (128 lanes): [i_f,i_b, f_f,f_b, o_f,o_b, g_f,g_b] (H each).
            Packed state layout (2H lanes): [h_f | h_b], [c_f | c_b].
            Step i: fwd direction is at time i, bwd direction at time T-1-i.
            out_p[row i]    = relu([h_f(i) | h_b(T-1-i)])   (packed, natural step order)
            out_r[row T-1-i] = same tile                     (time-reversed copy)
            """
            whh_v = whh[...]                        # hoisted out of the loop

            def step(i, h, c):
                g = xg[pl.ds(i * Bc, Bc), :] + jnp.dot(
                    h, whh_v, preferred_element_type=jnp.float32)
                sg = jax.nn.sigmoid(g[:, 0:6 * H])          # i, f, o gates (both dirs)
                gg = jnp.tanh(g[:, 6 * H:8 * H])            # g gate (both dirs)
                c = sg[:, 2 * H:4 * H] * c + sg[:, 0:2 * H] * gg
                h = sg[:, 4 * H:6 * H] * jnp.tanh(c)
                r = jnp.maximum(h, 0.0)                     # fused ReLU on layer outputs
                out_p[pl.ds(i * Bc, Bc), :] = r
                out_r[pl.ds((T - 1 - i) * Bc, Bc), :] = r
                return h, c

            h = jnp.zeros((Bc, 2 * H), jnp.float32)
            c = jnp.zeros((Bc, 2 * H), jnp.float32)
            if T <= 32:
                # Full unroll (static indices) -> scheduler sees across iterations.
                for i in range(T):
                    h, c = step(i, h, c)
            else:
                lax.fori_loop(0, T, lambda i, hc: step(i, *hc), (h, c))

        # ---- layer 1: x-gates for every timestep as two slab matmuls (bias folded in) ----
        xg[...] = (jnp.dot(x_ref[...], a1[...], preferred_element_type=jnp.float32)
                   + jnp.dot(xr_ref[...], b1[...], preferred_element_type=jnp.float32)
                   + bias1[...])
        merged_recurrence(whh1, s1p, s1r)

        # ---- layer 2: x-gates from layer-1 outputs (natural + reversed slabs) ----
        xg[...] = (jnp.dot(s1p[...], a2[...], preferred_element_type=jnp.float32)
                   + jnp.dot(s1r[...], b2[...], preferred_element_type=jnp.float32)
                   + bias2[...])
        merged_recurrence(whh2, s2p, s2r)

        # ---- final Linear + Tanh over the whole (T*Bc, .) slab ----
        out_ref[...] = jnp.tanh(
            jnp.dot(s2p[...], wla[...], preferred_element_type=jnp.float32)
            + jnp.dot(s2r[...], wlb[...], preferred_element_type=jnp.float32)
            + bl[...])

    return kernel


# ----------------------------------------------------------------------------------
# Weight packing (wrapper side, plain JAX)
# ----------------------------------------------------------------------------------
def _gate_cols(wT):
    """(din, 4H) with torch column order [i,f,g,o] -> list of 4 (din, H) blocks [i,f,o,g]."""
    H = HIDDEN
    return [wT[:, g * H:(g + 1) * H] for g in _GATE_PERM]


def _gate_vec(b):
    H = HIDDEN
    return [b[g * H:(g + 1) * H] for g in _GATE_PERM]


def _pack_weights(params):
    H = HIDDEN
    f32 = jnp.float32
    ZH = jnp.zeros((H, H), f32)

    def layer1_x(pf, pb):
        wfT = pf["w_ih"].T.astype(f32)              # (D, 4H)
        wbT = pb["w_ih"].T.astype(f32)
        Z = jnp.zeros((wfT.shape[0], H), f32)
        f, b = _gate_cols(wfT), _gate_cols(wbT)
        A = jnp.concatenate([m for k in range(4) for m in (f[k], Z)], axis=1)    # fwd cols
        B = jnp.concatenate([m for k in range(4) for m in (Z, b[k])], axis=1)    # bwd cols
        return A, B

    def layer2_x(pf, pb):
        # Layer-2 input at time t is [O1f(t), O1b(t)]; the kernel holds S1p[t]=[O1f(t),O1b(T-1-t)]
        # and S1r[t]=[O1f(T-1-t),O1b(t)], so the projection is S1p @ A2 + S1r @ B2.
        wfT = pf["w_ih"].T.astype(f32)              # (2H, 4H)
        wbT = pb["w_ih"].T.astype(f32)
        f_top, f_bot = _gate_cols(wfT[:H]), _gate_cols(wfT[H:])
        b_top, b_bot = _gate_cols(wbT[:H]), _gate_cols(wbT[H:])
        a_cols, b_cols = [], []
        for k in range(4):
            a_cols += [jnp.concatenate([f_top[k], ZH], 0),   # fwd slot: O1f(t) @ W2f_top
                       jnp.concatenate([ZH, b_bot[k]], 0)]   # bwd slot: O1b(T-1-t) @ W2b_bot
            b_cols += [jnp.concatenate([ZH, f_bot[k]], 0),   # fwd slot: O1b(t) @ W2f_bot
                       jnp.concatenate([b_top[k], ZH], 0)]   # bwd slot: O1f(T-1-t) @ W2b_top
        return jnp.concatenate(a_cols, 1), jnp.concatenate(b_cols, 1)

    def hh_blockdiag(pf, pb):
        wfT = pf["w_hh"].T.astype(f32)              # (H, 4H)
        wbT = pb["w_hh"].T.astype(f32)
        f, b = _gate_cols(wfT), _gate_cols(wbT)
        cols = []
        for k in range(4):
            cols += [jnp.concatenate([f[k], ZH], 0),         # fwd gate cols: only h_f rows
                     jnp.concatenate([ZH, b[k]], 0)]         # bwd gate cols: only h_b rows
        return jnp.concatenate(cols, 1)                      # (2H, 8H)

    def bias_packed(pf, pb):
        bf = _gate_vec((pf["b_ih"] + pf["b_hh"]).astype(f32))
        bb = _gate_vec((pb["b_ih"] + pb["b_hh"]).astype(f32))
        return jnp.concatenate([v for k in range(4) for v in (bf[k], bb[k])])[None, :]

    A1, B1 = layer1_x(params["l1f"], params["l1b"])
    A2, B2 = layer2_x(params["l2f"], params["l2b"])
    Whh1 = hh_blockdiag(params["l1f"], params["l1b"])
    Whh2 = hh_blockdiag(params["l2f"], params["l2b"])
    bias1 = bias_packed(params["l1f"], params["l1b"])
    bias2 = bias_packed(params["l2f"], params["l2b"])

    wlT = params["lin_w"].T.astype(f32)             # (2H, OUT)
    ZO = jnp.zeros((H, OUT_SIZE), f32)
    Wla = jnp.concatenate([wlT[:H], ZO], 0)         # consumes O2f(t) from S2p
    Wlb = jnp.concatenate([ZO, wlT[H:]], 0)         # consumes O2b(t) from S2r
    bl = params["lin_b"].astype(f32)[None, :]
    return (A1, B1, Whh1, bias1, A2, B2, Whh2, bias2, Wla, Wlb, bl)


# ----------------------------------------------------------------------------------
# Wrapper
# ----------------------------------------------------------------------------------
def _default_batch_chunks(B):
    """Split the batch across TensorCores only on multi-TC chips (v7x / v4 / v5p)."""
    try:
        kind = jax.devices()[0].device_kind.lower()
    except Exception:
        kind = ""
    multi_tc = any(s in kind for s in ("7x", "v7", "v4", "v5p"))
    return 2 if (multi_tc and B >= 2 and B % 2 == 0) else 1


def generator_lstm_forward(x, params, *, batch_chunks=None):
    B, T, D = x.shape
    assert D == INPUT_SIZE
    if batch_chunks is None:
        batch_chunks = _default_batch_chunks(B)
    assert B % batch_chunks == 0
    Bc = B // batch_chunks
    TB = T * Bc

    # (B, T, D) -> per chunk: time-major flattened (T*Bc, D), plus a time-reversed copy
    # for the backward direction of layer 1.
    xc = x.astype(jnp.float32).reshape(batch_chunks, Bc, T, D)
    x_fwd = xc.transpose(0, 2, 1, 3).reshape(batch_chunks, TB, D)
    x_bwd = xc[:, :, ::-1].transpose(0, 2, 1, 3).reshape(batch_chunks, TB, D)

    packed = _pack_weights(params)

    def data_spec(feat):
        return pl.BlockSpec((None, TB, feat), lambda c: (c, 0, 0))

    def full_spec(arr):
        zeros = (0,) * arr.ndim
        return pl.BlockSpec(arr.shape, lambda c: zeros)

    in_specs = [data_spec(D), data_spec(D)] + [full_spec(w) for w in packed]

    out = pl.pallas_call(
        _make_kernel(T, Bc),
        out_shape=jax.ShapeDtypeStruct((batch_chunks, TB, OUT_SIZE), jnp.float32),
        grid=(batch_chunks,),
        in_specs=in_specs,
        out_specs=pl.BlockSpec((None, TB, OUT_SIZE), lambda c: (c, 0, 0)),
        scratch_shapes=[pltpu.VMEM((TB, 8 * HIDDEN), jnp.float32)]      # x-gate slab (reused)
                     + [pltpu.VMEM((TB, 2 * HIDDEN), jnp.float32)] * 4,  # s1p, s1r, s2p, s2r
        compiler_params=pltpu.CompilerParams(dimension_semantics=("parallel",)),
    )(x_fwd, x_bwd, *packed)

    # (chunks, T*Bc, OUT) -> (B, T, OUT)  (layout plumbing in the wrapper, not the kernel)
    out = out.reshape(batch_chunks, T, Bc, OUT_SIZE).transpose(0, 2, 1, 3)
    return out.reshape(B, T, OUT_SIZE)


# ----------------------------------------------------------------------------------
# Deterministic parameter init (PyTorch-style uniform ranges, synthetic values)
# ----------------------------------------------------------------------------------
def _uniform(key, shape, bound):
    return jax.random.uniform(key, shape, jnp.float32, -bound, bound)


def init_params(key):
    H = HIDDEN
    keys = jax.random.split(key, 5)

    def lstm_dir(k, din):
        k1, k2, k3, k4 = jax.random.split(k, 4)
        b = 1.0 / math.sqrt(H)
        return dict(w_ih=_uniform(k1, (4 * H, din), b),
                    w_hh=_uniform(k2, (4 * H, H), b),
                    b_ih=_uniform(k3, (4 * H,), b),
                    b_hh=_uniform(k4, (4 * H,), b))

    k5a, k5b = jax.random.split(keys[4])
    lin_bound = 1.0 / math.sqrt(2 * H)
    return dict(
        l1f=lstm_dir(keys[0], INPUT_SIZE),
        l1b=lstm_dir(keys[1], INPUT_SIZE),
        l2f=lstm_dir(keys[2], 2 * H),
        l2b=lstm_dir(keys[3], 2 * H),
        lin_w=_uniform(k5a, (OUT_SIZE, 2 * H), lin_bound),
        lin_b=_uniform(k5b, (OUT_SIZE,), lin_bound),
    )


# ----------------------------------------------------------------------------------
# Pure-JAX reference (mirrors torch.nn.LSTM semantics) for the correctness check
# ----------------------------------------------------------------------------------
def _lstm_dir_ref(x, p, reverse):
    H = HIDDEN
    B = x.shape[0]
    xs = jnp.transpose(x, (1, 0, 2))
    if reverse:
        xs = xs[::-1]

    def step(carry, x_t):
        h, c = carry
        gates = x_t @ p["w_ih"].T + h @ p["w_hh"].T + p["b_ih"] + p["b_hh"]
        ig = jax.nn.sigmoid(gates[:, 0:H])
        fg = jax.nn.sigmoid(gates[:, H:2 * H])
        gg = jnp.tanh(gates[:, 2 * H:3 * H])
        og = jax.nn.sigmoid(gates[:, 3 * H:4 * H])
        c = fg * c + ig * gg
        h = og * jnp.tanh(c)
        return (h, c), h

    h0 = jnp.zeros((B, H), jnp.float32)
    _, hs = lax.scan(step, (h0, h0), xs)
    if reverse:
        hs = hs[::-1]
    return jnp.transpose(hs, (1, 0, 2))


def generator_lstm_ref(x, params):
    o1 = jnp.concatenate([_lstm_dir_ref(x, params["l1f"], False),
                          _lstm_dir_ref(x, params["l1b"], True)], axis=-1)
    o1 = jax.nn.relu(o1)
    o2 = jnp.concatenate([_lstm_dir_ref(o1, params["l2f"], False),
                          _lstm_dir_ref(o1, params["l2b"], True)], axis=-1)
    o2 = jax.nn.relu(o2)
    return jnp.tanh(o2 @ params["lin_w"].T + params["lin_b"])


if __name__ == "__main__":
    key = jax.random.PRNGKey(0)
    kx, kp = jax.random.split(key)
    params = init_params(kp)

    batch, seq = 2, 8
    x = jax.random.normal(kx, (batch, seq, INPUT_SIZE), jnp.float32)

    out = jax.block_until_ready(generator_lstm_forward(x, params))
    ref = jax.block_until_ready(generator_lstm_ref(x, params))

    assert out.shape == (batch, seq, OUT_SIZE), out.shape
    assert bool(jnp.all(jnp.isfinite(out)))
    max_err = float(jnp.max(jnp.abs(out - ref)))
    assert jnp.allclose(out, ref, atol=2e-3, rtol=2e-3), f"max abs err {max_err}"
    print("KERNEL_OK")
</pallas_src>

<mosaic_0001>
module attributes {stable_mosaic.version = 11 : i64} {
  func.func @kernel(%arg0: i32, %arg1: memref<1x16x50xf32, #tpu.memory_space<vmem>>, %arg2: memref<1x16x50xf32, #tpu.memory_space<vmem>>, %arg3: memref<50x128xf32, #tpu.memory_space<vmem>>, %arg4: memref<50x128xf32, #tpu.memory_space<vmem>>, %arg5: memref<32x128xf32, #tpu.memory_space<vmem>>, %arg6: memref<1x128xf32, #tpu.memory_space<vmem>>, %arg7: memref<32x128xf32, #tpu.memory_space<vmem>>, %arg8: memref<32x128xf32, #tpu.memory_space<vmem>>, %arg9: memref<32x128xf32, #tpu.memory_space<vmem>>, %arg10: memref<1x128xf32, #tpu.memory_space<vmem>>, %arg11: memref<32x50xf32, #tpu.memory_space<vmem>>, %arg12: memref<32x50xf32, #tpu.memory_space<vmem>>, %arg13: memref<1x50xf32, #tpu.memory_space<vmem>>, %arg14: memref<1x16x50xf32, #tpu.memory_space<vmem>>, %arg15: memref<16x128xf32, #tpu.memory_space<vmem>>, %arg16: memref<16x32xf32, #tpu.memory_space<vmem>>, %arg17: memref<16x32xf32, #tpu.memory_space<vmem>>, %arg18: memref<16x32xf32, #tpu.memory_space<vmem>>, %arg19: memref<16x32xf32, #tpu.memory_space<vmem>>) attributes {dimension_semantics = [#tpu.dimension_semantics<parallel>], iteration_bounds = array<i64: 1>, scalar_prefetch = 0 : i64, scratch_operands = 5 : i64, tpu.core_type = #tpu.core_type<tc>, window_params = [{transform_indices = @transform_0, window_bounds = array<i64: 1, 16, 50>}, {transform_indices = @transform_1, window_bounds = array<i64: 1, 16, 50>}, {pipeline_mode = #tpu.pipeline_mode<synchronous>, transform_indices = @transform_2, window_bounds = array<i64: 50, 128>}, {pipeline_mode = #tpu.pipeline_mode<synchronous>, transform_indices = @transform_3, window_bounds = array<i64: 50, 128>}, {pipeline_mode = #tpu.pipeline_mode<synchronous>, transform_indices = @transform_4, window_bounds = array<i64: 32, 128>}, {pipeline_mode = #tpu.pipeline_mode<synchronous>, transform_indices = @transform_5, window_bounds = array<i64: 1, 128>}, {pipeline_mode = #tpu.pipeline_mode<synchronous>, transform_indices = @transform_6, window_bounds = array<i64: 32, 128>}, {pipeline_mode = #tpu.pipeline_mode<synchronous>, transform_indices = @transform_7, window_bounds = array<i64: 32, 128>}, {pipeline_mode = #tpu.pipeline_mode<synchronous>, transform_indices = @transform_8, window_bounds = array<i64: 32, 128>}, {pipeline_mode = #tpu.pipeline_mode<synchronous>, transform_indices = @transform_9, window_bounds = array<i64: 1, 128>}, {pipeline_mode = #tpu.pipeline_mode<synchronous>, transform_indices = @transform_10, window_bounds = array<i64: 32, 50>}, {pipeline_mode = #tpu.pipeline_mode<synchronous>, transform_indices = @transform_11, window_bounds = array<i64: 32, 50>}, {pipeline_mode = #tpu.pipeline_mode<synchronous>, transform_indices = @transform_12, window_bounds = array<i64: 1, 50>}, {transform_indices = @transform_13, window_bounds = array<i64: 1, 16, 50>}]} {
    %c0 = arith.constant 0 : index
    %c0_0 = arith.constant 0 : index
    %c0_1 = arith.constant 0 : index
    %0 = vector.load %arg1[%c0, %c0_0, %c0_1] : memref<1x16x50xf32, #tpu.memory_space<vmem>>, vector<1x16x50xf32>
    %1 = vector.shape_cast %0 : vector<1x16x50xf32> to vector<16x50xf32>
    %c0_2 = arith.constant 0 : index
    %c0_3 = arith.constant 0 : index
    %2 = vector.load %arg3[%c0_2, %c0_3] : memref<50x128xf32, #tpu.memory_space<vmem>>, vector<50x128xf32>
    %cst = arith.constant dense<0.000000e+00> : vector<16x128xf32>
    %3 = tpu.matmul %1, %2, %cst {dimension_numbers = #tpu.dot_dimension_numbers<[1], [0], [0], [1], [0, 0, 1, 1], [], []>} : vector<16x50xf32>, vector<50x128xf32>, vector<16x128xf32> -> vector<16x128xf32>
    %c0_4 = arith.constant 0 : index
    %c0_5 = arith.constant 0 : index
    %c0_6 = arith.constant 0 : index
    %4 = vector.load %arg2[%c0_4, %c0_5, %c0_6] : memref<1x16x50xf32, #tpu.memory_space<vmem>>, vector<1x16x50xf32>
    %5 = vector.shape_cast %4 : vector<1x16x50xf32> to vector<16x50xf32>
    %c0_7 = arith.constant 0 : index
    %c0_8 = arith.constant 0 : index
    %6 = vector.load %arg4[%c0_7, %c0_8] : memref<50x128xf32, #tpu.memory_space<vmem>>, vector<50x128xf32>
    %cst_9 = arith.constant dense<0.000000e+00> : vector<16x128xf32>
    %7 = tpu.matmul %5, %6, %cst_9 {dimension_numbers = #tpu.dot_dimension_numbers<[1], [0], [0], [1], [0, 0, 1, 1], [], []>} : vector<16x50xf32>, vector<50x128xf32>, vector<16x128xf32> -> vector<16x128xf32>
    %8 = arith.addf %3, %7 : vector<16x128xf32>
    %c0_10 = arith.constant 0 : index
    %c0_11 = arith.constant 0 : index
    %9 = vector.load %arg6[%c0_10, %c0_11] : memref<1x128xf32, #tpu.memory_space<vmem>>, vector<1x128xf32>
    %10 = vector.broadcast %9 : vector<1x128xf32> to vector<16x128xf32>
    %11 = arith.addf %8, %10 : vector<16x128xf32>
    %c0_12 = arith.constant 0 : index
    %c0_13 = arith.constant 0 : index
    %12 = vector.load %arg15[%c0_12, %c0_13] : memref<16x128xf32, #tpu.memory_space<vmem>>, vector<16x128xf32>
    tpu.vector_store %arg15[%c0_12, %c0_13], %11 {strides = array<i32>} : memref<16x128xf32, #tpu.memory_space<vmem>>, vector<16x128xf32>,
    %c0_14 = arith.constant 0 : index
    %c0_15 = arith.constant 0 : index
    %13 = vector.load %arg5[%c0_14, %c0_15] : memref<32x128xf32, #tpu.memory_space<vmem>>, vector<32x128xf32>
    %cst_16 = arith.constant 0.000000e+00 : f32
    %14 = vector.broadcast %cst_16 : f32 to vector<2x32xf32>
    %cst_17 = arith.constant 0.000000e+00 : f32
    %15 = vector.broadcast %cst_17 : f32 to vector<2x32xf32>
    %c0_18 = arith.constant 0 : index
    %c0_19 = arith.constant 0 : index
    %16 = vector.load %arg15[%c0_18, %c0_19] : memref<16x128xf32, #tpu.memory_space<vmem>>, vector<2x128xf32>
    %cst_20 = arith.constant dense<0.000000e+00> : vector<2x128xf32>
    %17 = tpu.matmul %14, %13, %cst_20 {dimension_numbers = #tpu.dot_dimension_numbers<[1], [0], [0], [1], [0, 0, 1, 1], [], []>} : vector<2x32xf32>, vector<32x128xf32>, vector<2x128xf32> -> vector<2x128xf32>
    %18 = arith.addf %16, %17 : vector<2x128xf32>
    %19 = vector.extract_strided_slice %18 {offsets = [0, 0], sizes = [2, 96], strides = [1, 1]} : vector<2x128xf32> to vector<2x96xf32>
    %20 = arith.negf %19 : vector<2x96xf32>
    %21 = math.exp %20 : vector<2x96xf32>
    %cst_21 = arith.constant 1.000000e+00 : f32
    %22 = vector.broadcast %cst_21 : f32 to vector<2x96xf32>
    %23 = arith.addf %22, %21 : vector<2x96xf32>
    %24 = arith.divf %22, %23 : vector<2x96xf32>
    %25 = vector.extract_strided_slice %18 {offsets = [0, 96], sizes = [2, 32], strides = [1, 1]} : vector<2x128xf32> to vector<2x32xf32>
    %26 = math.tanh %25 : vector<2x32xf32>
    %27 = vector.extract_strided_slice %24 {offsets = [0, 32], sizes = [2, 32], strides = [1, 1]} : vector<2x96xf32> to vector<2x32xf32>
    %28 = arith.mulf %27, %15 : vector<2x32xf32>
    %29 = vector.extract_strided_slice %24 {offsets = [0, 0], sizes = [2, 32], strides = [1, 1]} : vector<2x96xf32> to vector<2x32xf32>
    %30 = arith.mulf %29, %26 : vector<2x32xf32>
    %31 = arith.addf %28, %30 : vector<2x32xf32>
    %32 = vector.extract_strided_slice %24 {offsets = [0, 64], sizes = [2, 32], strides = [1, 1]} : vector<2x96xf32> to vector<2x32xf32>
    %33 = math.tanh %31 : vector<2x32xf32>
    %34 = arith.mulf %32, %33 : vector<2x32xf32>
    %cst_22 = arith.constant 0.000000e+00 : f32
    %35 = vector.broadcast %cst_22 : f32 to vector<2x32xf32>
    %36 = arith.maximumf %34, %35 : vector<2x32xf32>
    %c0_23 = arith.constant 0 : index
    %c0_24 = arith.constant 0 : index
    %37 = vector.load %arg16[%c0_23, %c0_24] : memref<16x32xf32, #tpu.memory_space<vmem>>, vector<2x32xf32>
    tpu.vector_store %arg16[%c0_23, %c0_24], %36 {strides = array<i32>} : memref<16x32xf32, #tpu.memory_space<vmem>>, vector<2x32xf32>,
    %c14 = arith.constant 14 : index
    %c0_25 = arith.constant 0 : index
    %38 = vector.load %arg17[%c14, %c0_25] : memref<16x32xf32, #tpu.memory_space<vmem>>, vector<2x32xf32>
    tpu.vector_store %arg17[%c14, %c0_25], %36 {strides = array<i32>} : memref<16x32xf32, #tpu.memory_space<vmem>>, vector<2x32xf32>,
    %c2 = arith.constant 2 : index
    %c0_26 = arith.constant 0 : index
    %39 = vector.load %arg15[%c2, %c0_26] : memref<16x128xf32, #tpu.memory_space<vmem>>, vector<2x128xf32>
    %cst_27 = arith.constant dense<0.000000e+00> : vector<2x128xf32>
    %40 = tpu.matmul %34, %13, %cst_27 {dimension_numbers = #tpu.dot_dimension_numbers<[1], [0], [0], [1], [0, 0, 1, 1], [], []>} : vector<2x32xf32>, vector<32x128xf32>, vector<2x128xf32> -> vector<2x128xf32>
    %41 = arith.addf %39, %40 : vector<2x128xf32>
    %42 = vector.extract_strided_slice %41 {offsets = [0, 0], sizes = [2, 96], strides = [1, 1]} : vector<2x128xf32> to vector<2x96xf32>
    %43 = arith.negf %42 : vector<2x96xf32>
    %44 = math.exp %43 : vector<2x96xf32>
    %cst_28 = arith.constant 1.000000e+00 : f32
    %45 = vector.broadcast %cst_28 : f32 to vector<2x96xf32>
    %46 = arith.addf %45, %44 : vector<2x96xf32>
    %47 = arith.divf %45, %46 : vector<2x96xf32>
    %48 = vector.extract_strided_slice %41 {offsets = [0, 96], sizes = [2, 32], strides = [1, 1]} : vector<2x128xf32> to vector<2x32xf32>
    %49 = math.tanh %48 : vector<2x32xf32>
    %50 = vector.extract_strided_slice %47 {offsets = [0, 32], sizes = [2, 32], strides = [1, 1]} : vector<2x96xf32> to vector<2x32xf32>
    %51 = arith.mulf %50, %31 : vector<2x32xf32>
    %52 = vector.extract_strided_slice %47 {offsets = [0, 0], sizes = [2, 32], strides = [1, 1]} : vector<2x96xf32> to vector<2x32xf32>
    %53 = arith.mulf %52, %49 : vector<2x32xf32>
    %54 = arith.addf %51, %53 : vector<2x32xf32>
    %55 = vector.extract_strided_slice %47 {offsets = [0, 64], sizes = [2, 32], strides = [1, 1]} : vector<2x96xf32> to vector<2x32xf32>
    %56 = math.tanh %54 : vector<2x32xf32>
    %57 = arith.mulf %55, %56 : vector<2x32xf32>
    %cst_29 = arith.constant 0.000000e+00 : f32
    %58 = vector.broadcast %cst_29 : f32 to vector<2x32xf32>
    %59 = arith.maximumf %57, %58 : vector<2x32xf32>
    %c2_30 = arith.constant 2 : index
    %c0_31 = arith.constant 0 : index
    %60 = vector.load %arg16[%c2_30, %c0_31] : memref<16x32xf32, #tpu.memory_space<vmem>>, vector<2x32xf32>
    tpu.vector_store %arg16[%c2_30, %c0_31], %59 {strides = array<i32>} : memref<16x32xf32, #tpu.memory_space<vmem>>, vector<2x32xf32>,
    %c12 = arith.constant 12 : index
    %c0_32 = arith.constant 0 : index
    %61 = vector.load %arg17[%c12, %c0_32] : memref<16x32xf32, #tpu.memory_space<vmem>>, vector<2x32xf32>
    tpu.vector_store %arg17[%c12, %c0_32], %59 {strides = array<i32>} : memref<16x32xf32, #tpu.memory_space<vmem>>, vector<2x32xf32>,
    %c4 = arith.constant 4 : index
    %c0_33 = arith.constant 0 : index
    %62 = vector.load %arg15[%c4, %c0_33] : memref<16x128xf32, #tpu.memory_space<vmem>>, vector<2x128xf32>
    %cst_34 = arith.constant dense<0.000000e+00> : vector<2x128xf32>
    %63 = tpu.matmul %57, %13, %cst_34 {dimension_numbers = #tpu.dot_dimension_numbers<[1], [0], [0], [1], [0, 0, 1, 1], [], []>} : vector<2x32xf32>, vector<32x128xf32>, vector<2x128xf32> -> vector<2x128xf32>
    %64 = arith.addf %62, %63 : vector<2x128xf32>
    %65 = vector.extract_strided_slice %64 {offsets = [0, 0], sizes = [2, 96], strides = [1, 1]} : vector<2x128xf32> to vector<2x96xf32>
    %66 = arith.negf %65 : vector<2x96xf32>
    %67 = math.exp %66 : vector<2x96xf32>
    %cst_35 = arith.constant 1.000000e+00 : f32
    %68 = vector.broadcast %cst_35 : f32 to vector<2x96xf32>
    %69 = arith.addf %68, %67 : vector<2x96xf32>
    %70 = arith.divf %68, %69 : vector<2x96xf32>
    %71 = vector.extract_strided_slice %64 {offsets = [0, 96], sizes = [2, 32], strides = [1, 1]} : vector<2x128xf32> to vector<2x32xf32>
    %72 = math.tanh %71 : vector<2x32xf32>
    %73 = vector.extract_strided_slice %70 {offsets = [0, 32], sizes = [2, 32], strides = [1, 1]} : vector<2x96xf32> to vector<2x32xf32>
    %74 = arith.mulf %73, %54 : vector<2x32xf32>
    %75 = vector.extract_strided_slice %70 {offsets = [0, 0], sizes = [2, 32], strides = [1, 1]} : vector<2x96xf32> to vector<2x32xf32>
    %76 = arith.mulf %75, %72 : vector<2x32xf32>
    %77 = arith.addf %74, %76 : vector<2x32xf32>
    %78 = vector.extract_strided_slice %70 {offsets = [0, 64], sizes = [2, 32], strides = [1, 1]} : vector<2x96xf32> to vector<2x32xf32>
    %79 = math.tanh %77 : vector<2x32xf32>
    %80 = arith.mulf %78, %79 : vector<2x32xf32>
    %cst_36 = arith.constant 0.000000e+00 : f32
    %81 = vector.broadcast %cst_36 : f32 to vector<2x32xf32>
    %82 = arith.maximumf %80, %81 : vector<2x32xf32>
    %c4_37 = arith.constant 4 : index
    %c0_38 = arith.constant 0 : index
    %83 = vector.load %arg16[%c4_37, %c0_38] : memref<16x32xf32, #tpu.memory_space<vmem>>, vector<2x32xf32>
    tpu.vector_store %arg16[%c4_37, %c0_38], %82 {strides = array<i32>} : memref<16x32xf32, #tpu.memory_space<vmem>>, vector<2x32xf32>,
    %c10 = arith.constant 10 : index
    %c0_39 = arith.constant 0 : index
    %84 = vector.load %arg17[%c10, %c0_39] : memref<16x32xf32, #tpu.memory_space<vmem>>, vector<2x32xf32>
    tpu.vector_store %arg17[%c10, %c0_39], %82 {strides = array<i32>} : memref<16x32xf32, #tpu.memory_space<vmem>>, vector<2x32xf32>,
    %c6 = arith.constant 6 : index
    %c0_40 = arith.constant 0 : index
    %85 = vector.load %arg15[%c6, %c0_40] : memref<16x128xf32, #tpu.memory_space<vmem>>, vector<2x128xf32>
    %cst_41 = arith.constant dense<0.000000e+00> : vector<2x128xf32>
    %86 = tpu.matmul %80, %13, %cst_41 {dimension_numbers = #tpu.dot_dimension_numbers<[1], [0], [0], [1], [0, 0, 1, 1], [], []>} : vector<2x32xf32>, vector<32x128xf32>, vector<2x128xf32> -> vector<2x128xf32>
    %87 = arith.addf %85, %86 : vector<2x128xf32>
    %88 = vector.extract_strided_slice %87 {offsets = [0, 0], sizes = [2, 96], strides = [1, 1]} : vector<2x128xf32> to vector<2x96xf32>
    %89 = arith.negf %88 : vector<2x96xf32>
    %90 = math.exp %89 : vector<2x96xf32>
    %cst_42 = arith.constant 1.000000e+00 : f32
    %91 = vector.broadcast %cst_42 : f32 to vector<2x96xf32>
    %92 = arith.addf %91, %90 : vector<2x96xf32>
    %93 = arith.divf %91, %92 : vector<2x96xf32>
    %94 = vector.extract_strided_slice %87 {offsets = [0, 96], sizes = [2, 32], strides = [1, 1]} : vector<2x128xf32> to vector<2x32xf32>
    %95 = math.tanh %94 : vector<2x32xf32>
    %96 = vector.extract_strided_slice %93 {offsets = [0, 32], sizes = [2, 32], strides = [1, 1]} : vector<2x96xf32> to vector<2x32xf32>
    %97 = arith.mulf %96, %77 : vector<2x32xf32>
    %98 = vector.extract_strided_slice %93 {offsets = [0, 0], sizes = [2, 32], strides = [1, 1]} : vector<2x96xf32> to vector<2x32xf32>
    %99 = arith.mulf %98, %95 : vector<2x32xf32>
    %100 = arith.addf %97, %99 : vector<2x32xf32>
    %101 = vector.extract_strided_slice %93 {offsets = [0, 64], sizes = [2, 32], strides = [1, 1]} : vector<2x96xf32> to vector<2x32xf32>
    %102 = math.tanh %100 : vector<2x32xf32>
    %103 = arith.mulf %101, %102 : vector<2x32xf32>
    %cst_43 = arith.constant 0.000000e+00 : f32
    %104 = vector.broadcast %cst_43 : f32 to vector<2x32xf32>
    %105 = arith.maximumf %103, %104 : vector<2x32xf32>
    %c6_44 = arith.constant 6 : index
    %c0_45 = arith.constant 0 : index
    %106 = vector.load %arg16[%c6_44, %c0_45] : memref<16x32xf32, #tpu.memory_space<vmem>>, vector<2x32xf32>
    tpu.vector_store %arg16[%c6_44, %c0_45], %105 {strides = array<i32>} : memref<16x32xf32, #tpu.memory_space<vmem>>, vector<2x32xf32>,
    %c8 = arith.constant 8 : index
    %c0_46 = arith.constant 0 : index
    %107 = vector.load %arg17[%c8, %c0_46] : memref<16x32xf32, #tpu.memory_space<vmem>>, vector<2x32xf32>
    tpu.vector_store %arg17[%c8, %c0_46], %105 {strides = array<i32>} : memref<16x32xf32, #tpu.memory_space<vmem>>, vector<2x32xf32>,
    %c8_47 = arith.constant 8 : index
    %c0_48 = arith.constant 0 : index
    %108 = vector.load %arg15[%c8_47, %c0_48] : memref<16x128xf32, #tpu.memory_space<vmem>>, vector<2x128xf32>
    %cst_49 = arith.constant dense<0.000000e+00> : vector<2x128xf32>
    %109 = tpu.matmul %103, %13, %cst_49 {dimension_numbers = #tpu.dot_dimension_numbers<[1], [0], [0], [1], [0, 0, 1, 1], [], []>} : vector<2x32xf32>, vector<32x128xf32>, vector<2x128xf32> -> vector<2x128xf32>
    %110 = arith.addf %108, %109 : vector<2x128xf32>
    %111 = vector.extract_strided_slice %110 {offsets = [0, 0], sizes = [2, 96], strides = [1, 1]} : vector<2x128xf32> to vector<2x96xf32>
    %112 = arith.negf %111 : vector<2x96xf32>
    %113 = math.exp %112 : vector<2x96xf32>
    %cst_50 = arith.constant 1.000000e+00 : f32
    %114 = vector.broadcast %cst_50 : f32 to vector<2x96xf32>
    %115 = arith.addf %114, %113 : vector<2x96xf32>
    %116 = arith.divf %114, %115 : vector<2x96xf32>
    %117 = vector.extract_strided_slice %110 {offsets = [0, 96], sizes = [2, 32], strides = [1, 1]} : vector<2x128xf32> to vector<2x32xf32>
    %118 = math.tanh %117 : vector<2x32xf32>
    %119 = vector.extract_strided_slice %116 {offsets = [0, 32], sizes = [2, 32], strides = [1, 1]} : vector<2x96xf32> to vector<2x32xf32>
    %120 = arith.mulf %119, %100 : vector<2x32xf32>
    %121 = vector.extract_strided_slice %116 {offsets = [0, 0], sizes = [2, 32], strides = [1, 1]} : vector<2x96xf32> to vector<2x32xf32>
    %122 = arith.mulf %121, %118 : vector<2x32xf32>
    %123 = arith.addf %120, %122 : vector<2x32xf32>
    %124 = vector.extract_strided_slice %116 {offsets = [0, 64], sizes = [2, 32], strides = [1, 1]} : vector<2x96xf32> to vector<2x32xf32>
    %125 = math.tanh %123 : vector<2x32xf32>
    %126 = arith.mulf %124, %125 : vector<2x32xf32>
    %cst_51 = arith.constant 0.000000e+00 : f32
    %127 = vector.broadcast %cst_51 : f32 to vector<2x32xf32>
    %128 = arith.maximumf %126, %127 : vector<2x32xf32>
    %c8_52 = arith.constant 8 : index
    %c0_53 = arith.constant 0 : index
    %129 = vector.load %arg16[%c8_52, %c0_53] : memref<16x32xf32, #tpu.memory_space<vmem>>, vector<2x32xf32>
    tpu.vector_store %arg16[%c8_52, %c0_53], %128 {strides = array<i32>} : memref<16x32xf32, #tpu.memory_space<vmem>>, vector<2x32xf32>,
    %c6_54 = arith.constant 6 : index
    %c0_55 = arith.constant 0 : index
    %130 = vector.load %arg17[%c6_54, %c0_55] : memref<16x32xf32, #tpu.memory_space<vmem>>, vector<2x32xf32>
    tpu.vector_store %arg17[%c6_54, %c0_55], %128 {strides = array<i32>} : memref<16x32xf32, #tpu.memory_space<vmem>>, vector<2x32xf32>,
    %c10_56 = arith.constant 10 : index
    %c0_57 = arith.constant 0 : index
    %131 = vector.load %arg15[%c10_56, %c0_57] : memref<16x128xf32, #tpu.memory_space<vmem>>, vector<2x128xf32>
    %cst_58 = arith.constant dense<0.000000e+00> : vector<2x128xf32>
    %132 = tpu.matmul %126, %13, %cst_58 {dimension_numbers = #tpu.dot_dimension_numbers<[1], [0], [0], [1], [0, 0, 1, 1], [], []>} : vector<2x32xf32>, vector<32x128xf32>, vector<2x128xf32> -> vector<2x128xf32>
    %133 = arith.addf %131, %132 : vector<2x128xf32>
    %134 = vector.extract_strided_slice %133 {offsets = [0, 0], sizes = [2, 96], strides = [1, 1]} : vector<2x128xf32> to vector<2x96xf32>
    %135 = arith.negf %134 : vector<2x96xf32>
    %136 = math.exp %135 : vector<2x96xf32>
    %cst_59 = arith.constant 1.000000e+00 : f32
    %137 = vector.broadcast %cst_59 : f32 to vector<2x96xf32>
    %138 = arith.addf %137, %136 : vector<2x96xf32>
    %139 = arith.divf %137, %138 : vector<2x96xf32>
    %140 = vector.extract_strided_slice %133 {offsets = [0, 96], sizes = [2, 32], strides = [1, 1]} : vector<2x128xf32> to vector<2x32xf32>
    %141 = math.tanh %140 : vector<2x32xf32>
    %142 = vector.extract_strided_slice %139 {offsets = [0, 32], sizes = [2, 32], strides = [1, 1]} : vector<2x96xf32> to vector<2x32xf32>
    %143 = arith.mulf %142, %123 : vector<2x32xf32>
    %144 = vector.extract_strided_slice %139 {offsets = [0, 0], sizes = [2, 32], strides = [1, 1]} : vector<2x96xf32> to vector<2x32xf32>
    %145 = arith.mulf %144, %141 : vector<2x32xf32>
    %146 = arith.addf %143, %145 : vector<2x32xf32>
    %147 = vector.extract_strided_slice %139 {offsets = [0, 64], sizes = [2, 32], strides = [1, 1]} : vector<2x96xf32> to vector<2x32xf32>
    %148 = math.tanh %146 : vector<2x32xf32>
    %149 = arith.mulf %147, %148 : vector<2x32xf32>
    %cst_60 = arith.constant 0.000000e+00 : f32
    %150 = vector.broadcast %cst_60 : f32 to vector<2x32xf32>
    %151 = arith.maximumf %149, %150 : vector<2x32xf32>
    %c10_61 = arith.constant 10 : index
    %c0_62 = arith.constant 0 : index
    %152 = vector.load %arg16[%c10_61, %c0_62] : memref<16x32xf32, #tpu.memory_space<vmem>>, vector<2x32xf32>
    tpu.vector_store %arg16[%c10_61, %c0_62], %151 {strides = array<i32>} : memref<16x32xf32, #tpu.memory_space<vmem>>, vector<2x32xf32>,
    %c4_63 = arith.constant 4 : index
    %c0_64 = arith.constant 0 : index
    %153 = vector.load %arg17[%c4_63, %c0_64] : memref<16x32xf32, #tpu.memory_space<vmem>>, vector<2x32xf32>
    tpu.vector_store %arg17[%c4_63, %c0_64], %151 {strides = array<i32>} : memref<16x32xf32, #tpu.memory_space<vmem>>, vector<2x32xf32>,
    %c12_65 = arith.constant 12 : index
    %c0_66 = arith.constant 0 : index
    %154 = vector.load %arg15[%c12_65, %c0_66] : memref<16x128xf32, #tpu.memory_space<vmem>>, vector<2x128xf32>
    %cst_67 = arith.constant dense<0.000000e+00> : vector<2x128xf32>
    %155 = tpu.matmul %149, %13, %cst_67 {dimension_numbers = #tpu.dot_dimension_numbers<[1], [0], [0], [1], [0, 0, 1, 1], [], []>} : vector<2x32xf32>, vector<32x128xf32>, vector<2x128xf32> -> vector<2x128xf32>
    %156 = arith.addf %154, %155 : vector<2x128xf32>
    %157 = vector.extract_strided_slice %156 {offsets = [0, 0], sizes = [2, 96], strides = [1, 1]} : vector<2x128xf32> to vector<2x96xf32>
    %158 = arith.negf %157 : vector<2x96xf32>
    %159 = math.exp %158 : vector<2x96xf32>
    %cst_68 = arith.constant 1.000000e+00 : f32
    %160 = vector.broadcast %cst_68 : f32 to vector<2x96xf32>
    %161 = arith.addf %160, %159 : vector<2x96xf32>
    %162 = arith.divf %160, %161 : vector<2x96xf32>
    %163 = vector.extract_strided_slice %156 {offsets = [0, 96], sizes = [2, 32], strides = [1, 1]} : vector<2x128xf32> to vector<2x32xf32>
    %164 = math.tanh %163 : vector<2x32xf32>
    %165 = vector.extract_strided_slice %162 {offsets = [0, 32], sizes = [2, 32], strides = [1, 1]} : vector<2x96xf32> to vector<2x32xf32>
    %166 = arith.mulf %165, %146 : vector<2x32xf32>
    %167 = vector.extract_strided_slice %162 {offsets = [0, 0], sizes = [2, 32], strides = [1, 1]} : vector<2x96xf32> to vector<2x32xf32>
    %168 = arith.mulf %167, %164 : vector<2x32xf32>
    %169 = arith.addf %166, %168 : vector<2x32xf32>
    %170 = vector.extract_strided_slice %162 {offsets = [0, 64], sizes = [2, 32], strides = [1, 1]} : vector<2x96xf32> to vector<2x32xf32>
    %171 = math.tanh %169 : vector<2x32xf32>
    %172 = arith.mulf %170, %171 : vector<2x32xf32>
    %cst_69 = arith.constant 0.000000e+00 : f32
    %173 = vector.broadcast %cst_69 : f32 to vector<2x32xf32>
    %174 = arith.maximumf %172, %173 : vector<2x32xf32>
    %c12_70 = arith.constant 12 : index
    %c0_71 = arith.constant 0 : index
    %175 = vector.load %arg16[%c12_70, %c0_71] : memref<16x32xf32, #tpu.memory_space<vmem>>, vector<2x32xf32>
    tpu.vector_store %arg16[%c12_70, %c0_71], %174 {strides = array<i32>} : memref<16x32xf32, #tpu.memory_space<vmem>>, vector<2x32xf32>,
    %c2_72 = arith.constant 2 : index
    %c0_73 = arith.constant 0 : index
    %176 = vector.load %arg17[%c2_72, %c0_73] : memref<16x32xf32, #tpu.memory_space<vmem>>, vector<2x32xf32>
    tpu.vector_store %arg17[%c2_72, %c0_73], %174 {strides = array<i32>} : memref<16x32xf32, #tpu.memory_space<vmem>>, vector<2x32xf32>,
    %c14_74 = arith.constant 14 : index
    %c0_75 = arith.constant 0 : index
    %177 = vector.load %arg15[%c14_74, %c0_75] : memref<16x128xf32, #tpu.memory_space<vmem>>, vector<2x128xf32>
    %cst_76 = arith.constant dense<0.000000e+00> : vector<2x128xf32>
    %178 = tpu.matmul %172, %13, %cst_76 {dimension_numbers = #tpu.dot_dimension_numbers<[1], [0], [0], [1], [0, 0, 1, 1], [], []>} : vector<2x32xf32>, vector<32x128xf32>, vector<2x128xf32> -> vector<2x128xf32>
    %179 = arith.addf %177, %178 : vector<2x128xf32>
    %180 = vector.extract_strided_slice %179 {offsets = [0, 0], sizes = [2, 96], strides = [1, 1]} : vector<2x128xf32> to vector<2x96xf32>
    %181 = arith.negf %180 : vector<2x96xf32>
    %182 = math.exp %181 : vector<2x96xf32>
    %cst_77 = arith.constant 1.000000e+00 : f32
    %183 = vector.broadcast %cst_77 : f32 to vector<2x96xf32>
    %184 = arith.addf %183, %182 : vector<2x96xf32>
    %185 = arith.divf %183, %184 : vector<2x96xf32>
    %186 = vector.extract_strided_slice %179 {offsets = [0, 96], sizes = [2, 32], strides = [1, 1]} : vector<2x128xf32> to vector<2x32xf32>
    %187 = math.tanh %186 : vector<2x32xf32>
    %188 = vector.extract_strided_slice %185 {offsets = [0, 32], sizes = [2, 32], strides = [1, 1]} : vector<2x96xf32> to vector<2x32xf32>
    %189 = arith.mulf %188, %169 : vector<2x32xf32>
    %190 = vector.extract_strided_slice %185 {offsets = [0, 0], sizes = [2, 32], strides = [1, 1]} : vector<2x96xf32> to vector<2x32xf32>
    %191 = arith.mulf %190, %187 : vector<2x32xf32>
    %192 = arith.addf %189, %191 : vector<2x32xf32>
    %193 = vector.extract_strided_slice %185 {offsets = [0, 64], sizes = [2, 32], strides = [1, 1]} : vector<2x96xf32> to vector<2x32xf32>
    %194 = math.tanh %192 : vector<2x32xf32>
    %195 = arith.mulf %193, %194 : vector<2x32xf32>
    %cst_78 = arith.constant 0.000000e+00 : f32
    %196 = vector.broadcast %cst_78 : f32 to vector<2x32xf32>
    %197 = arith.maximumf %195, %196 : vector<2x32xf32>
    %c14_79 = arith.constant 14 : index
    %c0_80 = arith.constant 0 : index
    %198 = vector.load %arg16[%c14_79, %c0_80] : memref<16x32xf32, #tpu.memory_space<vmem>>, vector<2x32xf32>
    tpu.vector_store %arg16[%c14_79, %c0_80], %197 {strides = array<i32>} : memref<16x32xf32, #tpu.memory_space<vmem>>, vector<2x32xf32>,
    %c0_81 = arith.constant 0 : index
    %c0_82 = arith.constant 0 : index
    %199 = vector.load %arg17[%c0_81, %c0_82] : memref<16x32xf32, #tpu.memory_space<vmem>>, vector<2x32xf32>
    tpu.vector_store %arg17[%c0_81, %c0_82], %197 {strides = array<i32>} : memref<16x32xf32, #tpu.memory_space<vmem>>, vector<2x32xf32>,
    %c0_83 = arith.constant 0 : index
    %c0_84 = arith.constant 0 : index
    %200 = vector.load %arg16[%c0_83, %c0_84] : memref<16x32xf32, #tpu.memory_space<vmem>>, vector<16x32xf32>
    %c0_85 = arith.constant 0 : index
    %c0_86 = arith.constant 0 : index
    %201 = vector.load %arg7[%c0_85, %c0_86] : memref<32x128xf32, #tpu.memory_space<vmem>>, vector<32x128xf32>
    %cst_87 = arith.constant dense<0.000000e+00> : vector<16x128xf32>
    %202 = tpu.matmul %200, %201, %cst_87 {dimension_numbers = #tpu.dot_dimension_numbers<[1], [0], [0], [1], [0, 0, 1, 1], [], []>} : vector<16x32xf32>, vector<32x128xf32>, vector<16x128xf32> -> vector<16x128xf32>
    %c0_88 = arith.constant 0 : index
    %c0_89 = arith.constant 0 : index
    %203 = vector.load %arg17[%c0_88, %c0_89] : memref<16x32xf32, #tpu.memory_space<vmem>>, vector<16x32xf32>
    %c0_90 = arith.constant 0 : index
    %c0_91 = arith.constant 0 : index
    %204 = vector.load %arg8[%c0_90, %c0_91] : memref<32x128xf32, #tpu.memory_space<vmem>>, vector<32x128xf32>
    %cst_92 = arith.constant dense<0.000000e+00> : vector<16x128xf32>
    %205 = tpu.matmul %203, %204, %cst_92 {dimension_numbers = #tpu.dot_dimension_numbers<[1], [0], [0], [1], [0, 0, 1, 1], [], []>} : vector<16x32xf32>, vector<32x128xf32>, vector<16x128xf32> -> vector<16x128xf32>
    %206 = arith.addf %202, %205 : vector<16x128xf32>
    %c0_93 = arith.constant 0 : index
    %c0_94 = arith.constant 0 : index
    %207 = vector.load %arg10[%c0_93, %c0_94] : memref<1x128xf32, #tpu.memory_space<vmem>>, vector<1x128xf32>
    %208 = vector.broadcast %207 : vector<1x128xf32> to vector<16x128xf32>
    %209 = arith.addf %206, %208 : vector<16x128xf32>
    %c0_95 = arith.constant 0 : index
    %c0_96 = arith.constant 0 : index
    %210 = vector.load %arg15[%c0_95, %c0_96] : memref<16x128xf32, #tpu.memory_space<vmem>>, vector<16x128xf32>
    tpu.vector_store %arg15[%c0_95, %c0_96], %209 {strides = array<i32>} : memref<16x128xf32, #tpu.memory_space<vmem>>, vector<16x128xf32>,
    %c0_97 = arith.constant 0 : index
    %c0_98 = arith.constant 0 : index
    %211 = vector.load %arg9[%c0_97, %c0_98] : memref<32x128xf32, #tpu.memory_space<vmem>>, vector<32x128xf32>
    %cst_99 = arith.constant 0.000000e+00 : f32
    %212 = vector.broadcast %cst_99 : f32 to vector<2x32xf32>
    %cst_100 = arith.constant 0.000000e+00 : f32
    %213 = vector.broadcast %cst_100 : f32 to vector<2x32xf32>
    %c0_101 = arith.constant 0 : index
    %c0_102 = arith.constant 0 : index
    %214 = vector.load %arg15[%c0_101, %c0_102] : memref<16x128xf32, #tpu.memory_space<vmem>>, vector<2x128xf32>
    %cst_103 = arith.constant dense<0.000000e+00> : vector<2x128xf32>
    %215 = tpu.matmul %212, %211, %cst_103 {dimension_numbers = #tpu.dot_dimension_numbers<[1], [0], [0], [1], [0, 0, 1, 1], [], []>} : vector<2x32xf32>, vector<32x128xf32>, vector<2x128xf32> -> vector<2x128xf32>
    %216 = arith.addf %214, %215 : vector<2x128xf32>
    %217 = vector.extract_strided_slice %216 {offsets = [0, 0], sizes = [2, 96], strides = [1, 1]} : vector<2x128xf32> to vector<2x96xf32>
    %218 = arith.negf %217 : vector<2x96xf32>
    %219 = math.exp %218 : vector<2x96xf32>
    %cst_104 = arith.constant 1.000000e+00 : f32
    %220 = vector.broadcast %cst_104 : f32 to vector<2x96xf32>
    %221 = arith.addf %220, %219 : vector<2x96xf32>
    %222 = arith.divf %220, %221 : vector<2x96xf32>
    %223 = vector.extract_strided_slice %216 {offsets = [0, 96], sizes = [2, 32], strides = [1, 1]} : vector<2x128xf32> to vector<2x32xf32>
    %224 = math.tanh %223 : vector<2x32xf32>
    %225 = vector.extract_strided_slice %222 {offsets = [0, 32], sizes = [2, 32], strides = [1, 1]} : vector<2x96xf32> to vector<2x32xf32>
    %226 = arith.mulf %225, %213 : vector<2x32xf32>
    %227 = vector.extract_strided_slice %222 {offsets = [0, 0], sizes = [2, 32], strides = [1, 1]} : vector<2x96xf32> to vector<2x32xf32>
    %228 = arith.mulf %227, %224 : vector<2x32xf32>
    %229 = arith.addf %226, %228 : vector<2x32xf32>
    %230 = vector.extract_strided_slice %222 {offsets = [0, 64], sizes = [2, 32], strides = [1, 1]} : vector<2x96xf32> to vector<2x32xf32>
    %231 = math.tanh %229 : vector<2x32xf32>
    %232 = arith.mulf %230, %231 : vector<2x32xf32>
    %cst_105 = arith.constant 0.000000e+00 : f32
    %233 = vector.broadcast %cst_105 : f32 to vector<2x32xf32>
    %234 = arith.maximumf %232, %233 : vector<2x32xf32>
    %c0_106 = arith.constant 0 : index
    %c0_107 = arith.constant 0 : index
    %235 = vector.load %arg18[%c0_106, %c0_107] : memref<16x32xf32, #tpu.memory_space<vmem>>, vector<2x32xf32>
    tpu.vector_store %arg18[%c0_106, %c0_107], %234 {strides = array<i32>} : memref<16x32xf32, #tpu.memory_space<vmem>>, vector<2x32xf32>,
    %c14_108 = arith.constant 14 : index
    %c0_109 = arith.constant 0 : index
    %236 = vector.load %arg19[%c14_108, %c0_109] : memref<16x32xf32, #tpu.memory_space<vmem>>, vector<2x32xf32>
    tpu.vector_store %arg19[%c14_108, %c0_109], %234 {strides = array<i32>} : memref<16x32xf32, #tpu.memory_space<vmem>>, vector<2x32xf32>,
    %c2_110 = arith.constant 2 : index
    %c0_111 = arith.constant 0 : index
    %237 = vector.load %arg15[%c2_110, %c0_111] : memref<16x128xf32, #tpu.memory_space<vmem>>, vector<2x128xf32>
    %cst_112 = arith.constant dense<0.000000e+00> : vector<2x128xf32>
    %238 = tpu.matmul %232, %211, %cst_112 {dimension_numbers = #tpu.dot_dimension_numbers<[1], [0], [0], [1], [0, 0, 1, 1], [], []>} : vector<2x32xf32>, vector<32x128xf32>, vector<2x128xf32> -> vector<2x128xf32>
    %239 = arith.addf %237, %238 : vector<2x128xf32>
    %240 = vector.extract_strided_slice %239 {offsets = [0, 0], sizes = [2, 96], strides = [1, 1]} : vector<2x128xf32> to vector<2x96xf32>
    %241 = arith.negf %240 : vector<2x96xf32>
    %242 = math.exp %241 : vector<2x96xf32>
    %cst_113 = arith.constant 1.000000e+00 : f32
    %243 = vector.broadcast %cst_113 : f32 to vector<2x96xf32>
    %244 = arith.addf %243, %242 : vector<2x96xf32>
    %245 = arith.divf %243, %244 : vector<2x96xf32>
    %246 = vector.extract_strided_slice %239 {offsets = [0, 96], sizes = [2, 32], strides = [1, 1]} : vector<2x128xf32> to vector<2x32xf32>
    %247 = math.tanh %246 : vector<2x32xf32>
    %248 = vector.extract_strided_slice %245 {offsets = [0, 32], sizes = [2, 32], strides = [1, 1]} : vector<2x96xf32> to vector<2x32xf32>
    %249 = arith.mulf %248, %229 : vector<2x32xf32>
    %250 = vector.extract_strided_slice %245 {offsets = [0, 0], sizes = [2, 32], strides = [1, 1]} : vector<2x96xf32> to vector<2x32xf32>
    %251 = arith.mulf %250, %247 : vector<2x32xf32>
    %252 = arith.addf %249, %251 : vector<2x32xf32>
    %253 = vector.extract_strided_slice %245 {offsets = [0, 64], sizes = [2, 32], strides = [1, 1]} : vector<2x96xf32> to vector<2x32xf32>
    %254 = math.tanh %252 : vector<2x32xf32>
    %255 = arith.mulf %253, %254 : vector<2x32xf32>
    %cst_114 = arith.constant 0.000000e+00 : f32
    %256 = vector.broadcast %cst_114 : f32 to vector<2x32xf32>
    %257 = arith.maximumf %255, %256 : vector<2x32xf32>
    %c2_115 = arith.constant 2 : index
    %c0_116 = arith.constant 0 : index
    %258 = vector.load %arg18[%c2_115, %c0_116] : memref<16x32xf32, #tpu.memory_space<vmem>>, vector<2x32xf32>
    tpu.vector_store %arg18[%c2_115, %c0_116], %257 {strides = array<i32>} : memref<16x32xf32, #tpu.memory_space<vmem>>, vector<2x32xf32>,
    %c12_117 = arith.constant 12 : index
    %c0_118 = arith.constant 0 : index
    %259 = vector.load %arg19[%c12_117, %c0_118] : memref<16x32xf32, #tpu.memory_space<vmem>>, vector<2x32xf32>
    tpu.vector_store %arg19[%c12_117, %c0_118], %257 {strides = array<i32>} : memref<16x32xf32, #tpu.memory_space<vmem>>, vector<2x32xf32>,
    %c4_119 = arith.constant 4 : index
    %c0_120 = arith.constant 0 : index
    %260 = vector.load %arg15[%c4_119, %c0_120] : memref<16x128xf32, #tpu.memory_space<vmem>>, vector<2x128xf32>
    %cst_121 = arith.constant dense<0.000000e+00> : vector<2x128xf32>
    %261 = tpu.matmul %255, %211, %cst_121 {dimension_numbers = #tpu.dot_dimension_numbers<[1], [0], [0], [1], [0, 0, 1, 1], [], []>} : vector<2x32xf32>, vector<32x128xf32>, vector<2x128xf32> -> vector<2x128xf32>
    %262 = arith.addf %260, %261 : vector<2x128xf32>
    %263 = vector.extract_strided_slice %262 {offsets = [0, 0], sizes = [2, 96], strides = [1, 1]} : vector<2x128xf32> to vector<2x96xf32>
    %264 = arith.negf %263 : vector<2x96xf32>
    %265 = math.exp %264 : vector<2x96xf32>
    %cst_122 = arith.constant 1.000000e+00 : f32
    %266 = vector.broadcast %cst_122 : f32 to vector<2x96xf32>
    %267 = arith.addf %266, %265 : vector<2x96xf32>
    %268 = arith.divf %266, %267 : vector<2x96xf32>
    %269 = vector.extract_strided_slice %262 {offsets = [0, 96], sizes = [2, 32], strides = [1, 1]} : vector<2x128xf32> to vector<2x32xf32>
    %270 = math.tanh %269 : vector<2x32xf32>
    %271 = vector.extract_strided_slice %268 {offsets = [0, 32], sizes = [2, 32], strides = [1, 1]} : vector<2x96xf32> to vector<2x32xf32>
    %272 = arith.mulf %271, %252 : vector<2x32xf32>
    %273 = vector.extract_strided_slice %268 {offsets = [0, 0], sizes = [2, 32], strides = [1, 1]} : vector<2x96xf32> to vector<2x32xf32>
    %274 = arith.mulf %273, %270 : vector<2x32xf32>
    %275 = arith.addf %272, %274 : vector<2x32xf32>
    %276 = vector.extract_strided_slice %268 {offsets = [0, 64], sizes = [2, 32], strides = [1, 1]} : vector<2x96xf32> to vector<2x32xf32>
    %277 = math.tanh %275 : vector<2x32xf32>
    %278 = arith.mulf %276, %277 : vector<2x32xf32>
    %cst_123 = arith.constant 0.000000e+00 : f32
    %279 = vector.broadcast %cst_123 : f32 to vector<2x32xf32>
    %280 = arith.maximumf %278, %279 : vector<2x32xf32>
    %c4_124 = arith.constant 4 : index
    %c0_125 = arith.constant 0 : index
    %281 = vector.load %arg18[%c4_124, %c0_125] : memref<16x32xf32, #tpu.memory_space<vmem>>, vector<2x32xf32>
    tpu.vector_store %arg18[%c4_124, %c0_125], %280 {strides = array<i32>} : memref<16x32xf32, #tpu.memory_space<vmem>>, vector<2x32xf32>,
    %c10_126 = arith.constant 10 : index
    %c0_127 = arith.constant 0 : index
    %282 = vector.load %arg19[%c10_126, %c0_127] : memref<16x32xf32, #tpu.memory_space<vmem>>, vector<2x32xf32>
    tpu.vector_store %arg19[%c10_126, %c0_127], %280 {strides = array<i32>} : memref<16x32xf32, #tpu.memory_space<vmem>>, vector<2x32xf32>,
    %c6_128 = arith.constant 6 : index
    %c0_129 = arith.constant 0 : index
    %283 = vector.load %arg15[%c6_128, %c0_129] : memref<16x128xf32, #tpu.memory_space<vmem>>, vector<2x128xf32>
    %cst_130 = arith.constant dense<0.000000e+00> : vector<2x128xf32>
    %284 = tpu.matmul %278, %211, %cst_130 {dimension_numbers = #tpu.dot_dimension_numbers<[1], [0], [0], [1], [0, 0, 1, 1], [], []>} : vector<2x32xf32>, vector<32x128xf32>, vector<2x128xf32> -> vector<2x128xf32>
    %285 = arith.addf %283, %284 : vector<2x128xf32>
    %286 = vector.extract_strided_slice %285 {offsets = [0, 0], sizes = [2, 96], strides = [1, 1]} : vector<2x128xf32> to vector<2x96xf32>
    %287 = arith.negf %286 : vector<2x96xf32>
    %288 = math.exp %287 : vector<2x96xf32>
    %cst_131 = arith.constant 1.000000e+00 : f32
    %289 = vector.broadcast %cst_131 : f32 to vector<2x96xf32>
    %290 = arith.addf %289, %288 : vector<2x96xf32>
    %291 = arith.divf %289, %290 : vector<2x96xf32>
    %292 = vector.extract_strided_slice %285 {offsets = [0, 96], sizes = [2, 32], strides = [1, 1]} : vector<2x128xf32> to vector<2x32xf32>
    %293 = math.tanh %292 : vector<2x32xf32>
    %294 = vector.extract_strided_slice %291 {offsets = [0, 32], sizes = [2, 32], strides = [1, 1]} : vector<2x96xf32> to vector<2x32xf32>
    %295 = arith.mulf %294, %275 : vector<2x32xf32>
    %296 = vector.extract_strided_slice %291 {offsets = [0, 0], sizes = [2, 32], strides = [1, 1]} : vector<2x96xf32> to vector<2x32xf32>
    %297 = arith.mulf %296, %293 : vector<2x32xf32>
    %298 = arith.addf %295, %297 : vector<2x32xf32>
    %299 = vector.extract_strided_slice %291 {offsets = [0, 64], sizes = [2, 32], strides = [1, 1]} : vector<2x96xf32> to vector<2x32xf32>
    %300 = math.tanh %298 : vector<2x32xf32>
    %301 = arith.mulf %299, %300 : vector<2x32xf32>
    %cst_132 = arith.constant 0.000000e+00 : f32
    %302 = vector.broadcast %cst_132 : f32 to vector<2x32xf32>
    %303 = arith.maximumf %301, %302 : vector<2x32xf32>
    %c6_133 = arith.constant 6 : index
    %c0_134 = arith.constant 0 : index
    %304 = vector.load %arg18[%c6_133, %c0_134] : memref<16x32xf32, #tpu.memory_space<vmem>>, vector<2x32xf32>
    tpu.vector_store %arg18[%c6_133, %c0_134], %303 {strides = array<i32>} : memref<16x32xf32, #tpu.memory_space<vmem>>, vector<2x32xf32>,
    %c8_135 = arith.constant 8 : index
    %c0_136 = arith.constant 0 : index
    %305 = vector.load %arg19[%c8_135, %c0_136] : memref<16x32xf32, #tpu.memory_space<vmem>>, vector<2x32xf32>
    tpu.vector_store %arg19[%c8_135, %c0_136], %303 {strides = array<i32>} : memref<16x32xf32, #tpu.memory_space<vmem>>, vector<2x32xf32>,
    %c8_137 = arith.constant 8 : index
    %c0_138 = arith.constant 0 : index
    %306 = vector.load %arg15[%c8_137, %c0_138] : memref<16x128xf32, #tpu.memory_space<vmem>>, vector<2x128xf32>
    %cst_139 = arith.constant dense<0.000000e+00> : vector<2x128xf32>
    %307 = tpu.matmul %301, %211, %cst_139 {dimension_numbers = #tpu.dot_dimension_numbers<[1], [0], [0], [1], [0, 0, 1, 1], [], []>} : vector<2x32xf32>, vector<32x128xf32>, vector<2x128xf32> -> vector<2x128xf32>
    %308 = arith.addf %306, %307 : vector<2x128xf32>
    %309 = vector.extract_strided_slice %308 {offsets = [0, 0], sizes = [2, 96], strides = [1, 1]} : vector<2x128xf32> to vector<2x96xf32>
    %310 = arith.negf %309 : vector<2x96xf32>
    %311 = math.exp %310 : vector<2x96xf32>
    %cst_140 = arith.constant 1.000000e+00 : f32
    %312 = vector.broadcast %cst_140 : f32 to vector<2x96xf32>
    %313 = arith.addf %312, %311 : vector<2x96xf32>
    %314 = arith.divf %312, %313 : vector<2x96xf32>
    %315 = vector.extract_strided_slice %308 {offsets = [0, 96], sizes = [2, 32], strides = [1, 1]} : vector<2x128xf32> to vector<2x32xf32>
    %316 = math.tanh %315 : vector<2x32xf32>
    %317 = vector.extract_strided_slice %314 {offsets = [0, 32], sizes = [2, 32], strides = [1, 1]} : vector<2x96xf32> to vector<2x32xf32>
    %318 = arith.mulf %317, %298 : vector<2x32xf32>
    %319 = vector.extract_strided_slice %314 {offsets = [0, 0], sizes = [2, 32], strides = [1, 1]} : vector<2x96xf32> to vector<2x32xf32>
    %320 = arith.mulf %319, %316 : vector<2x32xf32>
    %321 = arith.addf %318, %320 : vector<2x32xf32>
    %322 = vector.extract_strided_slice %314 {offsets = [0, 64], sizes = [2, 32], strides = [1, 1]} : vector<2x96xf32> to vector<2x32xf32>
    %323 = math.tanh %321 : vector<2x32xf32>
    %324 = arith.mulf %322, %323 : vector<2x32xf32>
    %cst_141 = arith.constant 0.000000e+00 : f32
    %325 = vector.broadcast %cst_141 : f32 to vector<2x32xf32>
    %326 = arith.maximumf %324, %325 : vector<2x32xf32>
    %c8_142 = arith.constant 8 : index
    %c0_143 = arith.constant 0 : index
    %327 = vector.load %arg18[%c8_142, %c0_143] : memref<16x32xf32, #tpu.memory_space<vmem>>, vector<2x32xf32>
    tpu.vector_store %arg18[%c8_142, %c0_143], %326 {strides = array<i32>} : memref<16x32xf32, #tpu.memory_space<vmem>>, vector<2x32xf32>,
    %c6_144 = arith.constant 6 : index
    %c0_145 = arith.constant 0 : index
    %328 = vector.load %arg19[%c6_144, %c0_145] : memref<16x32xf32, #tpu.memory_space<vmem>>, vector<2x32xf32>
    tpu.vector_store %arg19[%c6_144, %c0_145], %326 {strides = array<i32>} : memref<16x32xf32, #tpu.memory_space<vmem>>, vector<2x32xf32>,
    %c10_146 = arith.constant 10 : index
    %c0_147 = arith.constant 0 : index
    %329 = vector.load %arg15[%c10_146, %c0_147] : memref<16x128xf32, #tpu.memory_space<vmem>>, vector<2x128xf32>
    %cst_148 = arith.constant dense<0.000000e+00> : vector<2x128xf32>
    %330 = tpu.matmul %324, %211, %cst_148 {dimension_numbers = #tpu.dot_dimension_numbers<[1], [0], [0], [1], [0, 0, 1, 1], [], []>} : vector<2x32xf32>, vector<32x128xf32>, vector<2x128xf32> -> vector<2x128xf32>
    %331 = arith.addf %329, %330 : vector<2x128xf32>
    %332 = vector.extract_strided_slice %331 {offsets = [0, 0], sizes = [2, 96], strides = [1, 1]} : vector<2x128xf32> to vector<2x96xf32>
    %333 = arith.negf %332 : vector<2x96xf32>
    %334 = math.exp %333 : vector<2x96xf32>
    %cst_149 = arith.constant 1.000000e+00 : f32
    %335 = vector.broadcast %cst_149 : f32 to vector<2x96xf32>
    %336 = arith.addf %335, %334 : vector<2x96xf32>
    %337 = arith.divf %335, %336 : vector<2x96xf32>
    %338 = vector.extract_strided_slice %331 {offsets = [0, 96], sizes = [2, 32], strides = [1, 1]} : vector<2x128xf32> to vector<2x32xf32>
    %339 = math.tanh %338 : vector<2x32xf32>
    %340 = vector.extract_strided_slice %337 {offsets = [0, 32], sizes = [2, 32], strides = [1, 1]} : vector<2x96xf32> to vector<2x32xf32>
    %341 = arith.mulf %340, %321 : vector<2x32xf32>
    %342 = vector.extract_strided_slice %337 {offsets = [0, 0], sizes = [2, 32], strides = [1, 1]} : vector<2x96xf32> to vector<2x32xf32>
    %343 = arith.mulf %342, %339 : vector<2x32xf32>
    %344 = arith.addf %341, %343 : vector<2x32xf32>
    %345 = vector.extract_strided_slice %337 {offsets = [0, 64], sizes = [2, 32], strides = [1, 1]} : vector<2x96xf32> to vector<2x32xf32>
    %346 = math.tanh %344 : vector<2x32xf32>
    %347 = arith.mulf %345, %346 : vector<2x32xf32>
    %cst_150 = arith.constant 0.000000e+00 : f32
    %348 = vector.broadcast %cst_150 : f32 to vector<2x32xf32>
    %349 = arith.maximumf %347, %348 : vector<2x32xf32>
    %c10_151 = arith.constant 10 : index
    %c0_152 = arith.constant 0 : index
    %350 = vector.load %arg18[%c10_151, %c0_152] : memref<16x32xf32, #tpu.memory_space<vmem>>, vector<2x32xf32>
    tpu.vector_store %arg18[%c10_151, %c0_152], %349 {strides = array<i32>} : memref<16x32xf32, #tpu.memory_space<vmem>>, vector<2x32xf32>,
    %c4_153 = arith.constant 4 : index
    %c0_154 = arith.constant 0 : index
    %351 = vector.load %arg19[%c4_153, %c0_154] : memref<16x32xf32, #tpu.memory_space<vmem>>, vector<2x32xf32>
    tpu.vector_store %arg19[%c4_153, %c0_154], %349 {strides = array<i32>} : memref<16x32xf32, #tpu.memory_space<vmem>>, vector<2x32xf32>,
    %c12_155 = arith.constant 12 : index
    %c0_156 = arith.constant 0 : index
    %352 = vector.load %arg15[%c12_155, %c0_156] : memref<16x128xf32, #tpu.memory_space<vmem>>, vector<2x128xf32>
    %cst_157 = arith.constant dense<0.000000e+00> : vector<2x128xf32>
    %353 = tpu.matmul %347, %211, %cst_157 {dimension_numbers = #tpu.dot_dimension_numbers<[1], [0], [0], [1], [0, 0, 1, 1], [], []>} : vector<2x32xf32>, vector<32x128xf32>, vector<2x128xf32> -> vector<2x128xf32>
    %354 = arith.addf %352, %353 : vector<2x128xf32>
    %355 = vector.extract_strided_slice %354 {offsets = [0, 0], sizes = [2, 96], strides = [1, 1]} : vector<2x128xf32> to vector<2x96xf32>
    %356 = arith.negf %355 : vector<2x96xf32>
    %357 = math.exp %356 : vector<2x96xf32>
    %cst_158 = arith.constant 1.000000e+00 : f32
    %358 = vector.broadcast %cst_158 : f32 to vector<2x96xf32>
    %359 = arith.addf %358, %357 : vector<2x96xf32>
    %360 = arith.divf %358, %359 : vector<2x96xf32>
    %361 = vector.extract_strided_slice %354 {offsets = [0, 96], sizes = [2, 32], strides = [1, 1]} : vector<2x128xf32> to vector<2x32xf32>
    %362 = math.tanh %361 : vector<2x32xf32>
    %363 = vector.extract_strided_slice %360 {offsets = [0, 32], sizes = [2, 32], strides = [1, 1]} : vector<2x96xf32> to vector<2x32xf32>
    %364 = arith.mulf %363, %344 : vector<2x32xf32>
    %365 = vector.extract_strided_slice %360 {offsets = [0, 0], sizes = [2, 32], strides = [1, 1]} : vector<2x96xf32> to vector<2x32xf32>
    %366 = arith.mulf %365, %362 : vector<2x32xf32>
    %367 = arith.addf %364, %366 : vector<2x32xf32>
    %368 = vector.extract_strided_slice %360 {offsets = [0, 64], sizes = [2, 32], strides = [1, 1]} : vector<2x96xf32> to vector<2x32xf32>
    %369 = math.tanh %367 : vector<2x32xf32>
    %370 = arith.mulf %368, %369 : vector<2x32xf32>
    %cst_159 = arith.constant 0.000000e+00 : f32
    %371 = vector.broadcast %cst_159 : f32 to vector<2x32xf32>
    %372 = arith.maximumf %370, %371 : vector<2x32xf32>
    %c12_160 = arith.constant 12 : index
    %c0_161 = arith.constant 0 : index
    %373 = vector.load %arg18[%c12_160, %c0_161] : memref<16x32xf32, #tpu.memory_space<vmem>>, vector<2x32xf32>
    tpu.vector_store %arg18[%c12_160, %c0_161], %372 {strides = array<i32>} : memref<16x32xf32, #tpu.memory_space<vmem>>, vector<2x32xf32>,
    %c2_162 = arith.constant 2 : index
    %c0_163 = arith.constant 0 : index
    %374 = vector.load %arg19[%c2_162, %c0_163] : memref<16x32xf32, #tpu.memory_space<vmem>>, vector<2x32xf32>
    tpu.vector_store %arg19[%c2_162, %c0_163], %372 {strides = array<i32>} : memref<16x32xf32, #tpu.memory_space<vmem>>, vector<2x32xf32>,
    %c14_164 = arith.constant 14 : index
    %c0_165 = arith.constant 0 : index
    %375 = vector.load %arg15[%c14_164, %c0_165] : memref<16x128xf32, #tpu.memory_space<vmem>>, vector<2x128xf32>
    %cst_166 = arith.constant dense<0.000000e+00> : vector<2x128xf32>
    %376 = tpu.matmul %370, %211, %cst_166 {dimension_numbers = #tpu.dot_dimension_numbers<[1], [0], [0], [1], [0, 0, 1, 1], [], []>} : vector<2x32xf32>, vector<32x128xf32>, vector<2x128xf32> -> vector<2x128xf32>
    %377 = arith.addf %375, %376 : vector<2x128xf32>
    %378 = vector.extract_strided_slice %377 {offsets = [0, 0], sizes = [2, 96], strides = [1, 1]} : vector<2x128xf32> to vector<2x96xf32>
    %379 = arith.negf %378 : vector<2x96xf32>
    %380 = math.exp %379 : vector<2x96xf32>
    %cst_167 = arith.constant 1.000000e+00 : f32
    %381 = vector.broadcast %cst_167 : f32 to vector<2x96xf32>
    %382 = arith.addf %381, %380 : vector<2x96xf32>
    %383 = arith.divf %381, %382 : vector<2x96xf32>
    %384 = vector.extract_strided_slice %377 {offsets = [0, 96], sizes = [2, 32], strides = [1, 1]} : vector<2x128xf32> to vector<2x32xf32>
    %385 = math.tanh %384 : vector<2x32xf32>
    %386 = vector.extract_strided_slice %383 {offsets = [0, 32], sizes = [2, 32], strides = [1, 1]} : vector<2x96xf32> to vector<2x32xf32>
    %387 = arith.mulf %386, %367 : vector<2x32xf32>
    %388 = vector.extract_strided_slice %383 {offsets = [0, 0], sizes = [2, 32], strides = [1, 1]} : vector<2x96xf32> to vector<2x32xf32>
    %389 = arith.mulf %388, %385 : vector<2x32xf32>
    %390 = arith.addf %387, %389 : vector<2x32xf32>
    %391 = vector.extract_strided_slice %383 {offsets = [0, 64], sizes = [2, 32], strides = [1, 1]} : vector<2x96xf32> to vector<2x32xf32>
    %392 = math.tanh %390 : vector<2x32xf32>
    %393 = arith.mulf %391, %392 : vector<2x32xf32>
    %cst_168 = arith.constant 0.000000e+00 : f32
    %394 = vector.broadcast %cst_168 : f32 to vector<2x32xf32>
    %395 = arith.maximumf %393, %394 : vector<2x32xf32>
    %c14_169 = arith.constant 14 : index
    %c0_170 = arith.constant 0 : index
    %396 = vector.load %arg18[%c14_169, %c0_170] : memref<16x32xf32, #tpu.memory_space<vmem>>, vector<2x32xf32>
    tpu.vector_store %arg18[%c14_169, %c0_170], %395 {strides = array<i32>} : memref<16x32xf32, #tpu.memory_space<vmem>>, vector<2x32xf32>,
    %c0_171 = arith.constant 0 : index
    %c0_172 = arith.constant 0 : index
    %397 = vector.load %arg19[%c0_171, %c0_172] : memref<16x32xf32, #tpu.memory_space<vmem>>, vector<2x32xf32>
    tpu.vector_store %arg19[%c0_171, %c0_172], %395 {strides = array<i32>} : memref<16x32xf32, #tpu.memory_space<vmem>>, vector<2x32xf32>,
    %c0_173 = arith.constant 0 : index
    %c0_174 = arith.constant 0 : index
    %398 = vector.load %arg18[%c0_173, %c0_174] : memref<16x32xf32, #tpu.memory_space<vmem>>, vector<16x32xf32>
    %c0_175 = arith.constant 0 : index
    %c0_176 = arith.constant 0 : index
    %399 = vector.load %arg11[%c0_175, %c0_176] : memref<32x50xf32, #tpu.memory_space<vmem>>, vector<32x50xf32>
    %cst_177 = arith.constant dense<0.000000e+00> : vector<16x50xf32>
    %400 = tpu.matmul %398, %399, %cst_177 {dimension_numbers = #tpu.dot_dimension_numbers<[1], [0], [0], [1], [0, 0, 1, 1], [], []>} : vector<16x32xf32>, vector<32x50xf32>, vector<16x50xf32> -> vector<16x50xf32>
    %c0_178 = arith.constant 0 : index
    %c0_179 = arith.constant 0 : index
    %401 = vector.load %arg19[%c0_178, %c0_179] : memref<16x32xf32, #tpu.memory_space<vmem>>, vector<16x32xf32>
    %c0_180 = arith.constant 0 : index
    %c0_181 = arith.constant 0 : index
    %402 = vector.load %arg12[%c0_180, %c0_181] : memref<32x50xf32, #tpu.memory_space<vmem>>, vector<32x50xf32>
    %cst_182 = arith.constant dense<0.000000e+00> : vector<16x50xf32>
    %403 = tpu.matmul %401, %402, %cst_182 {dimension_numbers = #tpu.dot_dimension_numbers<[1], [0], [0], [1], [0, 0, 1, 1], [], []>} : vector<16x32xf32>, vector<32x50xf32>, vector<16x50xf32> -> vector<16x50xf32>
    %404 = arith.addf %400, %403 : vector<16x50xf32>
    %c0_183 = arith.constant 0 : index
    %c0_184 = arith.constant 0 : index
    %405 = vector.load %arg13[%c0_183, %c0_184] : memref<1x50xf32, #tpu.memory_space<vmem>>, vector<1x50xf32>
    %406 = vector.broadcast %405 : vector<1x50xf32> to vector<16x50xf32>
    %407 = arith.addf %404, %406 : vector<16x50xf32>
    %408 = math.tanh %407 : vector<16x50xf32>
    %c0_185 = arith.constant 0 : index
    %c0_186 = arith.constant 0 : index
    %c0_187 = arith.constant 0 : index
    %409 = vector.load %arg14[%c0_185, %c0_186, %c0_187] : memref<1x16x50xf32, #tpu.memory_space<vmem>>, vector<1x16x50xf32>
    %410 = vector.shape_cast %409 : vector<1x16x50xf32> to vector<16x50xf32>
    %411 = vector.shape_cast %408 : vector<16x50xf32> to vector<1x16x50xf32>
    tpu.vector_store %arg14[%c0_185, %c0_186, %c0_187], %411 {strides = array<i32>} : memref<1x16x50xf32, #tpu.memory_space<vmem>>, vector<1x16x50xf32>,
    return
  }
  func.func @transform_0(%arg0: i32) -> (i32, i32, i32) {
    %c0_i32 = arith.constant 0 : i32
    %c0_i32_0 = arith.constant 0 : i32
    %c0_i32_1 = arith.constant 0 : i32
    return %arg0, %c0_i32, %c0_i32_0 : i32, i32, i32
  }
  func.func @transform_1(%arg0: i32) -> (i32, i32, i32) {
    %c0_i32 = arith.constant 0 : i32
    %c0_i32_0 = arith.constant 0 : i32
    %c0_i32_1 = arith.constant 0 : i32
    return %arg0, %c0_i32, %c0_i32_0 : i32, i32, i32
  }
  func.func @transform_2(%arg0: i32) -> (i32, i32) {
    %c0_i32 = arith.constant 0 : i32
    %c0_i32_0 = arith.constant 0 : i32
    %c0_i32_1 = arith.constant 0 : i32
    return %c0_i32, %c0_i32_0 : i32, i32
  }
  func.func @transform_3(%arg0: i32) -> (i32, i32) {
    %c0_i32 = arith.constant 0 : i32
    %c0_i32_0 = arith.constant 0 : i32
    %c0_i32_1 = arith.constant 0 : i32
    return %c0_i32, %c0_i32_0 : i32, i32
  }
  func.func @transform_4(%arg0: i32) -> (i32, i32) {
    %c0_i32 = arith.constant 0 : i32
    %c0_i32_0 = arith.constant 0 : i32
    %c0_i32_1 = arith.constant 0 : i32
    return %c0_i32, %c0_i32_0 : i32, i32
  }
  func.func @transform_5(%arg0: i32) -> (i32, i32) {
    %c0_i32 = arith.constant 0 : i32
    %c0_i32_0 = arith.constant 0 : i32
    %c0_i32_1 = arith.constant 0 : i32
    return %c0_i32, %c0_i32_0 : i32, i32
  }
  func.func @transform_6(%arg0: i32) -> (i32, i32) {
    %c0_i32 = arith.constant 0 : i32
    %c0_i32_0 = arith.constant 0 : i32
    %c0_i32_1 = arith.constant 0 : i32
    return %c0_i32, %c0_i32_0 : i32, i32
  }
  func.func @transform_7(%arg0: i32) -> (i32, i32) {
    %c0_i32 = arith.constant 0 : i32
    %c0_i32_0 = arith.constant 0 : i32
    %c0_i32_1 = arith.constant 0 : i32
    return %c0_i32, %c0_i32_0 : i32, i32
  }
  func.func @transform_8(%arg0: i32) -> (i32, i32) {
    %c0_i32 = arith.constant 0 : i32
    %c0_i32_0 = arith.constant 0 : i32
    %c0_i32_1 = arith.constant 0 : i32
    return %c0_i32, %c0_i32_0 : i32, i32
  }
  func.func @transform_9(%arg0: i32) -> (i32, i32) {
    %c0_i32 = arith.constant 0 : i32
    %c0_i32_0 = arith.constant 0 : i32
    %c0_i32_1 = arith.constant 0 : i32
    return %c0_i32, %c0_i32_0 : i32, i32
  }
  func.func @transform_10(%arg0: i32) -> (i32, i32) {
    %c0_i32 = arith.constant 0 : i32
    %c0_i32_0 = arith.constant 0 : i32
    %c0_i32_1 = arith.constant 0 : i32
    return %c0_i32, %c0_i32_0 : i32, i32
  }
  func.func @transform_11(%arg0: i32) -> (i32, i32) {
    %c0_i32 = arith.constant 0 : i32
    %c0_i32_0 = arith.constant 0 : i32
    %c0_i32_1 = arith.constant 0 : i32
    return %c0_i32, %c0_i32_0 : i32, i32
  }
  func.func @transform_12(%arg0: i32) -> (i32, i32) {
    %c0_i32 = arith.constant 0 : i32
    %c0_i32_0 = arith.constant 0 : i32
    %c0_i32_1 = arith.constant 0 : i32
    return %c0_i32, %c0_i32_0 : i32, i32
  }
  func.func @transform_13(%arg0: i32) -> (i32, i32, i32) {
    %c0_i32 = arith.constant 0 : i32
    %c0_i32_0 = arith.constant 0 : i32
    %c0_i32_1 = arith.constant 0 : i32
    return %arg0, %c0_i32, %c0_i32_0 : i32, i32, i32
  }
}

</mosaic_0001>

<llo_original>
// kernel: tpu_custom_call.1
$region0: #{tpu_custom_call.1}
  #allocation0 [shape = 'u32[]', space=smem, size = 0x4, offset = 0x4, fixed_abs, tag = 'smem constant byte address 0x4 - core index']
  #allocation1 [shape = 'u32[144,128]{1,0:T(1,128)}', space=vmem, size = 0x12000, scoped, tag = 'internal scratch']
  #allocation2 [shape = 'f32[16,128]{1,0:T(8,128)}', space=vmem, size = 0x2000, scoped, tag = 'scratch operand']
  #allocation3 [shape = 'f32[16,32]{1,0:T(8,128)}', space=vmem, size = 0x2000, scoped, tag = 'scratch operand']
  #allocation4 [shape = 'f32[16,32]{1,0:T(8,128)}', space=vmem, size = 0x2000, scoped, tag = 'scratch operand']
  #allocation5 [shape = 'f32[16,32]{1,0:T(8,128)}', space=vmem, size = 0x2000, scoped, tag = 'scratch operand']
  #allocation6 [shape = 'f32[16,32]{1,0:T(8,128)}', space=vmem, size = 0x2000, scoped, tag = 'scratch operand']
  %s0 = inlined_call_operand.hbm [shape: f32[1,16,50], index: 0, kind: input, shape index: {}]
  %s1 = inlined_call_operand.hbm [shape: f32[1,16,50], index: 1, kind: input, shape index: {}]
  %s2 = inlined_call_operand.hbm [shape: f32[50,128], index: 2, kind: input, shape index: {}]
  %s3 = inlined_call_operand.hbm [shape: f32[50,128], index: 3, kind: input, shape index: {}]
  %s4 = inlined_call_operand.hbm [shape: f32[32,128], index: 4, kind: input, shape index: {}]
  %s5 = inlined_call_operand.vmem [shape: f32[1,128], index: 5, kind: input, shape index: {}]
  %s6 = inlined_call_operand.hbm [shape: f32[32,128], index: 6, kind: input, shape index: {}]
  %s7 = inlined_call_operand.hbm [shape: f32[32,128], index: 7, kind: input, shape index: {}]
  %s8 = inlined_call_operand.hbm [shape: f32[32,128], index: 8, kind: input, shape index: {}]
  %s9 = inlined_call_operand.vmem [shape: f32[1,128], index: 9, kind: input, shape index: {}]
  %s10 = inlined_call_operand.vmem [shape: f32[32,50], index: 10, kind: input, shape index: {}]
  %s11 = inlined_call_operand.hbm [shape: f32[32,50], index: 11, kind: input, shape index: {}]
  %s12 = inlined_call_operand.vmem [shape: f32[1,50], index: 12, kind: input, shape index: {}]
  %s13 = inlined_call_operand.hbm [shape: f32[1,16,50], index: 13, kind: output, shape index: {}]
  %s14 = sld [smem:[#allocation0]]
  $region98: #{tpu_custom_call.1} parent=0
    _
  %s16 = ssub.s32 1, %s14
  %s17 = scalar_select 0, %s16, %s14
  $region1: #{tpu_custom_call.1} parent=0
    #allocation7 [shape = 'u8[8192]{0}', space=vmem, size = 0x2000, scoped, tag = 'input window, operand 0, single buffered']
    #allocation8 [shape = 's32[1]{0}', space=sflag, size = 0x4, scoped, tag = 'scoped memory for tpu_custom_call.1']
    #allocation9 [shape = 's32[1]{0}', space=sflag, size = 0x4, scoped, tag = 'scoped memory for tpu_custom_call.1']
    #allocation10 [shape = 'u8[8192]{0}', space=vmem, size = 0x2000, scoped, tag = 'input window, operand 1, single buffered']
    #allocation11 [shape = 's32[1]{0}', space=sflag, size = 0x4, scoped, tag = 'scoped memory for tpu_custom_call.1']
    #allocation12 [shape = 'u8[28672]{0}', space=vmem, size = 0x7000, scoped, tag = 'input window, operand 2, single buffered']
    #allocation13 [shape = 'u8[28672]{0}', space=vmem, size = 0x7000, scoped, tag = 'input window, operand 3, single buffered']
    #allocation14 [shape = 's32[1]{0}', space=sflag, size = 0x4, scoped, tag = 'scoped memory for tpu_custom_call.1']
    #allocation15 [shape = 'u8[16384]{0}', space=vmem, size = 0x4000, scoped, tag = 'input window, operand 4, single buffered']
    #allocation16 [shape = 'u8[16384]{0}', space=vmem, size = 0x4000, scoped, tag = 'input window, operand 6, single buffered']
    #allocation17 [shape = 's32[1]{0}', space=sflag, size = 0x4, scoped, tag = 'scoped memory for tpu_custom_call.1']
    #allocation18 [shape = 'u8[16384]{0}', space=vmem, size = 0x4000, scoped, tag = 'input window, operand 7, single buffered']
    #allocation19 [shape = 'u8[16384]{0}', space=vmem, size = 0x4000, scoped, tag = 'input window, operand 8, single buffered']
    #allocation20 [shape = 's32[1]{0}', space=sflag, size = 0x4, scoped, tag = 'scoped memory for tpu_custom_call.1']
    #allocation21 [shape = 'u8[16384]{0}', space=vmem, size = 0x4000, scoped, tag = 'input window, operand 11, single buffered']
    #allocation22 [shape = 'u8[8192]{0}', space=vmem, size = 0x2000, scoped, tag = 'output window, operand 0, single buffered']
    %18 = vsyncpa [#allocation8], 0
    %19 = vsyncpa [#allocation11], 0
    %20 = vsyncpa [#allocation14], 0
    %21 = vsyncpa [#allocation17], 0
    %22 = vsyncpa [#allocation20], 0
    %23 = vsyncpa [#allocation9], 0
    // Predicated region
    $region2: #{tpu_custom_call.1} parent=1 // pred_check
      _
    $region3: #{tpu_custom_call.1} parent=1 // pred_check_branch
      %25 = sbr.rel (0) target = $region5
    $region4: #{tpu_custom_call.1} parent=1 // pred_region
      %s27 = ssub.s32 256, 256
      %28 = vsyncadd [#allocation8], %s27
      %s29 = sshll.u32 [#allocation7], 4
      %s30 = int_to_ptr.vmem [resolvable:$true] %s29
      %35 = dma.hbm_to_vmem [thread:$0]  %s0, 256, %s30, [#allocation8], 128, 128, 8
    $region5: #{tpu_custom_call.1} parent=1 // pred_fallthru
      _
    // Predicated region
    $region6: #{tpu_custom_call.1} parent=1 // pred_check
      _
    $region7: #{tpu_custom_call.1} parent=1 // pred_check_branch
      %37 = sbr.rel (0) target = $region9
    $region8: #{tpu_custom_call.1} parent=1 // pred_region
      %s39 = ssub.s32 256, 256
      %40 = vsyncadd [#allocation11], %s39
      %s41 = sshll.u32 [#allocation10], 4
      %s42 = int_to_ptr.vmem [resolvable:$true] %s41
      %47 = dma.hbm_to_vmem [thread:$0]  %s1, 256, %s42, [#allocation11], 128, 128, 8
    $region9: #{tpu_custom_call.1} parent=1 // pred_fallthru
      _
    // Predicated region
    $region10: #{tpu_custom_call.1} parent=1 // pred_check
      _
    $region11: #{tpu_custom_call.1} parent=1 // pred_check_branch
      %49 = sbr.rel (0) target = $region13
    $region12: #{tpu_custom_call.1} parent=1 // pred_region
      %s51 = ssub.s32 896, 896
      %52 = vsyncadd [#allocation11], %s51
      %s53 = sshll.u32 [#allocation12], 4
      %s54 = int_to_ptr.vmem [resolvable:$true] %s53
      %59 = dma.hbm_to_vmem [thread:$0]  %s2, 896, %s54, [#allocation11], 128, 128, 8
    $region13: #{tpu_custom_call.1} parent=1 // pred_fallthru
      _
    // Predicated region
    $region14: #{tpu_custom_call.1} parent=1 // pred_check
      _
    $region15: #{tpu_custom_call.1} parent=1 // pred_check_branch
      %61 = sbr.rel (0) target = $region17
    $region16: #{tpu_custom_call.1} parent=1 // pred_region
      %s63 = ssub.s32 896, 896
      %64 = vsyncadd [#allocation14], %s63
      %s65 = sshll.u32 [#allocation13], 4
      %s66 = int_to_ptr.vmem [resolvable:$true] %s65
      %71 = dma.hbm_to_vmem [thread:$0]  %s3, 896, %s66, [#allocation14], 128, 128, 8
    $region17: #{tpu_custom_call.1} parent=1 // pred_fallthru
      _
    // Predicated region
    $region18: #{tpu_custom_call.1} parent=1 // pred_check
      _
    $region19: #{tpu_custom_call.1} parent=1 // pred_check_branch
      %73 = sbr.rel (0) target = $region21
    $region20: #{tpu_custom_call.1} parent=1 // pred_region
      %s75 = ssub.s32 512, 512
      %76 = vsyncadd [#allocation14], %s75
      %s77 = sshll.u32 [#allocation15], 4
      %s78 = int_to_ptr.vmem [resolvable:$true] %s77
      %83 = dma.hbm_to_vmem [thread:$0]  %s4, 512, %s78, [#allocation14], 128, 128, 8
    $region21: #{tpu_custom_call.1} parent=1 // pred_fallthru
      _
    // Predicated region
    $region22: #{tpu_custom_call.1} parent=1 // pred_check
      _
    $region23: #{tpu_custom_call.1} parent=1 // pred_check_branch
      %85 = sbr.rel (0) target = $region25
    $region24: #{tpu_custom_call.1} parent=1 // pred_region
      _
    $region25: #{tpu_custom_call.1} parent=1 // pred_fallthru
      _
    // Predicated region
    $region26: #{tpu_custom_call.1} parent=1 // pred_check
      _
    $region27: #{tpu_custom_call.1} parent=1 // pred_check_branch
      %87 = sbr.rel (0) target = $region29
    $region28: #{tpu_custom_call.1} parent=1 // pred_region
      %s89 = ssub.s32 512, 512
      %90 = vsyncadd [#allocation17], %s89
      %s91 = sshll.u32 [#allocation16], 4
      %s92 = int_to_ptr.vmem [resolvable:$true] %s91
      %97 = dma.hbm_to_vmem [thread:$0]  %s6, 512, %s92, [#allocation17], 128, 128, 8
    $region29: #{tpu_custom_call.1} parent=1 // pred_fallthru
      _
    // Predicated region
    $region30: #{tpu_custom_call.1} parent=1 // pred_check
      _
    $region31: #{tpu_custom_call.1} parent=1 // pred_check_branch
      %99 = sbr.rel (0) target = $region33
    $region32: #{tpu_custom_call.1} parent=1 // pred_region
      %s101 = ssub.s32 512, 512
      %102 = vsyncadd [#allocation17], %s101
      %s103 = sshll.u32 [#allocation18], 4
      %s104 = int_to_ptr.vmem [resolvable:$true] %s103
      %109 = dma.hbm_to_vmem [thread:$0]  %s7, 512, %s104, [#allocation17], 128, 128, 8
    $region33: #{tpu_custom_call.1} parent=1 // pred_fallthru
      _
    // Predicated region
    $region34: #{tpu_custom_call.1} parent=1 // pred_check
      _
    $region35: #{tpu_custom_call.1} parent=1 // pred_check_branch
      %111 = sbr.rel (0) target = $region37
    $region36: #{tpu_custom_call.1} parent=1 // pred_region
      %s113 = ssub.s32 512, 512
      %114 = vsyncadd [#allocation20], %s113
      %s115 = sshll.u32 [#allocation19], 4
      %s116 = int_to_ptr.vmem [resolvable:$true] %s115
      %121 = dma.hbm_to_vmem [thread:$0]  %s8, 512, %s116, [#allocation20], 128, 128, 8
    $region37: #{tpu_custom_call.1} parent=1 // pred_fallthru
      _
    // Predicated region
    $region38: #{tpu_custom_call.1} parent=1 // pred_check
      _
    $region39: #{tpu_custom_call.1} parent=1 // pred_check_branch
      %123 = sbr.rel (0) target = $region41
    $region40: #{tpu_custom_call.1} parent=1 // pred_region
      _
    $region41: #{tpu_custom_call.1} parent=1 // pred_fallthru
      _
    // Predicated region
    $region42: #{tpu_custom_call.1} parent=1 // pred_check
      _
    $region43: #{tpu_custom_call.1} parent=1 // pred_check_branch
      %125 = sbr.rel (0) target = $region45
    $region44: #{tpu_custom_call.1} parent=1 // pred_region
      _
    $region45: #{tpu_custom_call.1} parent=1 // pred_fallthru
      _
    // Predicated region
    $region46: #{tpu_custom_call.1} parent=1 // pred_check
      _
    $region47: #{tpu_custom_call.1} parent=1 // pred_check_branch
      %127 = sbr.rel (0) target = $region49
    $region48: #{tpu_custom_call.1} parent=1 // pred_region
      %s129 = ssub.s32 512, 512
      %130 = vsyncadd [#allocation20], %s129
      %s131 = sshll.u32 [#allocation21], 4
      %s132 = int_to_ptr.vmem [resolvable:$true] %s131
      %137 = dma.hbm_to_vmem [thread:$0]  %s11, 512, %s132, [#allocation20], 128, 128, 8
    $region49: #{tpu_custom_call.1} parent=1 // pred_fallthru
      _
    // Predicated region
    $region50: #{tpu_custom_call.1} parent=1 // pred_check
      _
    $region51: #{tpu_custom_call.1} parent=1 // pred_check_branch
      %139 = sbr.rel (0) target = $region53
    $region52: #{tpu_custom_call.1} parent=1 // pred_region
      _
    $region53: #{tpu_custom_call.1} parent=1 // pred_fallthru
      _
    // Predicated region
    $region54: #{tpu_custom_call.1} parent=1 // pred_check
      _
    $region55: #{tpu_custom_call.1} parent=1 // pred_check_branch
      %141 = sbr.rel (0) target = $region57
    $region56: #{tpu_custom_call.1} parent=1 // pred_region
      %142 = dma.done [#allocation8], 256
    $region57: #{tpu_custom_call.1} parent=1 // pred_fallthru
      _
    // Predicated region
    $region58: #{tpu_custom_call.1} parent=1 // pred_check
      _
    $region59: #{tpu_custom_call.1} parent=1 // pred_check_branch
      %144 = sbr.rel (0) target = $region61
    $region60: #{tpu_custom_call.1} parent=1 // pred_region
      %145 = dma.done [#allocation11], 256
    $region61: #{tpu_custom_call.1} parent=1 // pred_fallthru
      _
    // Predicated region
    $region62: #{tpu_custom_call.1} parent=1 // pred_check
      _
    $region63: #{tpu_custom_call.1} parent=1 // pred_check_branch
      %147 = sbr.rel (0) target = $region65
    $region64: #{tpu_custom_call.1} parent=1 // pred_region
      %148 = dma.done [#allocation11], 896
    $region65: #{tpu_custom_call.1} parent=1 // pred_fallthru
      _
    // Predicated region
    $region66: #{tpu_custom_call.1} parent=1 // pred_check
      _
    $region67: #{tpu_custom_call.1} parent=1 // pred_check_branch
      %150 = sbr.rel (0) target = $region69
    $region68: #{tpu_custom_call.1} parent=1 // pred_region
      %151 = dma.done [#allocation14], 896
    $region69: #{tpu_custom_call.1} parent=1 // pred_fallthru
      _
    // Predicated region
    $region70: #{tpu_custom_call.1} parent=1 // pred_check
      _
    $region71: #{tpu_custom_call.1} parent=1 // pred_check_branch
      %153 = sbr.rel (0) target = $region73
    $region72: #{tpu_custom_call.1} parent=1 // pred_region
      %154 = dma.done [#allocation14], 512
    $region73: #{tpu_custom_call.1} parent=1 // pred_fallthru
      _
    // Predicated region
    $region74: #{tpu_custom_call.1} parent=1 // pred_check
      _
    $region75: #{tpu_custom_call.1} parent=1 // pred_check_branch
      %156 = sbr.rel (0) target = $region77
    $region76: #{tpu_custom_call.1} parent=1 // pred_region
      %157 = dma.done [#allocation17], 512
    $region77: #{tpu_custom_call.1} parent=1 // pred_fallthru
      _
    // Predicated region
    $region78: #{tpu_custom_call.1} parent=1 // pred_check
      _
    $region79: #{tpu_custom_call.1} parent=1 // pred_check_branch
      %159 = sbr.rel (0) target = $region81
    $region80: #{tpu_custom_call.1} parent=1 // pred_region
      %160 = dma.done [#allocation17], 512
    $region81: #{tpu_custom_call.1} parent=1 // pred_fallthru
      _
    // Predicated region
    $region82: #{tpu_custom_call.1} parent=1 // pred_check
      _
    $region83: #{tpu_custom_call.1} parent=1 // pred_check_branch
      %162 = sbr.rel (0) target = $region85
    $region84: #{tpu_custom_call.1} parent=1 // pred_region
      %163 = dma.done [#allocation20], 512
    $region85: #{tpu_custom_call.1} parent=1 // pred_fallthru
      _
    // Predicated region
    $region86: #{tpu_custom_call.1} parent=1 // pred_check
      _
    $region87: #{tpu_custom_call.1} parent=1 // pred_check_branch
      %165 = sbr.rel (0) target = $region89
    $region88: #{tpu_custom_call.1} parent=1 // pred_region
      %166 = dma.done [#allocation20], 512
    $region89: #{tpu_custom_call.1} parent=1 // pred_fallthru
      _
    %v167 = vld [vmem:[#allocation7] sm:$0xff]
    %v168 = vld [vmem:[#allocation7 + $0x8] sm:$0xff]
    %v169 = vld [vmem:[#allocation12] sm:$0xff]
    %v170 = vld [vmem:[#allocation12 + $0x8] sm:$0xff]
    %v171 = vld [vmem:[#allocation12 + $0x10] sm:$0xff]
    %v172 = vld [vmem:[#allocation12 + $0x18] sm:$0xff]
    %v173 = vld [vmem:[#allocation12 + $0x20] sm:$0xff]
    %v174 = vld [vmem:[#allocation12 + $0x28] sm:$0xff]
    %v175 = vld [vmem:[#allocation12 + $0x30] sm:$0x3]
    %v176 = vld [vmem:[#allocation10] sm:$0xff]
    %v177 = vld [vmem:[#allocation10 + $0x8] sm:$0xff]
    %v178 = vld [vmem:[#allocation13] sm:$0xff]
    %v179 = vld [vmem:[#allocation13 + $0x8] sm:$0xff]
    %v180 = vld [vmem:[#allocation13 + $0x10] sm:$0xff]
    %v181 = vld [vmem:[#allocation13 + $0x18] sm:$0xff]
    %v182 = vld [vmem:[#allocation13 + $0x20] sm:$0xff]
    %v183 = vld [vmem:[#allocation13 + $0x28] sm:$0xff]
    %v184 = vld [vmem:[#allocation13 + $0x30] sm:$0x3]
    %vm185 = vcmask 408576
    %v187 = vsel %vm185, %v176, 0
    %v190 = vsel %vm185, %v177, 0
    %vm192 = vcmask 1041408
    %v194 = vsel %vm192, %v184, 0
    %196 = vmatprep.subr.mxu0 0.0
    %197 = vmatpush1.msra.mxu0 %v178
    %198 = vmatprep.subr.mxu0 0.0
    %199 = vmatpush1.msra.mxu0 %v179
    %200 = vmatprep.subr.mxu0 0.0
    %201 = vmatpush1.msra.mxu0 %v180
    %202 = vmatprep.subr.mxu0 0.0
    %203 = vmatpush1.msra.mxu0 %v181
    %204 = vmatprep.subr.mxu0 0.0
    %205 = vmatpush1.msra.mxu0 %v182
    %206 = vmatprep.subr.mxu0 0.0
    %207 = vmatpush1.msra.mxu0 %v183
    %208 = vmatprep.subr.mxu0 0.0
    %209 = vmatpush1.msra.mxu0 %v194
    %210 = vmatprep.subr.mxu0 0.0
    %211 = vmatpush1.msra.mxu0 0.0
    %212 = vmatprep.subr.mxu0 0.0
    %213 = vmatpush1.msra.mxu0 0.0
    %214 = vmatprep.subr.mxu0 0.0
    %215 = vmatpush1.msra.mxu0 0.0
    %216 = vmatprep.subr.mxu0 0.0
    %217 = vmatpush1.msra.mxu0 0.0
    %218 = vmatprep.subr.mxu0 0.0
    %219 = vmatpush1.msra.mxu0 0.0
    %220 = vmatprep.subr.mxu0 0.0
    %221 = vmatpush1.msra.mxu0 0.0
    %222 = vmatprep.subr.mxu0 0.0
    %223 = vmatpush1.msra.mxu0 0.0
    %224 = vmatprep.subr.mxu0 0.0
    %225 = vmatpush1.msra.mxu0 0.0
    %226 = vmatprep.subr.mxu0 0.0
    %227 = vmatpush1.msra.mxu0 0.0
    %228 = vmatprep.subr.mxu0 0.0
    %229 = vmatpush1.msra.mxu0 0.0
    %230 = vmatprep.subr.mxu0 0.0
    %231 = vmatpush1.msra.mxu0 0.0
    %232 = vmatprep.subr.mxu0 0.0
    %233 = vmatpush1.msra.mxu0 0.0
    %234 = vmatprep.subr.mxu0 0.0
    %235 = vmatpush1.msra.mxu0 0.0
    %236 = vmatprep.subr.mxu0 0.0
    %237 = vmatpush1.msra.mxu0 0.0
    %238 = vmatprep.subr.mxu0 0.0
    %239 = vmatpush1.msra.mxu0 0.0
    %240 = vmatprep.subr.mxu0 0.0
    %241 = vmatpush1.msra.mxu0 0.0
    %242 = vmatprep.subr.mxu0 0.0
    %243 = vmatpush1.msra.mxu0 0.0
    %244 = vmatprep.subr.mxu0 0.0
    %245 = vmatpush1.msra.mxu0 0.0
    %246 = vmatprep.subr.mxu0 0.0
    %247 = vmatpush1.msra.mxu0 0.0
    %248 = vmatprep.subr.mxu0 0.0
    %249 = vmatpush1.msra.mxu0 0.0
    %250 = vmatprep.subr.mxu0 0.0
    %251 = vmatpush1.msra.mxu0 0.0
    %252 = vmatprep.subr.mxu0 0.0
    %253 = vmatpush1.msra.mxu0 0.0
    %254 = vmatprep.subr.mxu0 0.0
    %255 = vmatpush1.msra.mxu0 0.0
    %256 = vmatprep.subr.mxu0 0.0
    %257 = vmatpush1.msra.mxu0 0.0
    %258 = vmatprep.subr.mxu0 0.0
    %259 = vmatpush1.msra.mxu0 0.0
    %260 = vmatprep.mubr.f32.mxu0 0.0
    %261 = vmatmul.mubr.f32.gmra.mrb[0].mxu0 %v187
    %v262 = vpop.f32.mrb[0].mxu0
    %v263 = vadd.f32 0.0, %v262
    %v264 = vpop.f32.mrb[0].mxu0
    %265 = vmatprep.mubr.f32.mxu0 0.0
    %266 = vmatmul.mubr.f32.gmra.mrb[0].mxu0 %v190
    %v267 = vpop.f32.mrb[0].mxu0
    %v268 = vadd.f32 0.0, %v267
    %v269 = vpop.f32.mrb[0].mxu0
    %270 = vdwg.mxu0
    %v272 = vsel %vm185, %v167, 0
    %v275 = vsel %vm185, %v168, 0
    %v278 = vsel %vm192, %v175, 0
    %280 = vmatprep.subr.mxu0 0.0
    %281 = vmatpush1.msra.mxu0 %v169
    %282 = vmatprep.subr.mxu0 0.0
    %283 = vmatpush1.msra.mxu0 %v170
    %284 = vmatprep.subr.mxu0 0.0
    %285 = vmatpush1.msra.mxu0 %v171
    %286 = vmatprep.subr.mxu0 0.0
    %287 = vmatpush1.msra.mxu0 %v172
    %288 = vmatprep.subr.mxu0 0.0
    %289 = vmatpush1.msra.mxu0 %v173
    %290 = vmatprep.subr.mxu0 0.0
    %291 = vmatpush1.msra.mxu0 %v174
    %292 = vmatprep.subr.mxu0 0.0
    %293 = vmatpush1.msra.mxu0 %v278
    %294 = vmatprep.subr.mxu0 0.0
    %295 = vmatpush1.msra.mxu0 0.0
    %296 = vmatprep.subr.mxu0 0.0
    %297 = vmatpush1.msra.mxu0 0.0
    %298 = vmatprep.subr.mxu0 0.0
    %299 = vmatpush1.msra.mxu0 0.0
    %300 = vmatprep.subr.mxu0 0.0
    %301 = vmatpush1.msra.mxu0 0.0
    %302 = vmatprep.subr.mxu0 0.0
    %303 = vmatpush1.msra.mxu0 0.0
    %304 = vmatprep.subr.mxu0 0.0
    %305 = vmatpush1.msra.mxu0 0.0
    %306 = vmatprep.subr.mxu0 0.0
    %307 = vmatpush1.msra.mxu0 0.0
    %308 = vmatprep.subr.mxu0 0.0
    %309 = vmatpush1.msra.mxu0 0.0
    %310 = vmatprep.subr.mxu0 0.0
    %311 = vmatpush1.msra.mxu0 0.0
    %312 = vmatprep.subr.mxu0 0.0
    %313 = vmatpush1.msra.mxu0 0.0
    %314 = vmatprep.subr.mxu0 0.0
    %315 = vmatpush1.msra.mxu0 0.0
    %316 = vmatprep.subr.mxu0 0.0
    %317 = vmatpush1.msra.mxu0 0.0
    %318 = vmatprep.subr.mxu0 0.0
    %319 = vmatpush1.msra.mxu0 0.0
    %320 = vmatprep.subr.mxu0 0.0
    %321 = vmatpush1.msra.mxu0 0.0
    %322 = vmatprep.subr.mxu0 0.0
    %323 = vmatpush1.msra.mxu0 0.0
    %324 = vmatprep.subr.mxu0 0.0
    %325 = vmatpush1.msra.mxu0 0.0
    %326 = vmatprep.subr.mxu0 0.0
    %327 = vmatpush1.msra.mxu0 0.0
    %328 = vmatprep.subr.mxu0 0.0
    %329 = vmatpush1.msra.mxu0 0.0
    %330 = vmatprep.subr.mxu0 0.0
    %331 = vmatpush1.msra.mxu0 0.0
    %332 = vmatprep.subr.mxu0 0.0
    %333 = vmatpush1.msra.mxu0 0.0
    %334 = vmatprep.subr.mxu0 0.0
    %335 = vmatpush1.msra.mxu0 0.0
    %336 = vmatprep.subr.mxu0 0.0
    %337 = vmatpush1.msra.mxu0 0.0
    %338 = vmatprep.subr.mxu0 0.0
    %339 = vmatpush1.msra.mxu0 0.0
    %340 = vmatprep.subr.mxu0 0.0
    %341 = vmatpush1.msra.mxu0 0.0
    %342 = vmatprep.subr.mxu0 0.0
    %343 = vmatpush1.msra.mxu0 0.0
    %344 = vmatprep.mubr.f32.mxu0 0.0
    %345 = vmatmul.mubr.f32.gmra.mrb[0].mxu0 %v272
    %v346 = vpop.f32.mrb[0].mxu0
    %v347 = vadd.f32 %v263, %v346
    %v348 = vpop.f32.mrb[0].mxu0
    %349 = vmatprep.mubr.f32.mxu0 0.0
    %350 = vmatmul.mubr.f32.gmra.mrb[0].mxu0 %v275
    %v351 = vpop.f32.mrb[0].mxu0
    %v352 = vadd.f32 %v268, %v351
    %v353 = vpop.f32.mrb[0].mxu0
    %354 = vdwg.mxu0
    %v355 = vld [vmem:[%s5] sm:$0x1]
    %v357 = vlaneseq
    %v358 = vshrl.u32 %v357, 7
    %v359 = vsub.s32 0, %v358
    %v360 = vrot.slane %v355, %v359
    %v362 = vadd.f32 %v347, %v360
    %v363 = vadd.f32 %v352, %v360
    %364 = vst [vmem:[#allocation2] sm:$0xff] %v362
    %365 = vst [vmem:[#allocation2 + $0x8] sm:$0xff] %v363
    %v366 = vld [vmem:[#allocation15] sm:$0xff]
    %v367 = vld [vmem:[#allocation15 + $0x8] sm:$0xff]
    %v368 = vld [vmem:[#allocation15 + $0x10] sm:$0xff]
    %v369 = vld [vmem:[#allocation15 + $0x18] sm:$0xff]
    %v370 = vld [vmem:[#allocation2] sm:$0x3]
    %vm371 = vcmask 261120
    %v373 = vsel %vm371, 0.0, 0
    %375 = vmatprep.subr.mxu0 0.0
    %376 = vmatpush1.msra.mxu0 %v366
    %377 = vmatprep.subr.mxu0 0.0
    %378 = vmatpush1.msra.mxu0 %v367
    %379 = vmatprep.subr.mxu0 0.0
    %380 = vmatpush1.msra.mxu0 %v368
    %381 = vmatprep.subr.mxu0 0.0
    %382 = vmatpush1.msra.mxu0 %v369
    %383 = vmatprep.subr.mxu0 0.0
    %384 = vmatpush1.msra.mxu0 0.0
    %385 = vmatprep.subr.mxu0 0.0
    %386 = vmatpush1.msra.mxu0 0.0
    %387 = vmatprep.subr.mxu0 0.0
    %388 = vmatpush1.msra.mxu0 0.0
    %389 = vmatprep.subr.mxu0 0.0
    %390 = vmatpush1.msra.mxu0 0.0
    %391 = vmatprep.subr.mxu0 0.0
    %392 = vmatpush1.msra.mxu0 0.0
    %393 = vmatprep.subr.mxu0 0.0
    %394 = vmatpush1.msra.mxu0 0.0
    %395 = vmatprep.subr.mxu0 0.0
    %396 = vmatpush1.msra.mxu0 0.0
    %397 = vmatprep.subr.mxu0 0.0
    %398 = vmatpush1.msra.mxu0 0.0
    %399 = vmatprep.subr.mxu0 0.0
    %400 = vmatpush1.msra.mxu0 0.0
    %401 = vmatprep.subr.mxu0 0.0
    %402 = vmatpush1.msra.mxu0 0.0
    %403 = vmatprep.subr.mxu0 0.0
    %404 = vmatpush1.msra.mxu0 0.0
    %405 = vmatprep.subr.mxu0 0.0
    %406 = vmatpush1.msra.mxu0 0.0
    %407 = vmatprep.subr.mxu0 0.0
    %408 = vmatpush1.msra.mxu0 0.0
    %409 = vmatprep.subr.mxu0 0.0
    %410 = vmatpush1.msra.mxu0 0.0
    %411 = vmatprep.subr.mxu0 0.0
    %412 = vmatpush1.msra.mxu0 0.0
    %413 = vmatprep.subr.mxu0 0.0
    %414 = vmatpush1.msra.mxu0 0.0
    %415 = vmatprep.subr.mxu0 0.0
    %416 = vmatpush1.msra.mxu0 0.0
    %417 = vmatprep.subr.mxu0 0.0
    %418 = vmatpush1.msra.mxu0 0.0
    %419 = vmatprep.subr.mxu0 0.0
    %420 = vmatpush1.msra.mxu0 0.0
    %421 = vmatprep.subr.mxu0 0.0
    %422 = vmatpush1.msra.mxu0 0.0
    %423 = vmatprep.subr.mxu0 0.0
    %424 = vmatpush1.msra.mxu0 0.0
    %425 = vmatprep.subr.mxu0 0.0
    %426 = vmatpush1.msra.mxu0 0.0
    %427 = vmatprep.subr.mxu0 0.0
    %428 = vmatpush1.msra.mxu0 0.0
    %429 = vmatprep.subr.mxu0 0.0
    %430 = vmatpush1.msra.mxu0 0.0
    %431 = vmatprep.subr.mxu0 0.0
    %432 = vmatpush1.msra.mxu0 0.0
    %433 = vmatprep.subr.mxu0 0.0
    %434 = vmatpush1.msra.mxu0 0.0
    %435 = vmatprep.subr.mxu0 0.0
    %436 = vmatpush1.msra.mxu0 0.0
    %437 = vmatprep.subr.mxu0 0.0
    %438 = vmatpush1.msra.mxu0 0.0
    %439 = vmatprep.mubr.f32.mxu0 0.0
    %440 = vmatmul.mubr.f32.gmra.mrb[0].mxu0 %v373
    %v441 = vpop.f32.mrb[0].mxu0
    %v442 = vadd.f32 0.0, %v441
    %v443 = vpop.f32.mrb[0].mxu0
    %444 = vdwg.mxu0
    %v445 = vadd.f32 %v370, %v442
    %v446 = vxor.u32 %v445, 2147483648
    %v447 = vmul.f32 %v446, 1.442695
    %v448 = vpow.pop %v447
    %v449 = vadd.f32 %v448, 1.0
    %v450 = vrcp.pop %v449
    %v451 = vmul.f32 1.0, %v450
    %v452 = vtanh.pop %v445
    %v453 = vmul.f32 %v451, 0.0
    %455 = vrot.lane.b32.xlu0 %v452, 32
    %v456 = vpop.permute.xlu0 %455
    %v458 = vmul.f32 %v451, %v456
    %460 = vrot.lane.b32.xlu0 %v458, 32
    %v461 = vpop.permute.xlu0 %460
    %v463 = vadd.f32 %v453, %v461
    %v464 = vtanh.pop %v463
    %466 = vrot.lane.b32.xlu0 %v464, 32
    %v467 = vpop.permute.xlu0 %466
    %v469 = vmul.f32 %v451, %v467
    %v470 = vmax.f32 %v469, 0.0
    %472 = vrot.lane.b32.xlu0 %v470, 64
    %v473 = vpop.permute.xlu0 %472
    %vm475 = vcmask 254976
    %476 = vst.msk [vmem:[#allocation3] sm:$0x3] %vm475, %v473
    %477 = vst.msk [vmem:[#allocation4 + $0xe] sm:$0x3] %vm475, %v473
    %v478 = vld [vmem:[#allocation2 + $0x2] sm:$0x3]
    %480 = vrot.lane.b32.xlu0 %v469, 64
    %v481 = vpop.permute.xlu0 %480
    %v482 = vsel %vm371, %v481, 0
    %484 = vmatprep.subr.mxu0 0.0
    %485 = vmatpush1.msra.mxu0 %v366
    %486 = vmatprep.subr.mxu0 0.0
    %487 = vmatpush1.msra.mxu0 %v367
    %488 = vmatprep.subr.mxu0 0.0
    %489 = vmatpush1.msra.mxu0 %v368
    %490 = vmatprep.subr.mxu0 0.0
    %491 = vmatpush1.msra.mxu0 %v369
    %492 = vmatprep.subr.mxu0 0.0
    %493 = vmatpush1.msra.mxu0 0.0
    %494 = vmatprep.subr.mxu0 0.0
    %495 = vmatpush1.msra.mxu0 0.0
    %496 = vmatprep.subr.mxu0 0.0
    %497 = vmatpush1.msra.mxu0 0.0
    %498 = vmatprep.subr.mxu0 0.0
    %499 = vmatpush1.msra.mxu0 0.0
    %500 = vmatprep.subr.mxu0 0.0
    %501 = vmatpush1.msra.mxu0 0.0
    %502 = vmatprep.subr.mxu0 0.0
    %503 = vmatpush1.msra.mxu0 0.0
    %504 = vmatprep.subr.mxu0 0.0
    %505 = vmatpush1.msra.mxu0 0.0
    %506 = vmatprep.subr.mxu0 0.0
    %507 = vmatpush1.msra.mxu0 0.0
    %508 = vmatprep.subr.mxu0 0.0
    %509 = vmatpush1.msra.mxu0 0.0
    %510 = vmatprep.subr.mxu0 0.0
    %511 = vmatpush1.msra.mxu0 0.0
    %512 = vmatprep.subr.mxu0 0.0
    %513 = vmatpush1.msra.mxu0 0.0
    %514 = vmatprep.subr.mxu0 0.0
    %515 = vmatpush1.msra.mxu0 0.0
    %516 = vmatprep.subr.mxu0 0.0
    %517 = vmatpush1.msra.mxu0 0.0
    %518 = vmatprep.subr.mxu0 0.0
    %519 = vmatpush1.msra.mxu0 0.0
    %520 = vmatprep.subr.mxu0 0.0
    %521 = vmatpush1.msra.mxu0 0.0
    %522 = vmatprep.subr.mxu0 0.0
    %523 = vmatpush1.msra.mxu0 0.0
    %524 = vmatprep.subr.mxu0 0.0
    %525 = vmatpush1.msra.mxu0 0.0
    %526 = vmatprep.subr.mxu0 0.0
    %527 = vmatpush1.msra.mxu0 0.0
    %528 = vmatprep.subr.mxu0 0.0
    %529 = vmatpush1.msra.mxu0 0.0
    %530 = vmatprep.subr.mxu0 0.0
    %531 = vmatpush1.msra.mxu0 0.0
    %532 = vmatprep.subr.mxu0 0.0
    %533 = vmatpush1.msra.mxu0 0.0
    %534 = vmatprep.subr.mxu0 0.0
    %535 = vmatpush1.msra.mxu0 0.0
    %536 = vmatprep.subr.mxu0 0.0
    %537 = vmatpush1.msra.mxu0 0.0
    %538 = vmatprep.subr.mxu0 0.0
    %539 = vmatpush1.msra.mxu0 0.0
    %540 = vmatprep.subr.mxu0 0.0
    %541 = vmatpush1.msra.mxu0 0.0
    %542 = vmatprep.subr.mxu0 0.0
    %543 = vmatpush1.msra.mxu0 0.0
    %544 = vmatprep.subr.mxu0 0.0
    %545 = vmatpush1.msra.mxu0 0.0
    %546 = vmatprep.subr.mxu0 0.0
    %547 = vmatpush1.msra.mxu0 0.0
    %548 = vmatprep.mubr.f32.mxu0 0.0
    %549 = vmatmul.mubr.f32.gmra.mrb[0].mxu0 %v482
    %v550 = vpop.f32.mrb[0].mxu0
    %v551 = vadd.f32 0.0, %v550
    %v552 = vpop.f32.mrb[0].mxu0
    %553 = vdwg.mxu0
    %v554 = vadd.f32 %v478, %v551
    %v555 = vxor.u32 %v554, 2147483648
    %v556 = vmul.f32 %v555, 1.442695
    %v557 = vpow.pop %v556
    %v558 = vadd.f32 %v557, 1.0
    %v559 = vrcp.pop %v558
    %v560 = vmul.f32 1.0, %v559
    %v561 = vtanh.pop %v554
    %v562 = vmul.f32 %v560, %v463
    %564 = vrot.lane.b32.xlu0 %v561, 32
    %v565 = vpop.permute.xlu0 %564
    %v567 = vmul.f32 %v560, %v565
    %569 = vrot.lane.b32.xlu0 %v567, 32
    %v570 = vpop.permute.xlu0 %569
    %v572 = vadd.f32 %v562, %v570
    %v573 = vtanh.pop %v572
    %575 = vrot.lane.b32.xlu0 %v573, 32
    %v576 = vpop.permute.xlu0 %575
    %v578 = vmul.f32 %v560, %v576
    %v579 = vmax.f32 %v578, 0.0
    %581 = vrot.lane.b32.xlu0 %v579, 64
    %v582 = vpop.permute.xlu0 %581
    %584 = vst.msk [vmem:[#allocation3 + $0x2] sm:$0x3] %vm475, %v582
    %585 = vst.msk [vmem:[#allocation4 + $0xc] sm:$0x3] %vm475, %v582
    %v586 = vld [vmem:[#allocation2 + $0x4] sm:$0x3]
    %588 = vrot.lane.b32.xlu0 %v578, 64
    %v589 = vpop.permute.xlu0 %588
    %v590 = vsel %vm371, %v589, 0
    %592 = vmatprep.subr.mxu0 0.0
    %593 = vmatpush1.msra.mxu0 %v366
    %594 = vmatprep.subr.mxu0 0.0
    %595 = vmatpush1.msra.mxu0 %v367
    %596 = vmatprep.subr.mxu0 0.0
    %597 = vmatpush1.msra.mxu0 %v368
    %598 = vmatprep.subr.mxu0 0.0
    %599 = vmatpush1.msra.mxu0 %v369
    %600 = vmatprep.subr.mxu0 0.0
    %601 = vmatpush1.msra.mxu0 0.0
    %602 = vmatprep.subr.mxu0 0.0
    %603 = vmatpush1.msra.mxu0 0.0
    %604 = vmatprep.subr.mxu0 0.0
    %605 = vmatpush1.msra.mxu0 0.0
    %606 = vmatprep.subr.mxu0 0.0
    %607 = vmatpush1.msra.mxu0 0.0
    %608 = vmatprep.subr.mxu0 0.0
    %609 = vmatpush1.msra.mxu0 0.0
    %610 = vmatprep.subr.mxu0 0.0
    %611 = vmatpush1.msra.mxu0 0.0
    %612 = vmatprep.subr.mxu0 0.0
    %613 = vmatpush1.msra.mxu0 0.0
    %614 = vmatprep.subr.mxu0 0.0
    %615 = vmatpush1.msra.mxu0 0.0
    %616 = vmatprep.subr.mxu0 0.0
    %617 = vmatpush1.msra.mxu0 0.0
    %618 = vmatprep.subr.mxu0 0.0
    %619 = vmatpush1.msra.mxu0 0.0
    %620 = vmatprep.subr.mxu0 0.0
    %621 = vmatpush1.msra.mxu0 0.0
    %622 = vmatprep.subr.mxu0 0.0
    %623 = vmatpush1.msra.mxu0 0.0
    %624 = vmatprep.subr.mxu0 0.0
    %625 = vmatpush1.msra.mxu0 0.0
    %626 = vmatprep.subr.mxu0 0.0
    %627 = vmatpush1.msra.mxu0 0.0
    %628 = vmatprep.subr.mxu0 0.0
    %629 = vmatpush1.msra.mxu0 0.0
    %630 = vmatprep.subr.mxu0 0.0
    %631 = vmatpush1.msra.mxu0 0.0
    %632 = vmatprep.subr.mxu0 0.0
    %633 = vmatpush1.msra.mxu0 0.0
    %634 = vmatprep.subr.mxu0 0.0
    %635 = vmatpush1.msra.mxu0 0.0
    %636 = vmatprep.subr.mxu0 0.0
    %637 = vmatpush1.msra.mxu0 0.0
    %638 = vmatprep.subr.mxu0 0.0
    %639 = vmatpush1.msra.mxu0 0.0
    %640 = vmatprep.subr.mxu0 0.0
    %641 = vmatpush1.msra.mxu0 0.0
    %642 = vmatprep.subr.mxu0 0.0
    %643 = vmatpush1.msra.mxu0 0.0
    %644 = vmatprep.subr.mxu0 0.0
    %645 = vmatpush1.msra.mxu0 0.0
    %646 = vmatprep.subr.mxu0 0.0
    %647 = vmatpush1.msra.mxu0 0.0
    %648 = vmatprep.subr.mxu0 0.0
    %649 = vmatpush1.msra.mxu0 0.0
    %650 = vmatprep.subr.mxu0 0.0
    %651 = vmatpush1.msra.mxu0 0.0
    %652 = vmatprep.subr.mxu0 0.0
    %653 = vmatpush1.msra.mxu0 0.0
    %654 = vmatprep.subr.mxu0 0.0
    %655 = vmatpush1.msra.mxu0 0.0
    %656 = vmatprep.mubr.f32.mxu0 0.0
    %657 = vmatmul.mubr.f32.gmra.mrb[0].mxu0 %v590
    %v658 = vpop.f32.mrb[0].mxu0
    %v659 = vadd.f32 0.0, %v658
    %v660 = vpop.f32.mrb[0].mxu0
    %661 = vdwg.mxu0
    %v662 = vadd.f32 %v586, %v659
    %v663 = vxor.u32 %v662, 2147483648
    %v664 = vmul.f32 %v663, 1.442695
    %v665 = vpow.pop %v664
    %v666 = vadd.f32 %v665, 1.0
    %v667 = vrcp.pop %v666
    %v668 = vmul.f32 1.0, %v667
    %v669 = vtanh.pop %v662
    %v670 = vmul.f32 %v668, %v572
    %672 = vrot.lane.b32.xlu0 %v669, 32
    %v673 = vpop.permute.xlu0 %672
    %v675 = vmul.f32 %v668, %v673
    %677 = vrot.lane.b32.xlu0 %v675, 32
    %v678 = vpop.permute.xlu0 %677
    %v680 = vadd.f32 %v670, %v678
    %v681 = vtanh.pop %v680
    %683 = vrot.lane.b32.xlu0 %v681, 32
    %v684 = vpop.permute.xlu0 %683
    %v686 = vmul.f32 %v668, %v684
    %v687 = vmax.f32 %v686, 0.0
    %689 = vrot.lane.b32.xlu0 %v687, 64
    %v690 = vpop.permute.xlu0 %689
    %692 = vst.msk [vmem:[#allocation3 + $0x4] sm:$0x3] %vm475, %v690
    %693 = vst.msk [vmem:[#allocation4 + $0xa] sm:$0x3] %vm475, %v690
    %v694 = vld [vmem:[#allocation2 + $0x6] sm:$0x3]
    %696 = vrot.lane.b32.xlu0 %v686, 64
    %v697 = vpop.permute.xlu0 %696
    %v698 = vsel %vm371, %v697, 0
    %700 = vmatprep.subr.mxu0 0.0
    %701 = vmatpush1.msra.mxu0 %v366
    %702 = vmatprep.subr.mxu0 0.0
    %703 = vmatpush1.msra.mxu0 %v367
    %704 = vmatprep.subr.mxu0 0.0
    %705 = vmatpush1.msra.mxu0 %v368
    %706 = vmatprep.subr.mxu0 0.0
    %707 = vmatpush1.msra.mxu0 %v369
    %708 = vmatprep.subr.mxu0 0.0
    %709 = vmatpush1.msra.mxu0 0.0
    %710 = vmatprep.subr.mxu0 0.0
    %711 = vmatpush1.msra.mxu0 0.0
    %712 = vmatprep.subr.mxu0 0.0
    %713 = vmatpush1.msra.mxu0 0.0
    %714 = vmatprep.subr.mxu0 0.0
    %715 = vmatpush1.msra.mxu0 0.0
    %716 = vmatprep.subr.mxu0 0.0
    %717 = vmatpush1.msra.mxu0 0.0
    %718 = vmatprep.subr.mxu0 0.0
    %719 = vmatpush1.msra.mxu0 0.0
    %720 = vmatprep.subr.mxu0 0.0
    %721 = vmatpush1.msra.mxu0 0.0
    %722 = vmatprep.subr.mxu0 0.0
    %723 = vmatpush1.msra.mxu0 0.0
    %724 = vmatprep.subr.mxu0 0.0
    %725 = vmatpush1.msra.mxu0 0.0
    %726 = vmatprep.subr.mxu0 0.0
    %727 = vmatpush1.msra.mxu0 0.0
    %728 = vmatprep.subr.mxu0 0.0
    %729 = vmatpush1.msra.mxu0 0.0
    %730 = vmatprep.subr.mxu0 0.0
    %731 = vmatpush1.msra.mxu0 0.0
    %732 = vmatprep.subr.mxu0 0.0
    %733 = vmatpush1.msra.mxu0 0.0
    %734 = vmatprep.subr.mxu0 0.0
    %735 = vmatpush1.msra.mxu0 0.0
    %736 = vmatprep.subr.mxu0 0.0
    %737 = vmatpush1.msra.mxu0 0.0
    %738 = vmatprep.subr.mxu0 0.0
    %739 = vmatpush1.msra.mxu0 0.0
    %740 = vmatprep.subr.mxu0 0.0
    %741 = vmatpush1.msra.mxu0 0.0
    %742 = vmatprep.subr.mxu0 0.0
    %743 = vmatpush1.msra.mxu0 0.0
    %744 = vmatprep.subr.mxu0 0.0
    %745 = vmatpush1.msra.mxu0 0.0
    %746 = vmatprep.subr.mxu0 0.0
    %747 = vmatpush1.msra.mxu0 0.0
    %748 = vmatprep.subr.mxu0 0.0
    %749 = vmatpush1.msra.mxu0 0.0
    %750 = vmatprep.subr.mxu0 0.0
    %751 = vmatpush1.msra.mxu0 0.0
    %752 = vmatprep.subr.mxu0 0.0
    %753 = vmatpush1.msra.mxu0 0.0
    %754 = vmatprep.subr.mxu0 0.0
    %755 = vmatpush1.msra.mxu0 0.0
    %756 = vmatprep.subr.mxu0 0.0
    %757 = vmatpush1.msra.mxu0 0.0
    %758 = vmatprep.subr.mxu0 0.0
    %759 = vmatpush1.msra.mxu0 0.0
    %760 = vmatprep.subr.mxu0 0.0
    %761 = vmatpush1.msra.mxu0 0.0
    %762 = vmatprep.subr.mxu0 0.0
    %763 = vmatpush1.msra.mxu0 0.0
    %764 = vmatprep.mubr.f32.mxu0 0.0
    %765 = vmatmul.mubr.f32.gmra.mrb[0].mxu0 %v698
    %v766 = vpop.f32.mrb[0].mxu0
    %v767 = vadd.f32 0.0, %v766
    %v768 = vpop.f32.mrb[0].mxu0
    %769 = vdwg.mxu0
    %v770 = vadd.f32 %v694, %v767
    %v771 = vxor.u32 %v770, 2147483648
    %v772 = vmul.f32 %v771, 1.442695
    %v773 = vpow.pop %v772
    %v774 = vadd.f32 %v773, 1.0
    %v775 = vrcp.pop %v774
    %v776 = vmul.f32 1.0, %v775
    %v777 = vtanh.pop %v770
    %v778 = vmul.f32 %v776, %v680
    %780 = vrot.lane.b32.xlu0 %v777, 32
    %v781 = vpop.permute.xlu0 %780
    %v783 = vmul.f32 %v776, %v781
    %785 = vrot.lane.b32.xlu0 %v783, 32
    %v786 = vpop.permute.xlu0 %785
    %v788 = vadd.f32 %v778, %v786
    %v789 = vtanh.pop %v788
    %791 = vrot.lane.b32.xlu0 %v789, 32
    %v792 = vpop.permute.xlu0 %791
    %v794 = vmul.f32 %v776, %v792
    %v795 = vmax.f32 %v794, 0.0
    %797 = vrot.lane.b32.xlu0 %v795, 64
    %v798 = vpop.permute.xlu0 %797
    %800 = vst.msk [vmem:[#allocation3 + $0x6] sm:$0x3] %vm475, %v798
    %801 = vst.msk [vmem:[#allocation4 + $0x8] sm:$0x3] %vm475, %v798
    %v802 = vld [vmem:[#allocation2 + $0x8] sm:$0x3]
    %804 = vrot.lane.b32.xlu0 %v794, 64
    %v805 = vpop.permute.xlu0 %804
    %v806 = vsel %vm371, %v805, 0
    %808 = vmatprep.subr.mxu0 0.0
    %809 = vmatpush1.msra.mxu0 %v366
    %810 = vmatprep.subr.mxu0 0.0
    %811 = vmatpush1.msra.mxu0 %v367
    %812 = vmatprep.subr.mxu0 0.0
    %813 = vmatpush1.msra.mxu0 %v368
    %814 = vmatprep.subr.mxu0 0.0
    %815 = vmatpush1.msra.mxu0 %v369
    %816 = vmatprep.subr.mxu0 0.0
    %817 = vmatpush1.msra.mxu0 0.0
    %818 = vmatprep.subr.mxu0 0.0
    %819 = vmatpush1.msra.mxu0 0.0
    %820 = vmatprep.subr.mxu0 0.0
    %821 = vmatpush1.msra.mxu0 0.0
    %822 = vmatprep.subr.mxu0 0.0
    %823 = vmatpush1.msra.mxu0 0.0
    %824 = vmatprep.subr.mxu0 0.0
    %825 = vmatpush1.msra.mxu0 0.0
    %826 = vmatprep.subr.mxu0 0.0
    %827 = vmatpush1.msra.mxu0 0.0
    %828 = vmatprep.subr.mxu0 0.0
    %829 = vmatpush1.msra.mxu0 0.0
    %830 = vmatprep.subr.mxu0 0.0
    %831 = vmatpush1.msra.mxu0 0.0
    %832 = vmatprep.subr.mxu0 0.0
    %833 = vmatpush1.msra.mxu0 0.0
    %834 = vmatprep.subr.mxu0 0.0
    %835 = vmatpush1.msra.mxu0 0.0
    %836 = vmatprep.subr.mxu0 0.0
    %837 = vmatpush1.msra.mxu0 0.0
    %838 = vmatprep.subr.mxu0 0.0
    %839 = vmatpush1.msra.mxu0 0.0
    %840 = vmatprep.subr.mxu0 0.0
    %841 = vmatpush1.msra.mxu0 0.0
    %842 = vmatprep.subr.mxu0 0.0
    %843 = vmatpush1.msra.mxu0 0.0
    %844 = vmatprep.subr.mxu0 0.0
    %845 = vmatpush1.msra.mxu0 0.0
    %846 = vmatprep.subr.mxu0 0.0
    %847 = vmatpush1.msra.mxu0 0.0
    %848 = vmatprep.subr.mxu0 0.0
    %849 = vmatpush1.msra.mxu0 0.0
    %850 = vmatprep.subr.mxu0 0.0
    %851 = vmatpush1.msra.mxu0 0.0
    %852 = vmatprep.subr.mxu0 0.0
    %853 = vmatpush1.msra.mxu0 0.0
    %854 = vmatprep.subr.mxu0 0.0
    %855 = vmatpush1.msra.mxu0 0.0
    %856 = vmatprep.subr.mxu0 0.0
    %857 = vmatpush1.msra.mxu0 0.0
    %858 = vmatprep.subr.mxu0 0.0
    %859 = vmatpush1.msra.mxu0 0.0
    %860 = vmatprep.subr.mxu0 0.0
    %861 = vmatpush1.msra.mxu0 0.0
    %862 = vmatprep.subr.mxu0 0.0
    %863 = vmatpush1.msra.mxu0 0.0
    %864 = vmatprep.subr.mxu0 0.0
    %865 = vmatpush1.msra.mxu0 0.0
    %866 = vmatprep.subr.mxu0 0.0
    %867 = vmatpush1.msra.mxu0 0.0
    %868 = vmatprep.subr.mxu0 0.0
    %869 = vmatpush1.msra.mxu0 0.0
    %870 = vmatprep.subr.mxu0 0.0
    %871 = vmatpush1.msra.mxu0 0.0
    %872 = vmatprep.mubr.f32.mxu0 0.0
    %873 = vmatmul.mubr.f32.gmra.mrb[0].mxu0 %v806
    %v874 = vpop.f32.mrb[0].mxu0
    %v875 = vadd.f32 0.0, %v874
    %v876 = vpop.f32.mrb[0].mxu0
    %877 = vdwg.mxu0
    %v878 = vadd.f32 %v802, %v875
    %v879 = vxor.u32 %v878, 2147483648
    %v880 = vmul.f32 %v879, 1.442695
    %v881 = vpow.pop %v880
    %v882 = vadd.f32 %v881, 1.0
    %v883 = vrcp.pop %v882
    %v884 = vmul.f32 1.0, %v883
    %v885 = vtanh.pop %v878
    %v886 = vmul.f32 %v884, %v788
    %888 = vrot.lane.b32.xlu0 %v885, 32
    %v889 = vpop.permute.xlu0 %888
    %v891 = vmul.f32 %v884, %v889
    %893 = vrot.lane.b32.xlu0 %v891, 32
    %v894 = vpop.permute.xlu0 %893
    %v896 = vadd.f32 %v886, %v894
    %v897 = vtanh.pop %v896
    %899 = vrot.lane.b32.xlu0 %v897, 32
    %v900 = vpop.permute.xlu0 %899
    %v902 = vmul.f32 %v884, %v900
    %v903 = vmax.f32 %v902, 0.0
    %905 = vrot.lane.b32.xlu0 %v903, 64
    %v906 = vpop.permute.xlu0 %905
    %908 = vst.msk [vmem:[#allocation3 + $0x8] sm:$0x3] %vm475, %v906
    %909 = vst.msk [vmem:[#allocation4 + $0x6] sm:$0x3] %vm475, %v906
    %v910 = vld [vmem:[#allocation2 + $0xa] sm:$0x3]
    %912 = vrot.lane.b32.xlu0 %v902, 64
    %v913 = vpop.permute.xlu0 %912
    %v914 = vsel %vm371, %v913, 0
    %916 = vmatprep.subr.mxu0 0.0
    %917 = vmatpush1.msra.mxu0 %v366
    %918 = vmatprep.subr.mxu0 0.0
    %919 = vmatpush1.msra.mxu0 %v367
    %920 = vmatprep.subr.mxu0 0.0
    %921 = vmatpush1.msra.mxu0 %v368
    %922 = vmatprep.subr.mxu0 0.0
    %923 = vmatpush1.msra.mxu0 %v369
    %924 = vmatprep.subr.mxu0 0.0
    %925 = vmatpush1.msra.mxu0 0.0
    %926 = vmatprep.subr.mxu0 0.0
    %927 = vmatpush1.msra.mxu0 0.0
    %928 = vmatprep.subr.mxu0 0.0
    %929 = vmatpush1.msra.mxu0 0.0
    %930 = vmatprep.subr.mxu0 0.0
    %931 = vmatpush1.msra.mxu0 0.0
    %932 = vmatprep.subr.mxu0 0.0
    %933 = vmatpush1.msra.mxu0 0.0
    %934 = vmatprep.subr.mxu0 0.0
    %935 = vmatpush1.msra.mxu0 0.0
    %936 = vmatprep.subr.mxu0 0.0
    %937 = vmatpush1.msra.mxu0 0.0
    %938 = vmatprep.subr.mxu0 0.0
    %939 = vmatpush1.msra.mxu0 0.0
    %940 = vmatprep.subr.mxu0 0.0
    %941 = vmatpush1.msra.mxu0 0.0
    %942 = vmatprep.subr.mxu0 0.0
    %943 = vmatpush1.msra.mxu0 0.0
    %944 = vmatprep.subr.mxu0 0.0
    %945 = vmatpush1.msra.mxu0 0.0
    %946 = vmatprep.subr.mxu0 0.0
    %947 = vmatpush1.msra.mxu0 0.0
    %948 = vmatprep.subr.mxu0 0.0
    %949 = vmatpush1.msra.mxu0 0.0
    %950 = vmatprep.subr.mxu0 0.0
    %951 = vmatpush1.msra.mxu0 0.0
    %952 = vmatprep.subr.mxu0 0.0
    %953 = vmatpush1.msra.mxu0 0.0
    %954 = vmatprep.subr.mxu0 0.0
    %955 = vmatpush1.msra.mxu0 0.0
    %956 = vmatprep.subr.mxu0 0.0
    %957 = vmatpush1.msra.mxu0 0.0
    %958 = vmatprep.subr.mxu0 0.0
    %959 = vmatpush1.msra.mxu0 0.0
    %960 = vmatprep.subr.mxu0 0.0
    %961 = vmatpush1.msra.mxu0 0.0
    %962 = vmatprep.subr.mxu0 0.0
    %963 = vmatpush1.msra.mxu0 0.0
    %964 = vmatprep.subr.mxu0 0.0
    %965 = vmatpush1.msra.mxu0 0.0
    %966 = vmatprep.subr.mxu0 0.0
    %967 = vmatpush1.msra.mxu0 0.0
    %968 = vmatprep.subr.mxu0 0.0
    %969 = vmatpush1.msra.mxu0 0.0
    %970 = vmatprep.subr.mxu0 0.0
    %971 = vmatpush1.msra.mxu0 0.0
    %972 = vmatprep.subr.mxu0 0.0
    %973 = vmatpush1.msra.mxu0 0.0
    %974 = vmatprep.subr.mxu0 0.0
    %975 = vmatpush1.msra.mxu0 0.0
    %976 = vmatprep.subr.mxu0 0.0
    %977 = vmatpush1.msra.mxu0 0.0
    %978 = vmatprep.subr.mxu0 0.0
    %979 = vmatpush1.msra.mxu0 0.0
    %980 = vmatprep.mubr.f32.mxu0 0.0
    %981 = vmatmul.mubr.f32.gmra.mrb[0].mxu0 %v914
    %v982 = vpop.f32.mrb[0].mxu0
    %v983 = vadd.f32 0.0, %v982
    %v984 = vpop.f32.mrb[0].mxu0
    %985 = vdwg.mxu0
    %v986 = vadd.f32 %v910, %v983
    %v987 = vxor.u32 %v986, 2147483648
    %v988 = vmul.f32 %v987, 1.442695
    %v989 = vpow.pop %v988
    %v990 = vadd.f32 %v989, 1.0
    %v991 = vrcp.pop %v990
    %v992 = vmul.f32 1.0, %v991
    %v993 = vtanh.pop %v986
    %v994 = vmul.f32 %v992, %v896
    %996 = vrot.lane.b32.xlu0 %v993, 32
    %v997 = vpop.permute.xlu0 %996
    %v999 = vmul.f32 %v992, %v997
    %1001 = vrot.lane.b32.xlu0 %v999, 32
    %v1002 = vpop.permute.xlu0 %1001
    %v1004 = vadd.f32 %v994, %v1002
    %v1005 = vtanh.pop %v1004
    %1007 = vrot.lane.b32.xlu0 %v1005, 32
    %v1008 = vpop.permute.xlu0 %1007
    %v1010 = vmul.f32 %v992, %v1008
    %v1011 = vmax.f32 %v1010, 0.0
    %1013 = vrot.lane.b32.xlu0 %v1011, 64
    %v1014 = vpop.permute.xlu0 %1013
    %1016 = vst.msk [vmem:[#allocation3 + $0xa] sm:$0x3] %vm475, %v1014
    %1017 = vst.msk [vmem:[#allocation4 + $0x4] sm:$0x3] %vm475, %v1014
    %v1018 = vld [vmem:[#allocation2 + $0xc] sm:$0x3]
    %1020 = vrot.lane.b32.xlu0 %v1010, 64
    %v1021 = vpop.permute.xlu0 %1020
    %v1022 = vsel %vm371, %v1021, 0
    %1024 = vmatprep.subr.mxu0 0.0
    %1025 = vmatpush1.msra.mxu0 %v366
    %1026 = vmatprep.subr.mxu0 0.0
    %1027 = vmatpush1.msra.mxu0 %v367
    %1028 = vmatprep.subr.mxu0 0.0
    %1029 = vmatpush1.msra.mxu0 %v368
    %1030 = vmatprep.subr.mxu0 0.0
    %1031 = vmatpush1.msra.mxu0 %v369
    %1032 = vmatprep.subr.mxu0 0.0
    %1033 = vmatpush1.msra.mxu0 0.0
    %1034 = vmatprep.subr.mxu0 0.0
    %1035 = vmatpush1.msra.mxu0 0.0
    %1036 = vmatprep.subr.mxu0 0.0
    %1037 = vmatpush1.msra.mxu0 0.0
    %1038 = vmatprep.subr.mxu0 0.0
    %1039 = vmatpush1.msra.mxu0 0.0
    %1040 = vmatprep.subr.mxu0 0.0
    %1041 = vmatpush1.msra.mxu0 0.0
    %1042 = vmatprep.subr.mxu0 0.0
    %1043 = vmatpush1.msra.mxu0 0.0
    %1044 = vmatprep.subr.mxu0 0.0
    %1045 = vmatpush1.msra.mxu0 0.0
    %1046 = vmatprep.subr.mxu0 0.0
    %1047 = vmatpush1.msra.mxu0 0.0
    %1048 = vmatprep.subr.mxu0 0.0
    %1049 = vmatpush1.msra.mxu0 0.0
    %1050 = vmatprep.subr.mxu0 0.0
    %1051 = vmatpush1.msra.mxu0 0.0
    %1052 = vmatprep.subr.mxu0 0.0
    %1053 = vmatpush1.msra.mxu0 0.0
    %1054 = vmatprep.subr.mxu0 0.0
    %1055 = vmatpush1.msra.mxu0 0.0
    %1056 = vmatprep.subr.mxu0 0.0
    %1057 = vmatpush1.msra.mxu0 0.0
    %1058 = vmatprep.subr.mxu0 0.0
    %1059 = vmatpush1.msra.mxu0 0.0
    %1060 = vmatprep.subr.mxu0 0.0
    %1061 = vmatpush1.msra.mxu0 0.0
    %1062 = vmatprep.subr.mxu0 0.0
    %1063 = vmatpush1.msra.mxu0 0.0
    %1064 = vmatprep.subr.mxu0 0.0
    %1065 = vmatpush1.msra.mxu0 0.0
    %1066 = vmatprep.subr.mxu0 0.0
    %1067 = vmatpush1.msra.mxu0 0.0
    %1068 = vmatprep.subr.mxu0 0.0
    %1069 = vmatpush1.msra.mxu0 0.0
    %1070 = vmatprep.subr.mxu0 0.0
    %1071 = vmatpush1.msra.mxu0 0.0
    %1072 = vmatprep.subr.mxu0 0.0
    %1073 = vmatpush1.msra.mxu0 0.0
    %1074 = vmatprep.subr.mxu0 0.0
    %1075 = vmatpush1.msra.mxu0 0.0
    %1076 = vmatprep.subr.mxu0 0.0
    %1077 = vmatpush1.msra.mxu0 0.0
    %1078 = vmatprep.subr.mxu0 0.0
    %1079 = vmatpush1.msra.mxu0 0.0
    %1080 = vmatprep.subr.mxu0 0.0
    %1081 = vmatpush1.msra.mxu0 0.0
    %1082 = vmatprep.subr.mxu0 0.0
    %1083 = vmatpush1.msra.mxu0 0.0
    %1084 = vmatprep.subr.mxu0 0.0
    %1085 = vmatpush1.msra.mxu0 0.0
    %1086 = vmatprep.subr.mxu0 0.0
    %1087 = vmatpush1.msra.mxu0 0.0
    %1088 = vmatprep.mubr.f32.mxu0 0.0
    %1089 = vmatmul.mubr.f32.gmra.mrb[0].mxu0 %v1022
    %v1090 = vpop.f32.mrb[0].mxu0
    %v1091 = vadd.f32 0.0, %v1090
    %v1092 = vpop.f32.mrb[0].mxu0
    %1093 = vdwg.mxu0
    %v1094 = vadd.f32 %v1018, %v1091
    %v1095 = vxor.u32 %v1094, 2147483648
    %v1096 = vmul.f32 %v1095, 1.442695
    %v1097 = vpow.pop %v1096
    %v1098 = vadd.f32 %v1097, 1.0
    %v1099 = vrcp.pop %v1098
    %v1100 = vmul.f32 1.0, %v1099
    %v1101 = vtanh.pop %v1094
    %v1102 = vmul.f32 %v1100, %v1004
    %1104 = vrot.lane.b32.xlu0 %v1101, 32
    %v1105 = vpop.permute.xlu0 %1104
    %v1107 = vmul.f32 %v1100, %v1105
    %1109 = vrot.lane.b32.xlu0 %v1107, 32
    %v1110 = vpop.permute.xlu0 %1109
    %v1112 = vadd.f32 %v1102, %v1110
    %v1113 = vtanh.pop %v1112
    %1115 = vrot.lane.b32.xlu0 %v1113, 32
    %v1116 = vpop.permute.xlu0 %1115
    %v1118 = vmul.f32 %v1100, %v1116
    %v1119 = vmax.f32 %v1118, 0.0
    %1121 = vrot.lane.b32.xlu0 %v1119, 64
    %v1122 = vpop.permute.xlu0 %1121
    %1124 = vst.msk [vmem:[#allocation3 + $0xc] sm:$0x3] %vm475, %v1122
    %1125 = vst.msk [vmem:[#allocation4 + $0x2] sm:$0x3] %vm475, %v1122
    %v1126 = vld [vmem:[#allocation2 + $0xe] sm:$0x3]
    %1128 = vrot.lane.b32.xlu0 %v1118, 64
    %v1129 = vpop.permute.xlu0 %1128
    %v1130 = vsel %vm371, %v1129, 0
    %1132 = vmatprep.subr.mxu0 0.0
    %1133 = vmatpush1.msra.mxu0 %v366
    %1134 = vmatprep.subr.mxu0 0.0
    %1135 = vmatpush1.msra.mxu0 %v367
    %1136 = vmatprep.subr.mxu0 0.0
    %1137 = vmatpush1.msra.mxu0 %v368
    %1138 = vmatprep.subr.mxu0 0.0
    %1139 = vmatpush1.msra.mxu0 %v369
    %1140 = vmatprep.subr.mxu0 0.0
    %1141 = vmatpush1.msra.mxu0 0.0
    %1142 = vmatprep.subr.mxu0 0.0
    %1143 = vmatpush1.msra.mxu0 0.0
    %1144 = vmatprep.subr.mxu0 0.0
    %1145 = vmatpush1.msra.mxu0 0.0
    %1146 = vmatprep.subr.mxu0 0.0
    %1147 = vmatpush1.msra.mxu0 0.0
    %1148 = vmatprep.subr.mxu0 0.0
    %1149 = vmatpush1.msra.mxu0 0.0
    %1150 = vmatprep.subr.mxu0 0.0
    %1151 = vmatpush1.msra.mxu0 0.0
    %1152 = vmatprep.subr.mxu0 0.0
    %1153 = vmatpush1.msra.mxu0 0.0
    %1154 = vmatprep.subr.mxu0 0.0
    %1155 = vmatpush1.msra.mxu0 0.0
    %1156 = vmatprep.subr.mxu0 0.0
    %1157 = vmatpush1.msra.mxu0 0.0
    %1158 = vmatprep.subr.mxu0 0.0
    %1159 = vmatpush1.msra.mxu0 0.0
    %1160 = vmatprep.subr.mxu0 0.0
    %1161 = vmatpush1.msra.mxu0 0.0
    %1162 = vmatprep.subr.mxu0 0.0
    %1163 = vmatpush1.msra.mxu0 0.0
    %1164 = vmatprep.subr.mxu0 0.0
    %1165 = vmatpush1.msra.mxu0 0.0
    %1166 = vmatprep.subr.mxu0 0.0
    %1167 = vmatpush1.msra.mxu0 0.0
    %1168 = vmatprep.subr.mxu0 0.0
    %1169 = vmatpush1.msra.mxu0 0.0
    %1170 = vmatprep.subr.mxu0 0.0
    %1171 = vmatpush1.msra.mxu0 0.0
    %1172 = vmatprep.subr.mxu0 0.0
    %1173 = vmatpush1.msra.mxu0 0.0
    %1174 = vmatprep.subr.mxu0 0.0
    %1175 = vmatpush1.msra.mxu0 0.0
    %1176 = vmatprep.subr.mxu0 0.0
    %1177 = vmatpush1.msra.mxu0 0.0
    %1178 = vmatprep.subr.mxu0 0.0
    %1179 = vmatpush1.msra.mxu0 0.0
    %1180 = vmatprep.subr.mxu0 0.0
    %1181 = vmatpush1.msra.mxu0 0.0
    %1182 = vmatprep.subr.mxu0 0.0
    %1183 = vmatpush1.msra.mxu0 0.0
    %1184 = vmatprep.subr.mxu0 0.0
    %1185 = vmatpush1.msra.mxu0 0.0
    %1186 = vmatprep.subr.mxu0 0.0
    %1187 = vmatpush1.msra.mxu0 0.0
    %1188 = vmatprep.subr.mxu0 0.0
    %1189 = vmatpush1.msra.mxu0 0.0
    %1190 = vmatprep.subr.mxu0 0.0
    %1191 = vmatpush1.msra.mxu0 0.0
    %1192 = vmatprep.subr.mxu0 0.0
    %1193 = vmatpush1.msra.mxu0 0.0
    %1194 = vmatprep.subr.mxu0 0.0
    %1195 = vmatpush1.msra.mxu0 0.0
    %1196 = vmatprep.mubr.f32.mxu0 0.0
    %1197 = vmatmul.mubr.f32.gmra.mrb[0].mxu0 %v1130
    %v1198 = vpop.f32.mrb[0].mxu0
    %v1199 = vadd.f32 0.0, %v1198
    %v1200 = vpop.f32.mrb[0].mxu0
    %1201 = vdwg.mxu0
    %v1202 = vadd.f32 %v1126, %v1199
    %v1203 = vxor.u32 %v1202, 2147483648
    %v1204 = vmul.f32 %v1203, 1.442695
    %v1205 = vpow.pop %v1204
    %v1206 = vadd.f32 %v1205, 1.0
    %v1207 = vrcp.pop %v1206
    %v1208 = vmul.f32 1.0, %v1207
    %v1209 = vtanh.pop %v1202
    %v1210 = vmul.f32 %v1208, %v1112
    %1212 = vrot.lane.b32.xlu0 %v1209, 32
    %v1213 = vpop.permute.xlu0 %1212
    %v1215 = vmul.f32 %v1208, %v1213
    %1217 = vrot.lane.b32.xlu0 %v1215, 32
    %v1218 = vpop.permute.xlu0 %1217
    %v1220 = vadd.f32 %v1210, %v1218
    %v1221 = vtanh.pop %v1220
    %1223 = vrot.lane.b32.xlu0 %v1221, 32
    %v1224 = vpop.permute.xlu0 %1223
    %v1226 = vmul.f32 %v1208, %v1224
    %v1227 = vmax.f32 %v1226, 0.0
    %1229 = vrot.lane.b32.xlu0 %v1227, 64
    %v1230 = vpop.permute.xlu0 %1229
    %1232 = vst.msk [vmem:[#allocation3 + $0xe] sm:$0x3] %vm475, %v1230
    %1233 = vst.msk [vmem:[#allocation4] sm:$0x3] %vm475, %v1230
    %v1234 = vld [vmem:[#allocation3] sm:$0xff]
    %v1235 = vld [vmem:[#allocation3 + $0x8] sm:$0xff]
    %v1236 = vld [vmem:[#allocation16] sm:$0xff]
    %v1237 = vld [vmem:[#allocation16 + $0x8] sm:$0xff]
    %v1238 = vld [vmem:[#allocation16 + $0x10] sm:$0xff]
    %v1239 = vld [vmem:[#allocation16 + $0x18] sm:$0xff]
    %v1240 = vld [vmem:[#allocation4] sm:$0xff]
    %v1241 = vld [vmem:[#allocation4 + $0x8] sm:$0xff]
    %v1242 = vld [vmem:[#allocation18] sm:$0xff]
    %v1243 = vld [vmem:[#allocation18 + $0x8] sm:$0xff]
    %v1244 = vld [vmem:[#allocation18 + $0x10] sm:$0xff]
    %v1245 = vld [vmem:[#allocation18 + $0x18] sm:$0xff]
    %v1247 = vsel %vm371, %v1240, 0
    %v1250 = vsel %vm371, %v1241, 0
    %1252 = vmatprep.subr.mxu0 0.0
    %1253 = vmatpush1.msra.mxu0 %v1242
    %1254 = vmatprep.subr.mxu0 0.0
    %1255 = vmatpush1.msra.mxu0 %v1243
    %1256 = vmatprep.subr.mxu0 0.0
    %1257 = vmatpush1.msra.mxu0 %v1244
    %1258 = vmatprep.subr.mxu0 0.0
    %1259 = vmatpush1.msra.mxu0 %v1245
    %1260 = vmatprep.subr.mxu0 0.0
    %1261 = vmatpush1.msra.mxu0 0.0
    %1262 = vmatprep.subr.mxu0 0.0
    %1263 = vmatpush1.msra.mxu0 0.0
    %1264 = vmatprep.subr.mxu0 0.0
    %1265 = vmatpush1.msra.mxu0 0.0
    %1266 = vmatprep.subr.mxu0 0.0
    %1267 = vmatpush1.msra.mxu0 0.0
    %1268 = vmatprep.subr.mxu0 0.0
    %1269 = vmatpush1.msra.mxu0 0.0
    %1270 = vmatprep.subr.mxu0 0.0
    %1271 = vmatpush1.msra.mxu0 0.0
    %1272 = vmatprep.subr.mxu0 0.0
    %1273 = vmatpush1.msra.mxu0 0.0
    %1274 = vmatprep.subr.mxu0 0.0
    %1275 = vmatpush1.msra.mxu0 0.0
    %1276 = vmatprep.subr.mxu0 0.0
    %1277 = vmatpush1.msra.mxu0 0.0
    %1278 = vmatprep.subr.mxu0 0.0
    %1279 = vmatpush1.msra.mxu0 0.0
    %1280 = vmatprep.subr.mxu0 0.0
    %1281 = vmatpush1.msra.mxu0 0.0
    %1282 = vmatprep.subr.mxu0 0.0
    %1283 = vmatpush1.msra.mxu0 0.0
    %1284 = vmatprep.subr.mxu0 0.0
    %1285 = vmatpush1.msra.mxu0 0.0
    %1286 = vmatprep.subr.mxu0 0.0
    %1287 = vmatpush1.msra.mxu0 0.0
    %1288 = vmatprep.subr.mxu0 0.0
    %1289 = vmatpush1.msra.mxu0 0.0
    %1290 = vmatprep.subr.mxu0 0.0
    %1291 = vmatpush1.msra.mxu0 0.0
    %1292 = vmatprep.subr.mxu0 0.0
    %1293 = vmatpush1.msra.mxu0 0.0
    %1294 = vmatprep.subr.mxu0 0.0
    %1295 = vmatpush1.msra.mxu0 0.0
    %1296 = vmatprep.subr.mxu0 0.0
    %1297 = vmatpush1.msra.mxu0 0.0
    %1298 = vmatprep.subr.mxu0 0.0
    %1299 = vmatpush1.msra.mxu0 0.0
    %1300 = vmatprep.subr.mxu0 0.0
    %1301 = vmatpush1.msra.mxu0 0.0
    %1302 = vmatprep.subr.mxu0 0.0
    %1303 = vmatpush1.msra.mxu0 0.0
    %1304 = vmatprep.subr.mxu0 0.0
    %1305 = vmatpush1.msra.mxu0 0.0
    %1306 = vmatprep.subr.mxu0 0.0
    %1307 = vmatpush1.msra.mxu0 0.0
    %1308 = vmatprep.subr.mxu0 0.0
    %1309 = vmatpush1.msra.mxu0 0.0
    %1310 = vmatprep.subr.mxu0 0.0
    %1311 = vmatpush1.msra.mxu0 0.0
    %1312 = vmatprep.subr.mxu0 0.0
    %1313 = vmatpush1.msra.mxu0 0.0
    %1314 = vmatprep.subr.mxu0 0.0
    %1315 = vmatpush1.msra.mxu0 0.0
    %1316 = vmatprep.mubr.f32.mxu0 0.0
    %1317 = vmatmul.mubr.f32.gmra.mrb[0].mxu0 %v1247
    %v1318 = vpop.f32.mrb[0].mxu0
    %v1319 = vadd.f32 0.0, %v1318
    %v1320 = vpop.f32.mrb[0].mxu0
    %1321 = vmatprep.mubr.f32.mxu0 0.0
    %1322 = vmatmul.mubr.f32.gmra.mrb[0].mxu0 %v1250
    %v1323 = vpop.f32.mrb[0].mxu0
    %v1324 = vadd.f32 0.0, %v1323
    %v1325 = vpop.f32.mrb[0].mxu0
    %1326 = vdwg.mxu0
    %v1328 = vsel %vm371, %v1234, 0
    %v1331 = vsel %vm371, %v1235, 0
    %1333 = vmatprep.subr.mxu0 0.0
    %1334 = vmatpush1.msra.mxu0 %v1236
    %1335 = vmatprep.subr.mxu0 0.0
    %1336 = vmatpush1.msra.mxu0 %v1237
    %1337 = vmatprep.subr.mxu0 0.0
    %1338 = vmatpush1.msra.mxu0 %v1238
    %1339 = vmatprep.subr.mxu0 0.0
    %1340 = vmatpush1.msra.mxu0 %v1239
    %1341 = vmatprep.subr.mxu0 0.0
    %1342 = vmatpush1.msra.mxu0 0.0
    %1343 = vmatprep.subr.mxu0 0.0
    %1344 = vmatpush1.msra.mxu0 0.0
    %1345 = vmatprep.subr.mxu0 0.0
    %1346 = vmatpush1.msra.mxu0 0.0
    %1347 = vmatprep.subr.mxu0 0.0
    %1348 = vmatpush1.msra.mxu0 0.0
    %1349 = vmatprep.subr.mxu0 0.0
    %1350 = vmatpush1.msra.mxu0 0.0
    %1351 = vmatprep.subr.mxu0 0.0
    %1352 = vmatpush1.msra.mxu0 0.0
    %1353 = vmatprep.subr.mxu0 0.0
    %1354 = vmatpush1.msra.mxu0 0.0
    %1355 = vmatprep.subr.mxu0 0.0
    %1356 = vmatpush1.msra.mxu0 0.0
    %1357 = vmatprep.subr.mxu0 0.0
    %1358 = vmatpush1.msra.mxu0 0.0
    %1359 = vmatprep.subr.mxu0 0.0
    %1360 = vmatpush1.msra.mxu0 0.0
    %1361 = vmatprep.subr.mxu0 0.0
    %1362 = vmatpush1.msra.mxu0 0.0
    %1363 = vmatprep.subr.mxu0 0.0
    %1364 = vmatpush1.msra.mxu0 0.0
    %1365 = vmatprep.subr.mxu0 0.0
    %1366 = vmatpush1.msra.mxu0 0.0
    %1367 = vmatprep.subr.mxu0 0.0
    %1368 = vmatpush1.msra.mxu0 0.0
    %1369 = vmatprep.subr.mxu0 0.0
    %1370 = vmatpush1.msra.mxu0 0.0
    %1371 = vmatprep.subr.mxu0 0.0
    %1372 = vmatpush1.msra.mxu0 0.0
    %1373 = vmatprep.subr.mxu0 0.0
    %1374 = vmatpush1.msra.mxu0 0.0
    %1375 = vmatprep.subr.mxu0 0.0
    %1376 = vmatpush1.msra.mxu0 0.0
    %1377 = vmatprep.subr.mxu0 0.0
    %1378 = vmatpush1.msra.mxu0 0.0
    %1379 = vmatprep.subr.mxu0 0.0
    %1380 = vmatpush1.msra.mxu0 0.0
    %1381 = vmatprep.subr.mxu0 0.0
    %1382 = vmatpush1.msra.mxu0 0.0
    %1383 = vmatprep.subr.mxu0 0.0
    %1384 = vmatpush1.msra.mxu0 0.0
    %1385 = vmatprep.subr.mxu0 0.0
    %1386 = vmatpush1.msra.mxu0 0.0
    %1387 = vmatprep.subr.mxu0 0.0
    %1388 = vmatpush1.msra.mxu0 0.0
    %1389 = vmatprep.subr.mxu0 0.0
    %1390 = vmatpush1.msra.mxu0 0.0
    %1391 = vmatprep.subr.mxu0 0.0
    %1392 = vmatpush1.msra.mxu0 0.0
    %1393 = vmatprep.subr.mxu0 0.0
    %1394 = vmatpush1.msra.mxu0 0.0
    %1395 = vmatprep.subr.mxu0 0.0
    %1396 = vmatpush1.msra.mxu0 0.0
    %1397 = vmatprep.mubr.f32.mxu0 0.0
    %1398 = vmatmul.mubr.f32.gmra.mrb[0].mxu0 %v1328
    %v1399 = vpop.f32.mrb[0].mxu0
    %v1400 = vadd.f32 %v1319, %v1399
    %v1401 = vpop.f32.mrb[0].mxu0
    %1402 = vmatprep.mubr.f32.mxu0 0.0
    %1403 = vmatmul.mubr.f32.gmra.mrb[0].mxu0 %v1331
    %v1404 = vpop.f32.mrb[0].mxu0
    %v1405 = vadd.f32 %v1324, %v1404
    %v1406 = vpop.f32.mrb[0].mxu0
    %1407 = vdwg.mxu0
    %v1408 = vld [vmem:[%s9] sm:$0x1]
    %v1410 = vlaneseq
    %v1411 = vshrl.u32 %v1410, 7
    %v1412 = vsub.s32 0, %v1411
    %v1413 = vrot.slane %v1408, %v1412
    %v1415 = vadd.f32 %v1400, %v1413
    %v1416 = vadd.f32 %v1405, %v1413
    %1417 = vst [vmem:[#allocation2] sm:$0xff] %v1415
    %1418 = vst [vmem:[#allocation2 + $0x8] sm:$0xff] %v1416
    %v1419 = vld [vmem:[#allocation19] sm:$0xff]
    %v1420 = vld [vmem:[#allocation19 + $0x8] sm:$0xff]
    %v1421 = vld [vmem:[#allocation19 + $0x10] sm:$0xff]
    %v1422 = vld [vmem:[#allocation19 + $0x18] sm:$0xff]
    %v1423 = vld [vmem:[#allocation2] sm:$0x3]
    %1424 = vmatprep.subr.mxu0 0.0
    %1425 = vmatpush1.msra.mxu0 %v1419
    %1426 = vmatprep.subr.mxu0 0.0
    %1427 = vmatpush1.msra.mxu0 %v1420
    %1428 = vmatprep.subr.mxu0 0.0
    %1429 = vmatpush1.msra.mxu0 %v1421
    %1430 = vmatprep.subr.mxu0 0.0
    %1431 = vmatpush1.msra.mxu0 %v1422
    %1432 = vmatprep.subr.mxu0 0.0
    %1433 = vmatpush1.msra.mxu0 0.0
    %1434 = vmatprep.subr.mxu0 0.0
    %1435 = vmatpush1.msra.mxu0 0.0
    %1436 = vmatprep.subr.mxu0 0.0
    %1437 = vmatpush1.msra.mxu0 0.0
    %1438 = vmatprep.subr.mxu0 0.0
    %1439 = vmatpush1.msra.mxu0 0.0
    %1440 = vmatprep.subr.mxu0 0.0
    %1441 = vmatpush1.msra.mxu0 0.0
    %1442 = vmatprep.subr.mxu0 0.0
    %1443 = vmatpush1.msra.mxu0 0.0
    %1444 = vmatprep.subr.mxu0 0.0
    %1445 = vmatpush1.msra.mxu0 0.0
    %1446 = vmatprep.subr.mxu0 0.0
    %1447 = vmatpush1.msra.mxu0 0.0
    %1448 = vmatprep.subr.mxu0 0.0
    %1449 = vmatpush1.msra.mxu0 0.0
    %1450 = vmatprep.subr.mxu0 0.0
    %1451 = vmatpush1.msra.mxu0 0.0
    %1452 = vmatprep.subr.mxu0 0.0
    %1453 = vmatpush1.msra.mxu0 0.0
    %1454 = vmatprep.subr.mxu0 0.0
    %1455 = vmatpush1.msra.mxu0 0.0
    %1456 = vmatprep.subr.mxu0 0.0
    %1457 = vmatpush1.msra.mxu0 0.0
    %1458 = vmatprep.subr.mxu0 0.0
    %1459 = vmatpush1.msra.mxu0 0.0
    %1460 = vmatprep.subr.mxu0 0.0
    %1461 = vmatpush1.msra.mxu0 0.0
    %1462 = vmatprep.subr.mxu0 0.0
    %1463 = vmatpush1.msra.mxu0 0.0
    %1464 = vmatprep.subr.mxu0 0.0
    %1465 = vmatpush1.msra.mxu0 0.0
    %1466 = vmatprep.subr.mxu0 0.0
    %1467 = vmatpush1.msra.mxu0 0.0
    %1468 = vmatprep.subr.mxu0 0.0
    %1469 = vmatpush1.msra.mxu0 0.0
    %1470 = vmatprep.subr.mxu0 0.0
    %1471 = vmatpush1.msra.mxu0 0.0
    %1472 = vmatprep.subr.mxu0 0.0
    %1473 = vmatpush1.msra.mxu0 0.0
    %1474 = vmatprep.subr.mxu0 0.0
    %1475 = vmatpush1.msra.mxu0 0.0
    %1476 = vmatprep.subr.mxu0 0.0
    %1477 = vmatpush1.msra.mxu0 0.0
    %1478 = vmatprep.subr.mxu0 0.0
    %1479 = vmatpush1.msra.mxu0 0.0
    %1480 = vmatprep.subr.mxu0 0.0
    %1481 = vmatpush1.msra.mxu0 0.0
    %1482 = vmatprep.subr.mxu0 0.0
    %1483 = vmatpush1.msra.mxu0 0.0
    %1484 = vmatprep.subr.mxu0 0.0
    %1485 = vmatpush1.msra.mxu0 0.0
    %1486 = vmatprep.subr.mxu0 0.0
    %1487 = vmatpush1.msra.mxu0 0.0
    %1488 = vmatprep.mubr.f32.mxu0 0.0
    %1489 = vmatmul.mubr.f32.gmra.mrb[0].mxu0 %v373
    %v1490 = vpop.f32.mrb[0].mxu0
    %v1491 = vadd.f32 0.0, %v1490
    %v1492 = vpop.f32.mrb[0].mxu0
    %1493 = vdwg.mxu0
    %v1494 = vadd.f32 %v1423, %v1491
    %v1495 = vxor.u32 %v1494, 2147483648
    %v1496 = vmul.f32 %v1495, 1.442695
    %v1497 = vpow.pop %v1496
    %v1498 = vadd.f32 %v1497, 1.0
    %v1499 = vrcp.pop %v1498
    %v1500 = vmul.f32 1.0, %v1499
    %v1501 = vtanh.pop %v1494
    %v1502 = vmul.f32 %v1500, 0.0
    %1504 = vrot.lane.b32.xlu0 %v1501, 32
    %v1505 = vpop.permute.xlu0 %1504
    %v1507 = vmul.f32 %v1500, %v1505
    %1509 = vrot.lane.b32.xlu0 %v1507, 32
    %v1510 = vpop.permute.xlu0 %1509
    %v1512 = vadd.f32 %v1502, %v1510
    %v1513 = vtanh.pop %v1512
    %1515 = vrot.lane.b32.xlu0 %v1513, 32
    %v1516 = vpop.permute.xlu0 %1515
    %v1518 = vmul.f32 %v1500, %v1516
    %v1519 = vmax.f32 %v1518, 0.0
    %1521 = vrot.lane.b32.xlu0 %v1519, 64
    %v1522 = vpop.permute.xlu0 %1521
    %1524 = vst.msk [vmem:[#allocation5] sm:$0x3] %vm475, %v1522
    %1525 = vst.msk [vmem:[#allocation6 + $0xe] sm:$0x3] %vm475, %v1522
    %v1526 = vld [vmem:[#allocation2 + $0x2] sm:$0x3]
    %1528 = vrot.lane.b32.xlu0 %v1518, 64
    %v1529 = vpop.permute.xlu0 %1528
    %v1530 = vsel %vm371, %v1529, 0
    %1532 = vmatprep.subr.mxu0 0.0
    %1533 = vmatpush1.msra.mxu0 %v1419
    %1534 = vmatprep.subr.mxu0 0.0
    %1535 = vmatpush1.msra.mxu0 %v1420
    %1536 = vmatprep.subr.mxu0 0.0
    %1537 = vmatpush1.msra.mxu0 %v1421
    %1538 = vmatprep.subr.mxu0 0.0
    %1539 = vmatpush1.msra.mxu0 %v1422
    %1540 = vmatprep.subr.mxu0 0.0
    %1541 = vmatpush1.msra.mxu0 0.0
    %1542 = vmatprep.subr.mxu0 0.0
    %1543 = vmatpush1.msra.mxu0 0.0
    %1544 = vmatprep.subr.mxu0 0.0
    %1545 = vmatpush1.msra.mxu0 0.0
    %1546 = vmatprep.subr.mxu0 0.0
    %1547 = vmatpush1.msra.mxu0 0.0
    %1548 = vmatprep.subr.mxu0 0.0
    %1549 = vmatpush1.msra.mxu0 0.0
    %1550 = vmatprep.subr.mxu0 0.0
    %1551 = vmatpush1.msra.mxu0 0.0
    %1552 = vmatprep.subr.mxu0 0.0
    %1553 = vmatpush1.msra.mxu0 0.0
    %1554 = vmatprep.subr.mxu0 0.0
    %1555 = vmatpush1.msra.mxu0 0.0
    %1556 = vmatprep.subr.mxu0 0.0
    %1557 = vmatpush1.msra.mxu0 0.0
    %1558 = vmatprep.subr.mxu0 0.0
    %1559 = vmatpush1.msra.mxu0 0.0
    %1560 = vmatprep.subr.mxu0 0.0
    %1561 = vmatpush1.msra.mxu0 0.0
    %1562 = vmatprep.subr.mxu0 0.0
    %1563 = vmatpush1.msra.mxu0 0.0
    %1564 = vmatprep.subr.mxu0 0.0
    %1565 = vmatpush1.msra.mxu0 0.0
    %1566 = vmatprep.subr.mxu0 0.0
    %1567 = vmatpush1.msra.mxu0 0.0
    %1568 = vmatprep.subr.mxu0 0.0
    %1569 = vmatpush1.msra.mxu0 0.0
    %1570 = vmatprep.subr.mxu0 0.0
    %1571 = vmatpush1.msra.mxu0 0.0
    %1572 = vmatprep.subr.mxu0 0.0
    %1573 = vmatpush1.msra.mxu0 0.0
    %1574 = vmatprep.subr.mxu0 0.0
    %1575 = vmatpush1.msra.mxu0 0.0
    %1576 = vmatprep.subr.mxu0 0.0
    %1577 = vmatpush1.msra.mxu0 0.0
    %1578 = vmatprep.subr.mxu0 0.0
    %1579 = vmatpush1.msra.mxu0 0.0
    %1580 = vmatprep.subr.mxu0 0.0
    %1581 = vmatpush1.msra.mxu0 0.0
    %1582 = vmatprep.subr.mxu0 0.0
    %1583 = vmatpush1.msra.mxu0 0.0
    %1584 = vmatprep.subr.mxu0 0.0
    %1585 = vmatpush1.msra.mxu0 0.0
    %1586 = vmatprep.subr.mxu0 0.0
    %1587 = vmatpush1.msra.mxu0 0.0
    %1588 = vmatprep.subr.mxu0 0.0
    %1589 = vmatpush1.msra.mxu0 0.0
    %1590 = vmatprep.subr.mxu0 0.0
    %1591 = vmatpush1.msra.mxu0 0.0
    %1592 = vmatprep.subr.mxu0 0.0
    %1593 = vmatpush1.msra.mxu0 0.0
    %1594 = vmatprep.subr.mxu0 0.0
    %1595 = vmatpush1.msra.mxu0 0.0
    %1596 = vmatprep.mubr.f32.mxu0 0.0
    %1597 = vmatmul.mubr.f32.gmra.mrb[0].mxu0 %v1530
    %v1598 = vpop.f32.mrb[0].mxu0
    %v1599 = vadd.f32 0.0, %v1598
    %v1600 = vpop.f32.mrb[0].mxu0
    %1601 = vdwg.mxu0
    %v1602 = vadd.f32 %v1526, %v1599
    %v1603 = vxor.u32 %v1602, 2147483648
    %v1604 = vmul.f32 %v1603, 1.442695
    %v1605 = vpow.pop %v1604
    %v1606 = vadd.f32 %v1605, 1.0
    %v1607 = vrcp.pop %v1606
    %v1608 = vmul.f32 1.0, %v1607
    %v1609 = vtanh.pop %v1602
    %v1610 = vmul.f32 %v1608, %v1512
    %1612 = vrot.lane.b32.xlu0 %v1609, 32
    %v1613 = vpop.permute.xlu0 %1612
    %v1615 = vmul.f32 %v1608, %v1613
    %1617 = vrot.lane.b32.xlu0 %v1615, 32
    %v1618 = vpop.permute.xlu0 %1617
    %v1620 = vadd.f32 %v1610, %v1618
    %v1621 = vtanh.pop %v1620
    %1623 = vrot.lane.b32.xlu0 %v1621, 32
    %v1624 = vpop.permute.xlu0 %1623
    %v1626 = vmul.f32 %v1608, %v1624
    %v1627 = vmax.f32 %v1626, 0.0
    %1629 = vrot.lane.b32.xlu0 %v1627, 64
    %v1630 = vpop.permute.xlu0 %1629
    %1632 = vst.msk [vmem:[#allocation5 + $0x2] sm:$0x3] %vm475, %v1630
    %1633 = vst.msk [vmem:[#allocation6 + $0xc] sm:$0x3] %vm475, %v1630
    %v1634 = vld [vmem:[#allocation2 + $0x4] sm:$0x3]
    %1636 = vrot.lane.b32.xlu0 %v1626, 64
    %v1637 = vpop.permute.xlu0 %1636
    %v1638 = vsel %vm371, %v1637, 0
    %1640 = vmatprep.subr.mxu0 0.0
    %1641 = vmatpush1.msra.mxu0 %v1419
    %1642 = vmatprep.subr.mxu0 0.0
    %1643 = vmatpush1.msra.mxu0 %v1420
    %1644 = vmatprep.subr.mxu0 0.0
    %1645 = vmatpush1.msra.mxu0 %v1421
    %1646 = vmatprep.subr.mxu0 0.0
    %1647 = vmatpush1.msra.mxu0 %v1422
    %1648 = vmatprep.subr.mxu0 0.0
    %1649 = vmatpush1.msra.mxu0 0.0
    %1650 = vmatprep.subr.mxu0 0.0
    %1651 = vmatpush1.msra.mxu0 0.0
    %1652 = vmatprep.subr.mxu0 0.0
    %1653 = vmatpush1.msra.mxu0 0.0
    %1654 = vmatprep.subr.mxu0 0.0
    %1655 = vmatpush1.msra.mxu0 0.0
    %1656 = vmatprep.subr.mxu0 0.0
    %1657 = vmatpush1.msra.mxu0 0.0
    %1658 = vmatprep.subr.mxu0 0.0
    %1659 = vmatpush1.msra.mxu0 0.0
    %1660 = vmatprep.subr.mxu0 0.0
    %1661 = vmatpush1.msra.mxu0 0.0
    %1662 = vmatprep.subr.mxu0 0.0
    %1663 = vmatpush1.msra.mxu0 0.0
    %1664 = vmatprep.subr.mxu0 0.0
    %1665 = vmatpush1.msra.mxu0 0.0
    %1666 = vmatprep.subr.mxu0 0.0
    %1667 = vmatpush1.msra.mxu0 0.0
    %1668 = vmatprep.subr.mxu0 0.0
    %1669 = vmatpush1.msra.mxu0 0.0
    %1670 = vmatprep.subr.mxu0 0.0
    %1671 = vmatpush1.msra.mxu0 0.0
    %1672 = vmatprep.subr.mxu0 0.0
    %1673 = vmatpush1.msra.mxu0 0.0
    %1674 = vmatprep.subr.mxu0 0.0
    %1675 = vmatpush1.msra.mxu0 0.0
    %1676 = vmatprep.subr.mxu0 0.0
    %1677 = vmatpush1.msra.mxu0 0.0
    %1678 = vmatprep.subr.mxu0 0.0
    %1679 = vmatpush1.msra.mxu0 0.0
    %1680 = vmatprep.subr.mxu0 0.0
    %1681 = vmatpush1.msra.mxu0 0.0
    %1682 = vmatprep.subr.mxu0 0.0
    %1683 = vmatpush1.msra.mxu0 0.0
    %1684 = vmatprep.subr.mxu0 0.0
    %1685 = vmatpush1.msra.mxu0 0.0
    %1686 = vmatprep.subr.mxu0 0.0
    %1687 = vmatpush1.msra.mxu0 0.0
    %1688 = vmatprep.subr.mxu0 0.0
    %1689 = vmatpush1.msra.mxu0 0.0
    %1690 = vmatprep.subr.mxu0 0.0
    %1691 = vmatpush1.msra.mxu0 0.0
    %1692 = vmatprep.subr.mxu0 0.0
    %1693 = vmatpush1.msra.mxu0 0.0
    %1694 = vmatprep.subr.mxu0 0.0
    %1695 = vmatpush1.msra.mxu0 0.0
    %1696 = vmatprep.subr.mxu0 0.0
    %1697 = vmatpush1.msra.mxu0 0.0
    %1698 = vmatprep.subr.mxu0 0.0
    %1699 = vmatpush1.msra.mxu0 0.0
    %1700 = vmatprep.subr.mxu0 0.0
    %1701 = vmatpush1.msra.mxu0 0.0
    %1702 = vmatprep.subr.mxu0 0.0
    %1703 = vmatpush1.msra.mxu0 0.0
    %1704 = vmatprep.mubr.f32.mxu0 0.0
    %1705 = vmatmul.mubr.f32.gmra.mrb[0].mxu0 %v1638
    %v1706 = vpop.f32.mrb[0].mxu0
    %v1707 = vadd.f32 0.0, %v1706
    %v1708 = vpop.f32.mrb[0].mxu0
    %1709 = vdwg.mxu0
    %v1710 = vadd.f32 %v1634, %v1707
    %v1711 = vxor.u32 %v1710, 2147483648
    %v1712 = vmul.f32 %v1711, 1.442695
    %v1713 = vpow.pop %v1712
    %v1714 = vadd.f32 %v1713, 1.0
    %v1715 = vrcp.pop %v1714
    %v1716 = vmul.f32 1.0, %v1715
    %v1717 = vtanh.pop %v1710
    %v1718 = vmul.f32 %v1716, %v1620
    %1720 = vrot.lane.b32.xlu0 %v1717, 32
    %v1721 = vpop.permute.xlu0 %1720
    %v1723 = vmul.f32 %v1716, %v1721
    %1725 = vrot.lane.b32.xlu0 %v1723, 32
    %v1726 = vpop.permute.xlu0 %1725
    %v1728 = vadd.f32 %v1718, %v1726
    %v1729 = vtanh.pop %v1728
    %1731 = vrot.lane.b32.xlu0 %v1729, 32
    %v1732 = vpop.permute.xlu0 %1731
    %v1734 = vmul.f32 %v1716, %v1732
    %v1735 = vmax.f32 %v1734, 0.0
    %1737 = vrot.lane.b32.xlu0 %v1735, 64
    %v1738 = vpop.permute.xlu0 %1737
    %1740 = vst.msk [vmem:[#allocation5 + $0x4] sm:$0x3] %vm475, %v1738
    %1741 = vst.msk [vmem:[#allocation6 + $0xa] sm:$0x3] %vm475, %v1738
    %v1742 = vld [vmem:[#allocation2 + $0x6] sm:$0x3]
    %1744 = vrot.lane.b32.xlu0 %v1734, 64
    %v1745 = vpop.permute.xlu0 %1744
    %v1746 = vsel %vm371, %v1745, 0
    %1748 = vmatprep.subr.mxu0 0.0
    %1749 = vmatpush1.msra.mxu0 %v1419
    %1750 = vmatprep.subr.mxu0 0.0
    %1751 = vmatpush1.msra.mxu0 %v1420
    %1752 = vmatprep.subr.mxu0 0.0
    %1753 = vmatpush1.msra.mxu0 %v1421
    %1754 = vmatprep.subr.mxu0 0.0
    %1755 = vmatpush1.msra.mxu0 %v1422
    %1756 = vmatprep.subr.mxu0 0.0
    %1757 = vmatpush1.msra.mxu0 0.0
    %1758 = vmatprep.subr.mxu0 0.0
    %1759 = vmatpush1.msra.mxu0 0.0
    %1760 = vmatprep.subr.mxu0 0.0
    %1761 = vmatpush1.msra.mxu0 0.0
    %1762 = vmatprep.subr.mxu0 0.0
    %1763 = vmatpush1.msra.mxu0 0.0
    %1764 = vmatprep.subr.mxu0 0.0
    %1765 = vmatpush1.msra.mxu0 0.0
    %1766 = vmatprep.subr.mxu0 0.0
    %1767 = vmatpush1.msra.mxu0 0.0
    %1768 = vmatprep.subr.mxu0 0.0
    %1769 = vmatpush1.msra.mxu0 0.0
    %1770 = vmatprep.subr.mxu0 0.0
    %1771 = vmatpush1.msra.mxu0 0.0
    %1772 = vmatprep.subr.mxu0 0.0
    %1773 = vmatpush1.msra.mxu0 0.0
    %1774 = vmatprep.subr.mxu0 0.0
    %1775 = vmatpush1.msra.mxu0 0.0
    %1776 = vmatprep.subr.mxu0 0.0
    %1777 = vmatpush1.msra.mxu0 0.0
    %1778 = vmatprep.subr.mxu0 0.0
    %1779 = vmatpush1.msra.mxu0 0.0
    %1780 = vmatprep.subr.mxu0 0.0
    %1781 = vmatpush1.msra.mxu0 0.0
    %1782 = vmatprep.subr.mxu0 0.0
    %1783 = vmatpush1.msra.mxu0 0.0
    %1784 = vmatprep.subr.mxu0 0.0
    %1785 = vmatpush1.msra.mxu0 0.0
    %1786 = vmatprep.subr.mxu0 0.0
    %1787 = vmatpush1.msra.mxu0 0.0
    %1788 = vmatprep.subr.mxu0 0.0
    %1789 = vmatpush1.msra.mxu0 0.0
    %1790 = vmatprep.subr.mxu0 0.0
    %1791 = vmatpush1.msra.mxu0 0.0
    %1792 = vmatprep.subr.mxu0 0.0
    %1793 = vmatpush1.msra.mxu0 0.0
    %1794 = vmatprep.subr.mxu0 0.0
    %1795 = vmatpush1.msra.mxu0 0.0
    %1796 = vmatprep.subr.mxu0 0.0
    %1797 = vmatpush1.msra.mxu0 0.0
    %1798 = vmatprep.subr.mxu0 0.0
    %1799 = vmatpush1.msra.mxu0 0.0
    %1800 = vmatprep.subr.mxu0 0.0
    %1801 = vmatpush1.msra.mxu0 0.0
    %1802 = vmatprep.subr.mxu0 0.0
    %1803 = vmatpush1.msra.mxu0 0.0
    %1804 = vmatprep.subr.mxu0 0.0
    %1805 = vmatpush1.msra.mxu0 0.0
    %1806 = vmatprep.subr.mxu0 0.0
    %1807 = vmatpush1.msra.mxu0 0.0
    %1808 = vmatprep.subr.mxu0 0.0
    %1809 = vmatpush1.msra.mxu0 0.0
    %1810 = vmatprep.subr.mxu0 0.0
    %1811 = vmatpush1.msra.mxu0 0.0
    %1812 = vmatprep.mubr.f32.mxu0 0.0
    %1813 = vmatmul.mubr.f32.gmra.mrb[0].mxu0 %v1746
    %v1814 = vpop.f32.mrb[0].mxu0
    %v1815 = vadd.f32 0.0, %v1814
    %v1816 = vpop.f32.mrb[0].mxu0
    %1817 = vdwg.mxu0
    %v1818 = vadd.f32 %v1742, %v1815
    %v1819 = vxor.u32 %v1818, 2147483648
    %v1820 = vmul.f32 %v1819, 1.442695
    %v1821 = vpow.pop %v1820
    %v1822 = vadd.f32 %v1821, 1.0
    %v1823 = vrcp.pop %v1822
    %v1824 = vmul.f32 1.0, %v1823
    %v1825 = vtanh.pop %v1818
    %v1826 = vmul.f32 %v1824, %v1728
    %1828 = vrot.lane.b32.xlu0 %v1825, 32
    %v1829 = vpop.permute.xlu0 %1828
    %v1831 = vmul.f32 %v1824, %v1829
    %1833 = vrot.lane.b32.xlu0 %v1831, 32
    %v1834 = vpop.permute.xlu0 %1833
    %v1836 = vadd.f32 %v1826, %v1834
    %v1837 = vtanh.pop %v1836
    %1839 = vrot.lane.b32.xlu0 %v1837, 32
    %v1840 = vpop.permute.xlu0 %1839
    %v1842 = vmul.f32 %v1824, %v1840
    %v1843 = vmax.f32 %v1842, 0.0
    %1845 = vrot.lane.b32.xlu0 %v1843, 64
    %v1846 = vpop.permute.xlu0 %1845
    %1848 = vst.msk [vmem:[#allocation5 + $0x6] sm:$0x3] %vm475, %v1846
    %1849 = vst.msk [vmem:[#allocation6 + $0x8] sm:$0x3] %vm475, %v1846
    %v1850 = vld [vmem:[#allocation2 + $0x8] sm:$0x3]
    %1852 = vrot.lane.b32.xlu0 %v1842, 64
    %v1853 = vpop.permute.xlu0 %1852
    %v1854 = vsel %vm371, %v1853, 0
    %1856 = vmatprep.subr.mxu0 0.0
    %1857 = vmatpush1.msra.mxu0 %v1419
    %1858 = vmatprep.subr.mxu0 0.0
    %1859 = vmatpush1.msra.mxu0 %v1420
    %1860 = vmatprep.subr.mxu0 0.0
    %1861 = vmatpush1.msra.mxu0 %v1421
    %1862 = vmatprep.subr.mxu0 0.0
    %1863 = vmatpush1.msra.mxu0 %v1422
    %1864 = vmatprep.subr.mxu0 0.0
    %1865 = vmatpush1.msra.mxu0 0.0
    %1866 = vmatprep.subr.mxu0 0.0
    %1867 = vmatpush1.msra.mxu0 0.0
    %1868 = vmatprep.subr.mxu0 0.0
    %1869 = vmatpush1.msra.mxu0 0.0
    %1870 = vmatprep.subr.mxu0 0.0
    %1871 = vmatpush1.msra.mxu0 0.0
    %1872 = vmatprep.subr.mxu0 0.0
    %1873 = vmatpush1.msra.mxu0 0.0
    %1874 = vmatprep.subr.mxu0 0.0
    %1875 = vmatpush1.msra.mxu0 0.0
    %1876 = vmatprep.subr.mxu0 0.0
    %1877 = vmatpush1.msra.mxu0 0.0
    %1878 = vmatprep.subr.mxu0 0.0
    %1879 = vmatpush1.msra.mxu0 0.0
    %1880 = vmatprep.subr.mxu0 0.0
    %1881 = vmatpush1.msra.mxu0 0.0
    %1882 = vmatprep.subr.mxu0 0.0
    %1883 = vmatpush1.msra.mxu0 0.0
    %1884 = vmatprep.subr.mxu0 0.0
    %1885 = vmatpush1.msra.mxu0 0.0
    %1886 = vmatprep.subr.mxu0 0.0
    %1887 = vmatpush1.msra.mxu0 0.0
    %1888 = vmatprep.subr.mxu0 0.0
    %1889 = vmatpush1.msra.mxu0 0.0
    %1890 = vmatprep.subr.mxu0 0.0
    %1891 = vmatpush1.msra.mxu0 0.0
    %1892 = vmatprep.subr.mxu0 0.0
    %1893 = vmatpush1.msra.mxu0 0.0
    %1894 = vmatprep.subr.mxu0 0.0
    %1895 = vmatpush1.msra.mxu0 0.0
    %1896 = vmatprep.subr.mxu0 0.0
    %1897 = vmatpush1.msra.mxu0 0.0
    %1898 = vmatprep.subr.mxu0 0.0
    %1899 = vmatpush1.msra.mxu0 0.0
    %1900 = vmatprep.subr.mxu0 0.0
    %1901 = vmatpush1.msra.mxu0 0.0
    %1902 = vmatprep.subr.mxu0 0.0
    %1903 = vmatpush1.msra.mxu0 0.0
    %1904 = vmatprep.subr.mxu0 0.0
    %1905 = vmatpush1.msra.mxu0 0.0
    %1906 = vmatprep.subr.mxu0 0.0
    %1907 = vmatpush1.msra.mxu0 0.0
    %1908 = vmatprep.subr.mxu0 0.0
    %1909 = vmatpush1.msra.mxu0 0.0
    %1910 = vmatprep.subr.mxu0 0.0
    %1911 = vmatpush1.msra.mxu0 0.0
    %1912 = vmatprep.subr.mxu0 0.0
    %1913 = vmatpush1.msra.mxu0 0.0
    %1914 = vmatprep.subr.mxu0 0.0
    %1915 = vmatpush1.msra.mxu0 0.0
    %1916 = vmatprep.subr.mxu0 0.0
    %1917 = vmatpush1.msra.mxu0 0.0
    %1918 = vmatprep.subr.mxu0 0.0
    %1919 = vmatpush1.msra.mxu0 0.0
    %1920 = vmatprep.mubr.f32.mxu0 0.0
    %1921 = vmatmul.mubr.f32.gmra.mrb[0].mxu0 %v1854
    %v1922 = vpop.f32.mrb[0].mxu0
    %v1923 = vadd.f32 0.0, %v1922
    %v1924 = vpop.f32.mrb[0].mxu0
    %1925 = vdwg.mxu0
    %v1926 = vadd.f32 %v1850, %v1923
    %v1927 = vxor.u32 %v1926, 2147483648
    %v1928 = vmul.f32 %v1927, 1.442695
    %v1929 = vpow.pop %v1928
    %v1930 = vadd.f32 %v1929, 1.0
    %v1931 = vrcp.pop %v1930
    %v1932 = vmul.f32 1.0, %v1931
    %v1933 = vtanh.pop %v1926
    %v1934 = vmul.f32 %v1932, %v1836
    %1936 = vrot.lane.b32.xlu0 %v1933, 32
    %v1937 = vpop.permute.xlu0 %1936
    %v1939 = vmul.f32 %v1932, %v1937
    %1941 = vrot.lane.b32.xlu0 %v1939, 32
    %v1942 = vpop.permute.xlu0 %1941
    %v1944 = vadd.f32 %v1934, %v1942
    %v1945 = vtanh.pop %v1944
    %1947 = vrot.lane.b32.xlu0 %v1945, 32
    %v1948 = vpop.permute.xlu0 %1947
    %v1950 = vmul.f32 %v1932, %v1948
    %v1951 = vmax.f32 %v1950, 0.0
    %1953 = vrot.lane.b32.xlu0 %v1951, 64
    %v1954 = vpop.permute.xlu0 %1953
    %1956 = vst.msk [vmem:[#allocation5 + $0x8] sm:$0x3] %vm475, %v1954
    %1957 = vst.msk [vmem:[#allocation6 + $0x6] sm:$0x3] %vm475, %v1954
    %v1958 = vld [vmem:[#allocation2 + $0xa] sm:$0x3]
    %1960 = vrot.lane.b32.xlu0 %v1950, 64
    %v1961 = vpop.permute.xlu0 %1960
    %v1962 = vsel %vm371, %v1961, 0
    %1964 = vmatprep.subr.mxu0 0.0
    %1965 = vmatpush1.msra.mxu0 %v1419
    %1966 = vmatprep.subr.mxu0 0.0
    %1967 = vmatpush1.msra.mxu0 %v1420
    %1968 = vmatprep.subr.mxu0 0.0
    %1969 = vmatpush1.msra.mxu0 %v1421
    %1970 = vmatprep.subr.mxu0 0.0
    %1971 = vmatpush1.msra.mxu0 %v1422
    %1972 = vmatprep.subr.mxu0 0.0
    %1973 = vmatpush1.msra.mxu0 0.0
    %1974 = vmatprep.subr.mxu0 0.0
    %1975 = vmatpush1.msra.mxu0 0.0
    %1976 = vmatprep.subr.mxu0 0.0
    %1977 = vmatpush1.msra.mxu0 0.0
    %1978 = vmatprep.subr.mxu0 0.0
    %1979 = vmatpush1.msra.mxu0 0.0
    %1980 = vmatprep.subr.mxu0 0.0
    %1981 = vmatpush1.msra.mxu0 0.0
    %1982 = vmatprep.subr.mxu0 0.0
    %1983 = vmatpush1.msra.mxu0 0.0
    %1984 = vmatprep.subr.mxu0 0.0
    %1985 = vmatpush1.msra.mxu0 0.0
    %1986 = vmatprep.subr.mxu0 0.0
    %1987 = vmatpush1.msra.mxu0 0.0
    %1988 = vmatprep.subr.mxu0 0.0
    %1989 = vmatpush1.msra.mxu0 0.0
    %1990 = vmatprep.subr.mxu0 0.0
    %1991 = vmatpush1.msra.mxu0 0.0
    %1992 = vmatprep.subr.mxu0 0.0
    %1993 = vmatpush1.msra.mxu0 0.0
    %1994 = vmatprep.subr.mxu0 0.0
    %1995 = vmatpush1.msra.mxu0 0.0
    %1996 = vmatprep.subr.mxu0 0.0
    %1997 = vmatpush1.msra.mxu0 0.0
    %1998 = vmatprep.subr.mxu0 0.0
    %1999 = vmatpush1.msra.mxu0 0.0
    %2000 = vmatprep.subr.mxu0 0.0
    %2001 = vmatpush1.msra.mxu0 0.0
    %2002 = vmatprep.subr.mxu0 0.0
    %2003 = vmatpush1.msra.mxu0 0.0
    %2004 = vmatprep.subr.mxu0 0.0
    %2005 = vmatpush1.msra.mxu0 0.0
    %2006 = vmatprep.subr.mxu0 0.0
    %2007 = vmatpush1.msra.mxu0 0.0
    %2008 = vmatprep.subr.mxu0 0.0
    %2009 = vmatpush1.msra.mxu0 0.0
    %2010 = vmatprep.subr.mxu0 0.0
    %2011 = vmatpush1.msra.mxu0 0.0
    %2012 = vmatprep.subr.mxu0 0.0
    %2013 = vmatpush1.msra.mxu0 0.0
    %2014 = vmatprep.subr.mxu0 0.0
    %2015 = vmatpush1.msra.mxu0 0.0
    %2016 = vmatprep.subr.mxu0 0.0
    %2017 = vmatpush1.msra.mxu0 0.0
    %2018 = vmatprep.subr.mxu0 0.0
    %2019 = vmatpush1.msra.mxu0 0.0
    %2020 = vmatprep.subr.mxu0 0.0
    %2021 = vmatpush1.msra.mxu0 0.0
    %2022 = vmatprep.subr.mxu0 0.0
    %2023 = vmatpush1.msra.mxu0 0.0
    %2024 = vmatprep.subr.mxu0 0.0
    %2025 = vmatpush1.msra.mxu0 0.0
    %2026 = vmatprep.subr.mxu0 0.0
    %2027 = vmatpush1.msra.mxu0 0.0
    %2028 = vmatprep.mubr.f32.mxu0 0.0
    %2029 = vmatmul.mubr.f32.gmra.mrb[0].mxu0 %v1962
    %v2030 = vpop.f32.mrb[0].mxu0
    %v2031 = vadd.f32 0.0, %v2030
    %v2032 = vpop.f32.mrb[0].mxu0
    %2033 = vdwg.mxu0
    %v2034 = vadd.f32 %v1958, %v2031
    %v2035 = vxor.u32 %v2034, 2147483648
    %v2036 = vmul.f32 %v2035, 1.442695
    %v2037 = vpow.pop %v2036
    %v2038 = vadd.f32 %v2037, 1.0
    %v2039 = vrcp.pop %v2038
    %v2040 = vmul.f32 1.0, %v2039
    %v2041 = vtanh.pop %v2034
    %v2042 = vmul.f32 %v2040, %v1944
    %2044 = vrot.lane.b32.xlu0 %v2041, 32
    %v2045 = vpop.permute.xlu0 %2044
    %v2047 = vmul.f32 %v2040, %v2045
    %2049 = vrot.lane.b32.xlu0 %v2047, 32
    %v2050 = vpop.permute.xlu0 %2049
    %v2052 = vadd.f32 %v2042, %v2050
    %v2053 = vtanh.pop %v2052
    %2055 = vrot.lane.b32.xlu0 %v2053, 32
    %v2056 = vpop.permute.xlu0 %2055
    %v2058 = vmul.f32 %v2040, %v2056
    %v2059 = vmax.f32 %v2058, 0.0
    %2061 = vrot.lane.b32.xlu0 %v2059, 64
    %v2062 = vpop.permute.xlu0 %2061
    %2064 = vst.msk [vmem:[#allocation5 + $0xa] sm:$0x3] %vm475, %v2062
    %2065 = vst.msk [vmem:[#allocation6 + $0x4] sm:$0x3] %vm475, %v2062
    %v2066 = vld [vmem:[#allocation2 + $0xc] sm:$0x3]
    %2068 = vrot.lane.b32.xlu0 %v2058, 64
    %v2069 = vpop.permute.xlu0 %2068
    %v2070 = vsel %vm371, %v2069, 0
    %2072 = vmatprep.subr.mxu0 0.0
    %2073 = vmatpush1.msra.mxu0 %v1419
    %2074 = vmatprep.subr.mxu0 0.0
    %2075 = vmatpush1.msra.mxu0 %v1420
    %2076 = vmatprep.subr.mxu0 0.0
    %2077 = vmatpush1.msra.mxu0 %v1421
    %2078 = vmatprep.subr.mxu0 0.0
    %2079 = vmatpush1.msra.mxu0 %v1422
    %2080 = vmatprep.subr.mxu0 0.0
    %2081 = vmatpush1.msra.mxu0 0.0
    %2082 = vmatprep.subr.mxu0 0.0
    %2083 = vmatpush1.msra.mxu0 0.0
    %2084 = vmatprep.subr.mxu0 0.0
    %2085 = vmatpush1.msra.mxu0 0.0
    %2086 = vmatprep.subr.mxu0 0.0
    %2087 = vmatpush1.msra.mxu0 0.0
    %2088 = vmatprep.subr.mxu0 0.0
    %2089 = vmatpush1.msra.mxu0 0.0
    %2090 = vmatprep.subr.mxu0 0.0
    %2091 = vmatpush1.msra.mxu0 0.0
    %2092 = vmatprep.subr.mxu0 0.0
    %2093 = vmatpush1.msra.mxu0 0.0
    %2094 = vmatprep.subr.mxu0 0.0
    %2095 = vmatpush1.msra.mxu0 0.0
    %2096 = vmatprep.subr.mxu0 0.0
    %2097 = vmatpush1.msra.mxu0 0.0
    %2098 = vmatprep.subr.mxu0 0.0
    %2099 = vmatpush1.msra.mxu0 0.0
    %2100 = vmatprep.subr.mxu0 0.0
    %2101 = vmatpush1.msra.mxu0 0.0
    %2102 = vmatprep.subr.mxu0 0.0
    %2103 = vmatpush1.msra.mxu0 0.0
    %2104 = vmatprep.subr.mxu0 0.0
    %2105 = vmatpush1.msra.mxu0 0.0
    %2106 = vmatprep.subr.mxu0 0.0
    %2107 = vmatpush1.msra.mxu0 0.0
    %2108 = vmatprep.subr.mxu0 0.0
    %2109 = vmatpush1.msra.mxu0 0.0
    %2110 = vmatprep.subr.mxu0 0.0
    %2111 = vmatpush1.msra.mxu0 0.0
    %2112 = vmatprep.subr.mxu0 0.0
    %2113 = vmatpush1.msra.mxu0 0.0
    %2114 = vmatprep.subr.mxu0 0.0
    %2115 = vmatpush1.msra.mxu0 0.0
    %2116 = vmatprep.subr.mxu0 0.0
    %2117 = vmatpush1.msra.mxu0 0.0
    %2118 = vmatprep.subr.mxu0 0.0
    %2119 = vmatpush1.msra.mxu0 0.0
    %2120 = vmatprep.subr.mxu0 0.0
    %2121 = vmatpush1.msra.mxu0 0.0
    %2122 = vmatprep.subr.mxu0 0.0
    %2123 = vmatpush1.msra.mxu0 0.0
    %2124 = vmatprep.subr.mxu0 0.0
    %2125 = vmatpush1.msra.mxu0 0.0
    %2126 = vmatprep.subr.mxu0 0.0
    %2127 = vmatpush1.msra.mxu0 0.0
    %2128 = vmatprep.subr.mxu0 0.0
    %2129 = vmatpush1.msra.mxu0 0.0
    %2130 = vmatprep.subr.mxu0 0.0
    %2131 = vmatpush1.msra.mxu0 0.0
    %2132 = vmatprep.subr.mxu0 0.0
    %2133 = vmatpush1.msra.mxu0 0.0
    %2134 = vmatprep.subr.mxu0 0.0
    %2135 = vmatpush1.msra.mxu0 0.0
    %2136 = vmatprep.mubr.f32.mxu0 0.0
    %2137 = vmatmul.mubr.f32.gmra.mrb[0].mxu0 %v2070
    %v2138 = vpop.f32.mrb[0].mxu0
    %v2139 = vadd.f32 0.0, %v2138
    %v2140 = vpop.f32.mrb[0].mxu0
    %2141 = vdwg.mxu0
    %v2142 = vadd.f32 %v2066, %v2139
    %v2143 = vxor.u32 %v2142, 2147483648
    %v2144 = vmul.f32 %v2143, 1.442695
    %v2145 = vpow.pop %v2144
    %v2146 = vadd.f32 %v2145, 1.0
    %v2147 = vrcp.pop %v2146
    %v2148 = vmul.f32 1.0, %v2147
    %v2149 = vtanh.pop %v2142
    %v2150 = vmul.f32 %v2148, %v2052
    %2152 = vrot.lane.b32.xlu0 %v2149, 32
    %v2153 = vpop.permute.xlu0 %2152
    %v2155 = vmul.f32 %v2148, %v2153
    %2157 = vrot.lane.b32.xlu0 %v2155, 32
    %v2158 = vpop.permute.xlu0 %2157
    %v2160 = vadd.f32 %v2150, %v2158
    %v2161 = vtanh.pop %v2160
    %2163 = vrot.lane.b32.xlu0 %v2161, 32
    %v2164 = vpop.permute.xlu0 %2163
    %v2166 = vmul.f32 %v2148, %v2164
    %v2167 = vmax.f32 %v2166, 0.0
    %2169 = vrot.lane.b32.xlu0 %v2167, 64
    %v2170 = vpop.permute.xlu0 %2169
    %2172 = vst.msk [vmem:[#allocation5 + $0xc] sm:$0x3] %vm475, %v2170
    %2173 = vst.msk [vmem:[#allocation6 + $0x2] sm:$0x3] %vm475, %v2170
    %v2174 = vld [vmem:[#allocation2 + $0xe] sm:$0x3]
    %2176 = vrot.lane.b32.xlu0 %v2166, 64
    %v2177 = vpop.permute.xlu0 %2176
    %v2178 = vsel %vm371, %v2177, 0
    %2180 = vmatprep.subr.mxu0 0.0
    %2181 = vmatpush1.msra.mxu0 %v1419
    %2182 = vmatprep.subr.mxu0 0.0
    %2183 = vmatpush1.msra.mxu0 %v1420
    %2184 = vmatprep.subr.mxu0 0.0
    %2185 = vmatpush1.msra.mxu0 %v1421
    %2186 = vmatprep.subr.mxu0 0.0
    %2187 = vmatpush1.msra.mxu0 %v1422
    %2188 = vmatprep.subr.mxu0 0.0
    %2189 = vmatpush1.msra.mxu0 0.0
    %2190 = vmatprep.subr.mxu0 0.0
    %2191 = vmatpush1.msra.mxu0 0.0
    %2192 = vmatprep.subr.mxu0 0.0
    %2193 = vmatpush1.msra.mxu0 0.0
    %2194 = vmatprep.subr.mxu0 0.0
    %2195 = vmatpush1.msra.mxu0 0.0
    %2196 = vmatprep.subr.mxu0 0.0
    %2197 = vmatpush1.msra.mxu0 0.0
    %2198 = vmatprep.subr.mxu0 0.0
    %2199 = vmatpush1.msra.mxu0 0.0
    %2200 = vmatprep.subr.mxu0 0.0
    %2201 = vmatpush1.msra.mxu0 0.0
    %2202 = vmatprep.subr.mxu0 0.0
    %2203 = vmatpush1.msra.mxu0 0.0
    %2204 = vmatprep.subr.mxu0 0.0
    %2205 = vmatpush1.msra.mxu0 0.0
    %2206 = vmatprep.subr.mxu0 0.0
    %2207 = vmatpush1.msra.mxu0 0.0
    %2208 = vmatprep.subr.mxu0 0.0
    %2209 = vmatpush1.msra.mxu0 0.0
    %2210 = vmatprep.subr.mxu0 0.0
    %2211 = vmatpush1.msra.mxu0 0.0
    %2212 = vmatprep.subr.mxu0 0.0
    %2213 = vmatpush1.msra.mxu0 0.0
    %2214 = vmatprep.subr.mxu0 0.0
    %2215 = vmatpush1.msra.mxu0 0.0
    %2216 = vmatprep.subr.mxu0 0.0
    %2217 = vmatpush1.msra.mxu0 0.0
    %2218 = vmatprep.subr.mxu0 0.0
    %2219 = vmatpush1.msra.mxu0 0.0
    %2220 = vmatprep.subr.mxu0 0.0
    %2221 = vmatpush1.msra.mxu0 0.0
    %2222 = vmatprep.subr.mxu0 0.0
    %2223 = vmatpush1.msra.mxu0 0.0
    %2224 = vmatprep.subr.mxu0 0.0
    %2225 = vmatpush1.msra.mxu0 0.0
    %2226 = vmatprep.subr.mxu0 0.0
    %2227 = vmatpush1.msra.mxu0 0.0
    %2228 = vmatprep.subr.mxu0 0.0
    %2229 = vmatpush1.msra.mxu0 0.0
    %2230 = vmatprep.subr.mxu0 0.0
    %2231 = vmatpush1.msra.mxu0 0.0
    %2232 = vmatprep.subr.mxu0 0.0
    %2233 = vmatpush1.msra.mxu0 0.0
    %2234 = vmatprep.subr.mxu0 0.0
    %2235 = vmatpush1.msra.mxu0 0.0
    %2236 = vmatprep.subr.mxu0 0.0
    %2237 = vmatpush1.msra.mxu0 0.0
    %2238 = vmatprep.subr.mxu0 0.0
    %2239 = vmatpush1.msra.mxu0 0.0
    %2240 = vmatprep.subr.mxu0 0.0
    %2241 = vmatpush1.msra.mxu0 0.0
    %2242 = vmatprep.subr.mxu0 0.0
    %2243 = vmatpush1.msra.mxu0 0.0
    %2244 = vmatprep.mubr.f32.mxu0 0.0
    %2245 = vmatmul.mubr.f32.gmra.mrb[0].mxu0 %v2178
    %v2246 = vpop.f32.mrb[0].mxu0
    %v2247 = vadd.f32 0.0, %v2246
    %v2248 = vpop.f32.mrb[0].mxu0
    %2249 = vdwg.mxu0
    %v2250 = vadd.f32 %v2174, %v2247
    %v2251 = vxor.u32 %v2250, 2147483648
    %v2252 = vmul.f32 %v2251, 1.442695
    %v2253 = vpow.pop %v2252
    %v2254 = vadd.f32 %v2253, 1.0
    %v2255 = vrcp.pop %v2254
    %v2256 = vmul.f32 1.0, %v2255
    %v2257 = vtanh.pop %v2250
    %v2258 = vmul.f32 %v2256, %v2160
    %2260 = vrot.lane.b32.xlu0 %v2257, 32
    %v2261 = vpop.permute.xlu0 %2260
    %v2263 = vmul.f32 %v2256, %v2261
    %2265 = vrot.lane.b32.xlu0 %v2263, 32
    %v2266 = vpop.permute.xlu0 %2265
    %v2268 = vadd.f32 %v2258, %v2266
    %v2269 = vtanh.pop %v2268
    %2271 = vrot.lane.b32.xlu0 %v2269, 32
    %v2272 = vpop.permute.xlu0 %2271
    %v2274 = vmul.f32 %v2256, %v2272
    %v2275 = vmax.f32 %v2274, 0.0
    %2277 = vrot.lane.b32.xlu0 %v2275, 64
    %v2278 = vpop.permute.xlu0 %2277
    %2280 = vst.msk [vmem:[#allocation5 + $0xe] sm:$0x3] %vm475, %v2278
    %2281 = vst.msk [vmem:[#allocation6] sm:$0x3] %vm475, %v2278
    %v2282 = vld [vmem:[#allocation5] sm:$0xff]
    %v2283 = vld [vmem:[#allocation5 + $0x8] sm:$0xff]
    %v2284 = vld [vmem:[%s10] sm:$0xff]
    %v2285 = vld [vmem:[%s10 + $0x8] sm:$0xff]
    %v2286 = vld [vmem:[%s10 + $0x10] sm:$0xff]
    %v2287 = vld [vmem:[%s10 + $0x18] sm:$0xff]
    %v2288 = vld [vmem:[#allocation6] sm:$0xff]
    %v2289 = vld [vmem:[#allocation6 + $0x8] sm:$0xff]
    %v2290 = vld [vmem:[#allocation21] sm:$0xff]
    %v2291 = vld [vmem:[#allocation21 + $0x8] sm:$0xff]
    %v2292 = vld [vmem:[#allocation21 + $0x10] sm:$0xff]
    %v2293 = vld [vmem:[#allocation21 + $0x18] sm:$0xff]
    %v2295 = vsel %vm371, %v2288, 0
    %v2298 = vsel %vm371, %v2289, 0
    %2300 = vmatprep.subr.mxu0 0.0
    %2301 = vmatpush1.msra.mxu0 %v2290
    %2302 = vmatprep.subr.mxu0 0.0
    %2303 = vmatpush1.msra.mxu0 %v2291
    %2304 = vmatprep.subr.mxu0 0.0
    %2305 = vmatpush1.msra.mxu0 %v2292
    %2306 = vmatprep.subr.mxu0 0.0
    %2307 = vmatpush1.msra.mxu0 %v2293
    %2308 = vmatprep.subr.mxu0 0.0
    %2309 = vmatpush1.msra.mxu0 0.0
    %2310 = vmatprep.subr.mxu0 0.0
    %2311 = vmatpush1.msra.mxu0 0.0
    %2312 = vmatprep.subr.mxu0 0.0
    %2313 = vmatpush1.msra.mxu0 0.0
    %2314 = vmatprep.subr.mxu0 0.0
    %2315 = vmatpush1.msra.mxu0 0.0
    %2316 = vmatprep.subr.mxu0 0.0
    %2317 = vmatpush1.msra.mxu0 0.0
    %2318 = vmatprep.subr.mxu0 0.0
    %2319 = vmatpush1.msra.mxu0 0.0
    %2320 = vmatprep.subr.mxu0 0.0
    %2321 = vmatpush1.msra.mxu0 0.0
    %2322 = vmatprep.subr.mxu0 0.0
    %2323 = vmatpush1.msra.mxu0 0.0
    %2324 = vmatprep.subr.mxu0 0.0
    %2325 = vmatpush1.msra.mxu0 0.0
    %2326 = vmatprep.subr.mxu0 0.0
    %2327 = vmatpush1.msra.mxu0 0.0
    %2328 = vmatprep.subr.mxu0 0.0
    %2329 = vmatpush1.msra.mxu0 0.0
    %2330 = vmatprep.subr.mxu0 0.0
    %2331 = vmatpush1.msra.mxu0 0.0
    %2332 = vmatprep.subr.mxu0 0.0
    %2333 = vmatpush1.msra.mxu0 0.0
    %2334 = vmatprep.subr.mxu0 0.0
    %2335 = vmatpush1.msra.mxu0 0.0
    %2336 = vmatprep.subr.mxu0 0.0
    %2337 = vmatpush1.msra.mxu0 0.0
    %2338 = vmatprep.subr.mxu0 0.0
    %2339 = vmatpush1.msra.mxu0 0.0
    %2340 = vmatprep.subr.mxu0 0.0
    %2341 = vmatpush1.msra.mxu0 0.0
    %2342 = vmatprep.subr.mxu0 0.0
    %2343 = vmatpush1.msra.mxu0 0.0
    %2344 = vmatprep.subr.mxu0 0.0
    %2345 = vmatpush1.msra.mxu0 0.0
    %2346 = vmatprep.subr.mxu0 0.0
    %2347 = vmatpush1.msra.mxu0 0.0
    %2348 = vmatprep.subr.mxu0 0.0
    %2349 = vmatpush1.msra.mxu0 0.0
    %2350 = vmatprep.subr.mxu0 0.0
    %2351 = vmatpush1.msra.mxu0 0.0
    %2352 = vmatprep.subr.mxu0 0.0
    %2353 = vmatpush1.msra.mxu0 0.0
    %2354 = vmatprep.subr.mxu0 0.0
    %2355 = vmatpush1.msra.mxu0 0.0
    %2356 = vmatprep.subr.mxu0 0.0
    %2357 = vmatpush1.msra.mxu0 0.0
    %2358 = vmatprep.subr.mxu0 0.0
    %2359 = vmatpush1.msra.mxu0 0.0
    %2360 = vmatprep.subr.mxu0 0.0
    %2361 = vmatpush1.msra.mxu0 0.0
    %2362 = vmatprep.subr.mxu0 0.0
    %2363 = vmatpush1.msra.mxu0 0.0
    %2364 = vmatprep.mubr.f32.mxu0 0.0
    %2365 = vmatmul.mubr.f32.gmra.mrb[0].mxu0 %v2295
    %v2366 = vpop.f32.mrb[0].mxu0
    %v2367 = vadd.f32 0.0, %v2366
    %v2368 = vpop.f32.mrb[0].mxu0
    %2369 = vmatprep.mubr.f32.mxu0 0.0
    %2370 = vmatmul.mubr.f32.gmra.mrb[0].mxu0 %v2298
    %v2371 = vpop.f32.mrb[0].mxu0
    %v2372 = vadd.f32 0.0, %v2371
    %v2373 = vpop.f32.mrb[0].mxu0
    %2374 = vdwg.mxu0
    %v2376 = vsel %vm371, %v2282, 0
    %v2379 = vsel %vm371, %v2283, 0
    %2381 = vmatprep.subr.mxu0 0.0
    %2382 = vmatpush1.msra.mxu0 %v2284
    %2383 = vmatprep.subr.mxu0 0.0
    %2384 = vmatpush1.msra.mxu0 %v2285
    %2385 = vmatprep.subr.mxu0 0.0
    %2386 = vmatpush1.msra.mxu0 %v2286
    %2387 = vmatprep.subr.mxu0 0.0
    %2388 = vmatpush1.msra.mxu0 %v2287
    %2389 = vmatprep.subr.mxu0 0.0
    %2390 = vmatpush1.msra.mxu0 0.0
    %2391 = vmatprep.subr.mxu0 0.0
    %2392 = vmatpush1.msra.mxu0 0.0
    %2393 = vmatprep.subr.mxu0 0.0
    %2394 = vmatpush1.msra.mxu0 0.0
    %2395 = vmatprep.subr.mxu0 0.0
    %2396 = vmatpush1.msra.mxu0 0.0
    %2397 = vmatprep.subr.mxu0 0.0
    %2398 = vmatpush1.msra.mxu0 0.0
    %2399 = vmatprep.subr.mxu0 0.0
    %2400 = vmatpush1.msra.mxu0 0.0
    %2401 = vmatprep.subr.mxu0 0.0
    %2402 = vmatpush1.msra.mxu0 0.0
    %2403 = vmatprep.subr.mxu0 0.0
    %2404 = vmatpush1.msra.mxu0 0.0
    %2405 = vmatprep.subr.mxu0 0.0
    %2406 = vmatpush1.msra.mxu0 0.0
    %2407 = vmatprep.subr.mxu0 0.0
    %2408 = vmatpush1.msra.mxu0 0.0
    %2409 = vmatprep.subr.mxu0 0.0
    %2410 = vmatpush1.msra.mxu0 0.0
    %2411 = vmatprep.subr.mxu0 0.0
    %2412 = vmatpush1.msra.mxu0 0.0
    %2413 = vmatprep.subr.mxu0 0.0
    %2414 = vmatpush1.msra.mxu0 0.0
    %2415 = vmatprep.subr.mxu0 0.0
    %2416 = vmatpush1.msra.mxu0 0.0
    %2417 = vmatprep.subr.mxu0 0.0
    %2418 = vmatpush1.msra.mxu0 0.0
    %2419 = vmatprep.subr.mxu0 0.0
    %2420 = vmatpush1.msra.mxu0 0.0
    %2421 = vmatprep.subr.mxu0 0.0
    %2422 = vmatpush1.msra.mxu0 0.0
    %2423 = vmatprep.subr.mxu0 0.0
    %2424 = vmatpush1.msra.mxu0 0.0
    %2425 = vmatprep.subr.mxu0 0.0
    %2426 = vmatpush1.msra.mxu0 0.0
    %2427 = vmatprep.subr.mxu0 0.0
    %2428 = vmatpush1.msra.mxu0 0.0
    %2429 = vmatprep.subr.mxu0 0.0
    %2430 = vmatpush1.msra.mxu0 0.0
    %2431 = vmatprep.subr.mxu0 0.0
    %2432 = vmatpush1.msra.mxu0 0.0
    %2433 = vmatprep.subr.mxu0 0.0
    %2434 = vmatpush1.msra.mxu0 0.0
    %2435 = vmatprep.subr.mxu0 0.0
    %2436 = vmatpush1.msra.mxu0 0.0
    %2437 = vmatprep.subr.mxu0 0.0
    %2438 = vmatpush1.msra.mxu0 0.0
    %2439 = vmatprep.subr.mxu0 0.0
    %2440 = vmatpush1.msra.mxu0 0.0
    %2441 = vmatprep.subr.mxu0 0.0
    %2442 = vmatpush1.msra.mxu0 0.0
    %2443 = vmatprep.subr.mxu0 0.0
    %2444 = vmatpush1.msra.mxu0 0.0
    %2445 = vmatprep.mubr.f32.mxu0 0.0
    %2446 = vmatmul.mubr.f32.gmra.mrb[0].mxu0 %v2376
    %v2447 = vpop.f32.mrb[0].mxu0
    %v2448 = vadd.f32 %v2367, %v2447
    %v2449 = vpop.f32.mrb[0].mxu0
    %2450 = vmatprep.mubr.f32.mxu0 0.0
    %2451 = vmatmul.mubr.f32.gmra.mrb[0].mxu0 %v2379
    %v2452 = vpop.f32.mrb[0].mxu0
    %v2453 = vadd.f32 %v2372, %v2452
    %v2454 = vpop.f32.mrb[0].mxu0
    %2455 = vdwg.mxu0
    %v2456 = vld [vmem:[%s12] sm:$0x1]
    %v2458 = vlaneseq
    %v2459 = vshrl.u32 %v2458, 7
    %v2460 = vsub.s32 0, %v2459
    %v2461 = vrot.slane %v2456, %v2460
    %v2463 = vadd.f32 %v2448, %v2461
    %v2464 = vadd.f32 %v2453, %v2461
    %v2465 = vtanh.pop %v2463
    %v2466 = vtanh.pop %v2464
    %2467 = vst.msk [vmem:[#allocation22] sm:$0xff] %vm185, %v2465
    %2468 = vst.msk [vmem:[#allocation22 + $0x8] sm:$0xff] %vm185, %v2466
    // Predicated region
    $region90: #{tpu_custom_call.1} parent=1 // pred_check
      _
    $region91: #{tpu_custom_call.1} parent=1 // pred_check_branch
      %2470 = sbr.rel (0) target = $region93
    $region92: #{tpu_custom_call.1} parent=1 // pred_region
      %s2472 = ssub.s32 256, 256
      %2473 = vsyncadd [#allocation9], %s2472
      %s2474 = sshll.u32 [#allocation22], 4
      %s2475 = int_to_ptr.vmem [resolvable:$true] %s2474
      %2480 = dma.vmem_to_hbm [thread:$0]  %s2475, 256, %s13, [#allocation9], 128, 128, 8
    $region93: #{tpu_custom_call.1} parent=1 // pred_fallthru
      _
    // Predicated region
    $region94: #{tpu_custom_call.1} parent=1 // pred_check
      _
    $region95: #{tpu_custom_call.1} parent=1 // pred_check_branch
      %2482 = sbr.rel (0) target = $region97
    $region96: #{tpu_custom_call.1} parent=1 // pred_region
      %2483 = dma.done [#allocation9], 256
    $region97: #{tpu_custom_call.1} parent=1 // pred_fallthru
      _
    %2484 = vsyncpa [#allocation8], 1
    %2485 = vsyncpa [#allocation11], 1
    %2486 = vsyncpa [#allocation14], 1
    %2487 = vsyncpa [#allocation17], 1
    %2488 = vsyncpa [#allocation20], 1
    %2489 = vsyncpa [#allocation9], 1

</llo_original>
